<compile_context>
chip_gen: v7x
topology: tpu7x:2x2x1
jax: 0.10.0
libtpu: 0.0.40
codegen_flags: <defaults>
</compile_context>

<pallas_src>
import functools

import jax
import jax.numpy as jnp
from jax.experimental import pallas as pl
from jax.experimental.pallas import tpu as pltpu


def _round_up(v, m):
    return ((v + m - 1) // m) * m


# ----------------------------------------------------------------------------
# Pallas kernel 1: transposed GEMM  O = act(W @ P [+ bias]), one full block.
#   W: (Co, K)  P: (K, M)  bias: (Co, 1)  O: (Co, M)   (M = N*Ho*Wo on lanes)
# ----------------------------------------------------------------------------
def _gemm_t_bias_kernel(w_ref, p_ref, b_ref, o_ref, *, relu):
    acc = jnp.dot(w_ref[...], p_ref[...], preferred_element_type=jnp.float32)
    acc = acc + b_ref[...]                 # (Co, 1) broadcasts along lanes
    if relu:
        acc = jnp.maximum(acc, 0.0)
    o_ref[...] = acc.astype(o_ref.dtype)


def _gemm_t_kernel(w_ref, p_ref, o_ref, *, relu):
    acc = jnp.dot(w_ref[...], p_ref[...], preferred_element_type=jnp.float32)
    if relu:
        acc = jnp.maximum(acc, 0.0)
    o_ref[...] = acc.astype(o_ref.dtype)


def pallas_gemm_t(w_mat, p_mat, bias=None, relu=False):
    """act(w_mat @ p_mat [+ bias[:, None]]).

    w_mat: (Co, K), p_mat: (K, M), bias: (Co,) -> (Co, M), float32.
    Single full-extent block (grid=(1,)): full-array blocks have no (8, 128)
    divisibility requirement, so there is no padding and no output slice.
    Per-layer working set is << 1 MiB, far below every generation's
    scoped-VMEM default, so no vmem_limit_bytes is needed.
    """
    co, kdim = w_mat.shape
    k2, m = p_mat.shape
    assert k2 == kdim
    if bias is not None:
        kernel = functools.partial(_gemm_t_bias_kernel, relu=relu)
        in_specs = [
            pl.BlockSpec((co, kdim), lambda i: (0, 0)),
            pl.BlockSpec((kdim, m), lambda i: (0, 0)),
            pl.BlockSpec((co, 1), lambda i: (0, 0)),
        ]
        args = (w_mat, p_mat, bias.reshape(co, 1))
    else:
        kernel = functools.partial(_gemm_t_kernel, relu=relu)
        in_specs = [
            pl.BlockSpec((co, kdim), lambda i: (0, 0)),
            pl.BlockSpec((kdim, m), lambda i: (0, 0)),
        ]
        args = (w_mat, p_mat)
    return pl.pallas_call(
        kernel,
        out_shape=jax.ShapeDtypeStruct((co, m), jnp.float32),
        grid=(1,),
        in_specs=in_specs,
        out_specs=pl.BlockSpec((co, m), lambda i: (0, 0)),
    )(*args)


# ----------------------------------------------------------------------------
# Pallas kernel 2: K-tiled GEMM with f32 VMEM accumulator (Coefficient @ z)
# ----------------------------------------------------------------------------
def _gemm_ktiled_kernel(a_ref, b_ref, o_ref, acc_ref):
    @pl.when(pl.program_id(2) == 0)
    def _init():
        acc_ref[...] = jnp.zeros_like(acc_ref)

    acc_ref[...] += jnp.dot(a_ref[...], b_ref[...],
                            preferred_element_type=jnp.float32)

    @pl.when(pl.program_id(2) == pl.num_programs(2) - 1)
    def _finalize():
        o_ref[...] = acc_ref[...].astype(o_ref.dtype)


def pallas_matmul_ktiled(a, b, *, tm=256, tn=512, tk=1024):
    """C = A @ B with grid (M, N, K), K innermost + accumulator scratch.

    Default tiles keep the double-buffered footprint ~7.5 MiB, under the
    scoped-VMEM defaults of v5e/v6e/v7x.  For the demo (n=8) the blocks
    shrink to the full extents: a single grid step, no padding, no slice.
    (At large n, raise tk/tm per-generation and optionally pad N=432 to 512
    lanes for unmasked output stores.)
    """
    m, k = a.shape
    k2, n = b.shape
    assert k2 == k
    tm = min(tm, _round_up(m, 8))
    if n <= tn:
        tn = n                       # full-dim block: no 128-divisibility needed
    if k <= tk:
        tk = k
    mp = _round_up(m, tm)
    np_ = _round_up(n, tn)
    kp = _round_up(k, tk)
    if (mp, kp) != (m, k):
        a = jnp.pad(a, ((0, mp - m), (0, kp - k)))
    if (kp, np_) != (k, n):
        b = jnp.pad(b, ((0, kp - k), (0, np_ - n)))
    grid = (mp // tm, np_ // tn, kp // tk)

    out = pl.pallas_call(
        _gemm_ktiled_kernel,
        out_shape=jax.ShapeDtypeStruct((mp, np_), jnp.float32),
        grid=grid,
        in_specs=[
            pl.BlockSpec((tm, tk), lambda i, j, kk: (i, kk)),
            pl.BlockSpec((tk, tn), lambda i, j, kk: (kk, j)),
        ],
        out_specs=pl.BlockSpec((tm, tn), lambda i, j, kk: (i, j)),
        scratch_shapes=[pltpu.VMEM((tm, tn), jnp.float32)],
        compiler_params=pltpu.CompilerParams(
            dimension_semantics=("parallel", "parallel", "arbitrary")),
    )(a, b)
    if (mp, np_) != (m, n):
        out = out[:m, :n]
    return out


# ----------------------------------------------------------------------------
# Glue (index rearrangement in XLA) - activations are channel-major (C,N,H,W)
# ----------------------------------------------------------------------------
# TODO(synk): encoder patch extraction (im2col) stays in XLA; fusing it into
# the kernel needs lane-crossing gathers Mosaic lowers poorly at these small
# spatial sizes.  With channel-major activations the stack below already
# produces the patch matrix in final (tap, c) row order, so no transpose of
# the big patch matrix is needed (the tiny weight is reordered instead).
def _im2col_cm(x_cm, k, stride):
    """x_cm: (C, N, Hp, Wp) -> P[(i,j,c), (n,ho,wo)], plus (ho, wo)."""
    c, n, h, w = x_cm.shape
    ho = (h - k) // stride + 1
    wo = (w - k) // stride + 1
    taps = []
    for i in range(k):
        for j in range(k):
            taps.append(x_cm[:, :, i:i + stride * (ho - 1) + 1:stride,
                                   j:j + stride * (wo - 1) + 1:stride])
    p = jnp.stack(taps, axis=0)                       # (k*k, C, N, Ho, Wo)
    return p.reshape(k * k * c, n * ho * wo), ho, wo  # free contiguous reshape


def conv2d_same_stride2_relu(x_cm, w, b, k):
    """Conv2dSamePad(k,2) -> Conv2d(k, stride=2) -> ReLU, channel-major I/O.

    x_cm: (Cin, N, H, W); w: (Cout, Cin, k, k); returns (Cout, N, Ho, Wo).
    """
    cin, n, h, wd = x_cm.shape
    s = 2
    oh = -(-h // s)
    ow = -(-wd // s)
    pad_h = max((oh - 1) * s + k - h, 0)
    pad_w = max((ow - 1) * s + k - wd, 0)
    pt, pb = pad_h // 2, pad_h - pad_h // 2
    pleft, pright = pad_w // 2, pad_w - pad_w // 2
    xp = jnp.pad(x_cm, ((0, 0), (0, 0), (pt, pb), (pleft, pright)))
    cols, ho, wo = _im2col_cm(xp, k, s)              # (Cin*k*k, N*Ho*Wo)
    cout = w.shape[0]
    w_mat = w.transpose(0, 2, 3, 1).reshape(cout, k * k * cin)  # (co,(i,j,c))
    y = pallas_gemm_t(w_mat, cols, bias=b, relu=True)           # (Cout, M)
    return y.reshape(cout, n, ho, wo)                # free contiguous reshape


def _col2im_parity_bias_crop_relu(t_flat, b, k, cout, n, h, w, out_size):
    """Parity-grouped col2im for stride-2 ConvTranspose, then bias/crop/ReLU.

    t_flat: (k*k*cout, n*h*w) with row order (i, j, co).  The 4 stride-2
    parity sub-grids are dense sums of shifted tap planes; one transpose +
    free reshape interleaves them, and bias + crop + ReLU fuse into that
    same pass.  Replaces k^2 strided HBM read-modify-write passes.
    """
    t6 = t_flat.reshape(k, k, cout, n, h, w)      # free contiguous split
    ah = h + (k - 1) // 2
    bw = w + (k - 1) // 2
    par_rows = []
    for pi in range(2):
        par_row = []
        for pj in range(2):
            acc = jnp.zeros((cout, n, ah, bw), jnp.float32)
            for di in range((k - pi + 1) // 2):
                for dj in range((k - pj + 1) // 2):
                    plane = t6[pi + 2 * di, pj + 2 * dj]
                    acc = acc + jnp.pad(
                        plane,
                        ((0, 0), (0, 0),
                         (di, ah - h - di), (dj, bw - w - dj)))
            par_row.append(acc)
        par_rows.append(jnp.stack(par_row, axis=0))
    par = jnp.stack(par_rows, axis=0)             # (2, 2, cout, n, ah, bw)
    # Interleave: raw[2a+pi, 2b+pj] = par[pi, pj, ..., a, b].
    y = par.transpose(2, 3, 4, 0, 5, 1).reshape(cout, n, 2 * ah, 2 * bw)
    hraw = 2 * (h - 1) + k
    wraw = 2 * (w - 1) + k
    pt = (hraw - out_size[0]) // 2
    pleft = (wraw - out_size[1]) // 2
    y = y[:, :, pt:pt + out_size[0], pleft:pleft + out_size[1]]
    return jnp.maximum(y + b.reshape(cout, 1, 1, 1), 0.0)


def conv_transpose2d_crop_relu(x_cm, w_t, b, k, out_size):
    """ConvTranspose2d(stride=2) -> ConvTranspose2dSamePad(out_size) -> ReLU.

    x_cm: (Cin, N, H, W); w_t: (Cin, Cout, k, k); returns (Cout, N, oh, ow).
    One lane-dense Pallas GEMM on the raw (non-dilated) input:
        T[(i,j,co), (n,h,w)] = sum_c w_t[c, co, i, j] * x[c, n, h, w],
    then the parity col2im above.  Exactly equivalent to the PyTorch path.
    """
    cin, n, h, wd = x_cm.shape
    cout = w_t.shape[1]
    w_all = w_t.transpose(2, 3, 1, 0).reshape(k * k * cout, cin)  # ((i,j,co),c)
    x_flat = x_cm.reshape(cin, n * h * wd)        # free contiguous reshape
    t_flat = pallas_gemm_t(w_all, x_flat)         # (k*k*cout, n*h*w), no bias
    return _col2im_parity_bias_crop_relu(t_flat, b, k, cout, n, h, wd, out_size)


# ----------------------------------------------------------------------------
# DSCNet forward
# ----------------------------------------------------------------------------
DECODER_SIZES = [[12, 11], [24, 21], [48, 42]]   # hardcoded in the reference


def dscnet_forward(params, x, channels, kernels):
    # ---- encoder (channel-major activations) ----
    h = x.transpose(1, 0, 2, 3)                   # (N,C,H,W) -> (C,N,H,W), tiny
    for i in range(len(channels) - 1):
        w, b = params['enc'][i]
        h = conv2d_same_stride2_relu(h, w, b, kernels[i])
    c_last, n, zh, zw = h.shape                   # (C_last, N, 6, 6)
    # z must match PyTorch's z.view(n, -1) (NCHW flattening) -> tiny transpose.
    z = h.transpose(1, 0, 2, 3).reshape(n, -1)

    # ---- self expression: z_recon = Coefficient @ z ----
    z_recon = pallas_matmul_ktiled(params['coef'], z)

    # ---- decoder (channel-major activations) ----
    y = z_recon.reshape(n, c_last, zh, zw).transpose(1, 0, 2, 3)
    rev_kernels = list(reversed(kernels))
    for i in range(len(channels) - 1):
        w, b = params['dec'][i]
        y = conv_transpose2d_crop_relu(y, w, b, rev_kernels[i], DECODER_SIZES[i])
    x_recon = y.transpose(1, 0, 2, 3)             # back to (N, C, H, W)
    return x_recon, z, z_recon


def init_params(channels, kernels, n):
    params = {'enc': [], 'dec': [], 'coef': None}
    key = jax.random.PRNGKey(0)

    def nxt():
        nonlocal key
        key, sub = jax.random.split(key)
        return sub

    # encoder: Conv2d(channels[i-1] -> channels[i], kernel kernels[i-1])
    for i in range(1, len(channels)):
        k = kernels[i - 1]
        w = 0.1 * jax.random.normal(nxt(), (channels[i], channels[i - 1], k, k),
                                    jnp.float32)
        b = 0.01 * jax.random.normal(nxt(), (channels[i],), jnp.float32)
        params['enc'].append((w, b))

    # decoder: ConvTranspose2d(rc[i] -> rc[i+1], kernel rk[i])
    rc = list(reversed(channels))
    rk = list(reversed(kernels))
    for i in range(len(rc) - 1):
        k = rk[i]
        w = 0.1 * jax.random.normal(nxt(), (rc[i], rc[i + 1], k, k), jnp.float32)
        b = 0.01 * jax.random.normal(nxt(), (rc[i + 1],), jnp.float32)
        params['dec'].append((w, b))

    # SelfExpression coefficient (n, n)
    params['coef'] = 0.01 * jax.random.normal(nxt(), (n, n), jnp.float32)
    return params


if __name__ == "__main__":
    channels = [1, 4, 8, 12]     # small channel counts
    kernels = [5, 3, 3]
    n = 8                        # num_sample == batch size

    params = init_params(channels, kernels, n)
    # Input is 48x42 (forced by the hardcoded decoder crop sizes).
    x = jax.random.normal(jax.random.PRNGKey(1), (n, 1, 48, 42), jnp.float32)

    fwd = jax.jit(lambda p, xx: dscnet_forward(p, xx, channels, kernels))
    x_recon, z, z_recon = fwd(params, x)
    jax.block_until_ready((x_recon, z, z_recon))

    assert x_recon.shape == x.shape, x_recon.shape
    assert z.shape == (n, channels[-1] * 6 * 6), z.shape
    assert z_recon.shape == z.shape, z_recon.shape
    print("KERNEL_OK")
</pallas_src>

<mosaic_0001>
module attributes {stable_mosaic.version = 11 : i64} {
  func.func @_gemm_t_bias_kernel(%arg0: i32, %arg1: memref<4x25xf32, #tpu.memory_space<vmem>>, %arg2: memref<25x4032xf32, #tpu.memory_space<vmem>>, %arg3: memref<4x1xf32, #tpu.memory_space<vmem>>, %arg4: memref<4x4032xf32, #tpu.memory_space<vmem>>) attributes {dimension_semantics = [#tpu.dimension_semantics<arbitrary>], iteration_bounds = array<i64: 1>, scalar_prefetch = 0 : i64, scratch_operands = 0 : i64, tpu.core_type = #tpu.core_type<tc>, window_params = [{pipeline_mode = #tpu.pipeline_mode<synchronous>, transform_indices = @transform_0, window_bounds = array<i64: 4, 25>}, {pipeline_mode = #tpu.pipeline_mode<synchronous>, transform_indices = @transform_1, window_bounds = array<i64: 25, 4032>}, {pipeline_mode = #tpu.pipeline_mode<synchronous>, transform_indices = @transform_2, window_bounds = array<i64: 4, 1>}, {pipeline_mode = #tpu.pipeline_mode<synchronous>, transform_indices = @transform_3, window_bounds = array<i64: 4, 4032>}]} {
    %c0 = arith.constant 0 : index
    %c0_0 = arith.constant 0 : index
    %0 = vector.load %arg1[%c0, %c0_0] : memref<4x25xf32, #tpu.memory_space<vmem>>, vector<4x25xf32>
    %c0_1 = arith.constant 0 : index
    %c0_2 = arith.constant 0 : index
    %1 = vector.load %arg2[%c0_1, %c0_2] : memref<25x4032xf32, #tpu.memory_space<vmem>>, vector<25x4032xf32>
    %cst = arith.constant dense<0.000000e+00> : vector<4x4032xf32>
    %2 = tpu.matmul %0, %1, %cst {dimension_numbers = #tpu.dot_dimension_numbers<[1], [0], [0], [1], [0, 0, 1, 1], [], []>} : vector<4x25xf32>, vector<25x4032xf32>, vector<4x4032xf32> -> vector<4x4032xf32>
    %c0_3 = arith.constant 0 : index
    %c0_4 = arith.constant 0 : index
    %3 = vector.load %arg3[%c0_3, %c0_4] : memref<4x1xf32, #tpu.memory_space<vmem>>, vector<4x1xf32>
    %4 = vector.broadcast %3 : vector<4x1xf32> to vector<4x4032xf32>
    %5 = arith.addf %2, %4 : vector<4x4032xf32>
    %cst_5 = arith.constant 0.000000e+00 : f32
    %6 = vector.broadcast %cst_5 : f32 to vector<4x4032xf32>
    %7 = arith.maximumf %5, %6 : vector<4x4032xf32>
    %c0_6 = arith.constant 0 : index
    %c0_7 = arith.constant 0 : index
    %8 = vector.load %arg4[%c0_6, %c0_7] : memref<4x4032xf32, #tpu.memory_space<vmem>>, vector<4x4032xf32>
    tpu.vector_store %arg4[%c0_6, %c0_7], %7 {strides = array<i32>} : memref<4x4032xf32, #tpu.memory_space<vmem>>, vector<4x4032xf32>,
    return
  }
  func.func @transform_0(%arg0: i32) -> (i32, i32) {
    %c0_i32 = arith.constant 0 : i32
    %c0_i32_0 = arith.constant 0 : i32
    %c0_i32_1 = arith.constant 0 : i32
    return %c0_i32, %c0_i32_0 : i32, i32
  }
  func.func @transform_1(%arg0: i32) -> (i32, i32) {
    %c0_i32 = arith.constant 0 : i32
    %c0_i32_0 = arith.constant 0 : i32
    %c0_i32_1 = arith.constant 0 : i32
    return %c0_i32, %c0_i32_0 : i32, i32
  }
  func.func @transform_2(%arg0: i32) -> (i32, i32) {
    %c0_i32 = arith.constant 0 : i32
    %c0_i32_0 = arith.constant 0 : i32
    %c0_i32_1 = arith.constant 0 : i32
    return %c0_i32, %c0_i32_0 : i32, i32
  }
  func.func @transform_3(%arg0: i32) -> (i32, i32) {
    %c0_i32 = arith.constant 0 : i32
    %c0_i32_0 = arith.constant 0 : i32
    %c0_i32_1 = arith.constant 0 : i32
    return %c0_i32, %c0_i32_0 : i32, i32
  }
}

module attributes {stable_mosaic.version = 11 : i64} {
  func.func @_gemm_t_bias_kernel(%arg0: i32, %arg1: memref<8x36xf32, #tpu.memory_space<vmem>>, %arg2: memref<36x1056xf32, #tpu.memory_space<vmem>>, %arg3: memref<8x1xf32, #tpu.memory_space<vmem>>, %arg4: memref<8x1056xf32, #tpu.memory_space<vmem>>) attributes {dimension_semantics = [#tpu.dimension_semantics<arbitrary>], iteration_bounds = array<i64: 1>, scalar_prefetch = 0 : i64, scratch_operands = 0 : i64, tpu.core_type = #tpu.core_type<tc>, window_params = [{pipeline_mode = #tpu.pipeline_mode<synchronous>, transform_indices = @transform_0, window_bounds = array<i64: 8, 36>}, {pipeline_mode = #tpu.pipeline_mode<synchronous>, transform_indices = @transform_1, window_bounds = array<i64: 36, 1056>}, {pipeline_mode = #tpu.pipeline_mode<synchronous>, transform_indices = @transform_2, window_bounds = array<i64: 8, 1>}, {pipeline_mode = #tpu.pipeline_mode<synchronous>, transform_indices = @transform_3, window_bounds = array<i64: 8, 1056>}]} {
    %c0 = arith.constant 0 : index
    %c0_0 = arith.constant 0 : index
    %0 = vector.load %arg1[%c0, %c0_0] : memref<8x36xf32, #tpu.memory_space<vmem>>, vector<8x36xf32>
    %c0_1 = arith.constant 0 : index
    %c0_2 = arith.constant 0 : index
    %1 = vector.load %arg2[%c0_1, %c0_2] : memref<36x1056xf32, #tpu.memory_space<vmem>>, vector<36x1056xf32>
    %cst = arith.constant dense<0.000000e+00> : vector<8x1056xf32>
    %2 = tpu.matmul %0, %1, %cst {dimension_numbers = #tpu.dot_dimension_numbers<[1], [0], [0], [1], [0, 0, 1, 1], [], []>} : vector<8x36xf32>, vector<36x1056xf32>, vector<8x1056xf32> -> vector<8x1056xf32>
    %c0_3 = arith.constant 0 : index
    %c0_4 = arith.constant 0 : index
    %3 = vector.load %arg3[%c0_3, %c0_4] : memref<8x1xf32, #tpu.memory_space<vmem>>, vector<8x1xf32>
    %4 = vector.broadcast %3 : vector<8x1xf32> to vector<8x1056xf32>
    %5 = arith.addf %2, %4 : vector<8x1056xf32>
    %cst_5 = arith.constant 0.000000e+00 : f32
    %6 = vector.broadcast %cst_5 : f32 to vector<8x1056xf32>
    %7 = arith.maximumf %5, %6 : vector<8x1056xf32>
    %c0_6 = arith.constant 0 : index
    %c0_7 = arith.constant 0 : index
    %8 = vector.load %arg4[%c0_6, %c0_7] : memref<8x1056xf32, #tpu.memory_space<vmem>>, vector<8x1056xf32>
    tpu.vector_store %arg4[%c0_6, %c0_7], %7 {strides = array<i32>} : memref<8x1056xf32, #tpu.memory_space<vmem>>, vector<8x1056xf32>,
    return
  }
  func.func @transform_0(%arg0: i32) -> (i32, i32) {
    %c0_i32 = arith.constant 0 : i32
    %c0_i32_0 = arith.constant 0 : i32
    %c0_i32_1 = arith.constant 0 : i32
    return %c0_i32, %c0_i32_0 : i32, i32
  }
  func.func @transform_1(%arg0: i32) -> (i32, i32) {
    %c0_i32 = arith.constant 0 : i32
    %c0_i32_0 = arith.constant 0 : i32
    %c0_i32_1 = arith.constant 0 : i32
    return %c0_i32, %c0_i32_0 : i32, i32
  }
  func.func @transform_2(%arg0: i32) -> (i32, i32) {
    %c0_i32 = arith.constant 0 : i32
    %c0_i32_0 = arith.constant 0 : i32
    %c0_i32_1 = arith.constant 0 : i32
    return %c0_i32, %c0_i32_0 : i32, i32
  }
  func.func @transform_3(%arg0: i32) -> (i32, i32) {
    %c0_i32 = arith.constant 0 : i32
    %c0_i32_0 = arith.constant 0 : i32
    %c0_i32_1 = arith.constant 0 : i32
    return %c0_i32, %c0_i32_0 : i32, i32
  }
}

module attributes {stable_mosaic.version = 11 : i64} {
  func.func @_gemm_t_bias_kernel(%arg0: i32, %arg1: memref<12x72xf32, #tpu.memory_space<vmem>>, %arg2: memref<72x288xf32, #tpu.memory_space<vmem>>, %arg3: memref<12x1xf32, #tpu.memory_space<vmem>>, %arg4: memref<12x288xf32, #tpu.memory_space<vmem>>) attributes {dimension_semantics = [#tpu.dimension_semantics<arbitrary>], iteration_bounds = array<i64: 1>, scalar_prefetch = 0 : i64, scratch_operands = 0 : i64, tpu.core_type = #tpu.core_type<tc>, window_params = [{pipeline_mode = #tpu.pipeline_mode<synchronous>, transform_indices = @transform_0, window_bounds = array<i64: 12, 72>}, {pipeline_mode = #tpu.pipeline_mode<synchronous>, transform_indices = @transform_1, window_bounds = array<i64: 72, 288>}, {pipeline_mode = #tpu.pipeline_mode<synchronous>, transform_indices = @transform_2, window_bounds = array<i64: 12, 1>}, {pipeline_mode = #tpu.pipeline_mode<synchronous>, transform_indices = @transform_3, window_bounds = array<i64: 12, 288>}]} {
    %c0 = arith.constant 0 : index
    %c0_0 = arith.constant 0 : index
    %0 = vector.load %arg1[%c0, %c0_0] : memref<12x72xf32, #tpu.memory_space<vmem>>, vector<12x72xf32>
    %c0_1 = arith.constant 0 : index
    %c0_2 = arith.constant 0 : index
    %1 = vector.load %arg2[%c0_1, %c0_2] : memref<72x288xf32, #tpu.memory_space<vmem>>, vector<72x288xf32>
    %cst = arith.constant dense<0.000000e+00> : vector<12x288xf32>
    %2 = tpu.matmul %0, %1, %cst {dimension_numbers = #tpu.dot_dimension_numbers<[1], [0], [0], [1], [0, 0, 1, 1], [], []>} : vector<12x72xf32>, vector<72x288xf32>, vector<12x288xf32> -> vector<12x288xf32>
    %c0_3 = arith.constant 0 : index
    %c0_4 = arith.constant 0 : index
    %3 = vector.load %arg3[%c0_3, %c0_4] : memref<12x1xf32, #tpu.memory_space<vmem>>, vector<12x1xf32>
    %4 = vector.broadcast %3 : vector<12x1xf32> to vector<12x288xf32>
    %5 = arith.addf %2, %4 : vector<12x288xf32>
    %cst_5 = arith.constant 0.000000e+00 : f32
    %6 = vector.broadcast %cst_5 : f32 to vector<12x288xf32>
    %7 = arith.maximumf %5, %6 : vector<12x288xf32>
    %c0_6 = arith.constant 0 : index
    %c0_7 = arith.constant 0 : index
    %8 = vector.load %arg4[%c0_6, %c0_7] : memref<12x288xf32, #tpu.memory_space<vmem>>, vector<12x288xf32>
    tpu.vector_store %arg4[%c0_6, %c0_7], %7 {strides = array<i32>} : memref<12x288xf32, #tpu.memory_space<vmem>>, vector<12x288xf32>,
    return
  }
  func.func @transform_0(%arg0: i32) -> (i32, i32) {
    %c0_i32 = arith.constant 0 : i32
    %c0_i32_0 = arith.constant 0 : i32
    %c0_i32_1 = arith.constant 0 : i32
    return %c0_i32, %c0_i32_0 : i32, i32
  }
  func.func @transform_1(%arg0: i32) -> (i32, i32) {
    %c0_i32 = arith.constant 0 : i32
    %c0_i32_0 = arith.constant 0 : i32
    %c0_i32_1 = arith.constant 0 : i32
    return %c0_i32, %c0_i32_0 : i32, i32
  }
  func.func @transform_2(%arg0: i32) -> (i32, i32) {
    %c0_i32 = arith.constant 0 : i32
    %c0_i32_0 = arith.constant 0 : i32
    %c0_i32_1 = arith.constant 0 : i32
    return %c0_i32, %c0_i32_0 : i32, i32
  }
  func.func @transform_3(%arg0: i32) -> (i32, i32) {
    %c0_i32 = arith.constant 0 : i32
    %c0_i32_0 = arith.constant 0 : i32
    %c0_i32_1 = arith.constant 0 : i32
    return %c0_i32, %c0_i32_0 : i32, i32
  }
}

module attributes {stable_mosaic.version = 11 : i64} {
  func.func @_gemm_ktiled_kernel(%arg0: i32, %arg1: i32, %arg2: i32, %arg3: memref<8x8xf32, #tpu.memory_space<vmem>>, %arg4: memref<8x432xf32, #tpu.memory_space<vmem>>, %arg5: memref<8x432xf32, #tpu.memory_space<vmem>>, %arg6: memref<8x432xf32, #tpu.memory_space<vmem>>) attributes {dimension_semantics = [#tpu.dimension_semantics<parallel>, #tpu.dimension_semantics<parallel>, #tpu.dimension_semantics<arbitrary>], iteration_bounds = array<i64: 1, 1, 1>, scalar_prefetch = 0 : i64, scratch_operands = 1 : i64, tpu.core_type = #tpu.core_type<tc>, window_params = [{transform_indices = @transform_0, window_bounds = array<i64: 8, 8>}, {transform_indices = @transform_1, window_bounds = array<i64: 8, 432>}, {transform_indices = @transform_2, window_bounds = array<i64: 8, 432>}]} {
    %c0_i32 = arith.constant 0 : i32
    %0 = arith.cmpi eq, %arg2, %c0_i32 : i32
    %1 = arith.extui %0 : i1 to i32
    %c0_i32_0 = arith.constant 0 : i32
    %2 = arith.cmpi ne, %1, %c0_i32_0 : i32
    scf.if %2 {
      %cst_10 = arith.constant 0.000000e+00 : f32
      %12 = vector.broadcast %cst_10 : f32 to vector<8x432xf32>
      %c0_11 = arith.constant 0 : index
      %c0_12 = arith.constant 0 : index
      %13 = vector.load %arg6[%c0_11, %c0_12] : memref<8x432xf32, #tpu.memory_space<vmem>>, vector<8x432xf32>
      tpu.vector_store %arg6[%c0_11, %c0_12], %12 {strides = array<i32>} : memref<8x432xf32, #tpu.memory_space<vmem>>, vector<8x432xf32>,
    } else {
    }
    %c0 = arith.constant 0 : index
    %c0_1 = arith.constant 0 : index
    %3 = vector.load %arg6[%c0, %c0_1] : memref<8x432xf32, #tpu.memory_space<vmem>>, vector<8x432xf32>
    %c0_2 = arith.constant 0 : index
    %c0_3 = arith.constant 0 : index
    %4 = vector.load %arg3[%c0_2, %c0_3] : memref<8x8xf32, #tpu.memory_space<vmem>>, vector<8x8xf32>
    %c0_4 = arith.constant 0 : index
    %c0_5 = arith.constant 0 : index
    %5 = vector.load %arg4[%c0_4, %c0_5] : memref<8x432xf32, #tpu.memory_space<vmem>>, vector<8x432xf32>
    %cst = arith.constant dense<0.000000e+00> : vector<8x432xf32>
    %6 = tpu.matmul %4, %5, %cst {dimension_numbers = #tpu.dot_dimension_numbers<[1], [0], [0], [1], [0, 0, 1, 1], [], []>} : vector<8x8xf32>, vector<8x432xf32>, vector<8x432xf32> -> vector<8x432xf32>
    %7 = arith.addf %3, %6 : vector<8x432xf32>
    %c0_6 = arith.constant 0 : index
    %c0_7 = arith.constant 0 : index
    %8 = vector.load %arg6[%c0_6, %c0_7] : memref<8x432xf32, #tpu.memory_space<vmem>>, vector<8x432xf32>
    tpu.vector_store %arg6[%c0_6, %c0_7], %7 {strides = array<i32>} : memref<8x432xf32, #tpu.memory_space<vmem>>, vector<8x432xf32>,
    %c0_i32_8 = arith.constant 0 : i32
    %9 = arith.cmpi eq, %arg2, %c0_i32_8 : i32
    %10 = arith.extui %9 : i1 to i32
    %c0_i32_9 = arith.constant 0 : i32
    %11 = arith.cmpi ne, %10, %c0_i32_9 : i32
    scf.if %11 {
      %c0_10 = arith.constant 0 : index
      %c0_11 = arith.constant 0 : index
      %12 = vector.load %arg6[%c0_10, %c0_11] : memref<8x432xf32, #tpu.memory_space<vmem>>, vector<8x432xf32>
      %c0_12 = arith.constant 0 : index
      %c0_13 = arith.constant 0 : index
      %13 = vector.load %arg5[%c0_12, %c0_13] : memref<8x432xf32, #tpu.memory_space<vmem>>, vector<8x432xf32>
      tpu.vector_store %arg5[%c0_12, %c0_13], %12 {strides = array<i32>} : memref<8x432xf32, #tpu.memory_space<vmem>>, vector<8x432xf32>,
    } else {
    }
    return
  }
  func.func @transform_0(%arg0: i32, %arg1: i32, %arg2: i32) -> (i32, i32) {
    %c0_i32 = arith.constant 0 : i32
    return %arg0, %arg2 : i32, i32
  }
  func.func @transform_1(%arg0: i32, %arg1: i32, %arg2: i32) -> (i32, i32) {
    %c0_i32 = arith.constant 0 : i32
    return %arg2, %arg1 : i32, i32
  }
  func.func @transform_2(%arg0: i32, %arg1: i32, %arg2: i32) -> (i32, i32) {
    %c0_i32 = arith.constant 0 : i32
    return %arg0, %arg1 : i32, i32
  }
}

module attributes {stable_mosaic.version = 11 : i64} {
  func.func @_gemm_t_kernel(%arg0: i32, %arg1: memref<72x12xf32, #tpu.memory_space<vmem>>, %arg2: memref<12x288xf32, #tpu.memory_space<vmem>>, %arg3: memref<72x288xf32, #tpu.memory_space<vmem>>) attributes {dimension_semantics = [#tpu.dimension_semantics<arbitrary>], iteration_bounds = array<i64: 1>, scalar_prefetch = 0 : i64, scratch_operands = 0 : i64, tpu.core_type = #tpu.core_type<tc>, window_params = [{pipeline_mode = #tpu.pipeline_mode<synchronous>, transform_indices = @transform_0, window_bounds = array<i64: 72, 12>}, {pipeline_mode = #tpu.pipeline_mode<synchronous>, transform_indices = @transform_1, window_bounds = array<i64: 12, 288>}, {pipeline_mode = #tpu.pipeline_mode<synchronous>, transform_indices = @transform_2, window_bounds = array<i64: 72, 288>}]} {
    %c0 = arith.constant 0 : index
    %c0_0 = arith.constant 0 : index
    %0 = vector.load %arg1[%c0, %c0_0] : memref<72x12xf32, #tpu.memory_space<vmem>>, vector<72x12xf32>
    %c0_1 = arith.constant 0 : index
    %c0_2 = arith.constant 0 : index
    %1 = vector.load %arg2[%c0_1, %c0_2] : memref<12x288xf32, #tpu.memory_space<vmem>>, vector<12x288xf32>
    %cst = arith.constant dense<0.000000e+00> : vector<72x288xf32>
    %2 = tpu.matmul %0, %1, %cst {dimension_numbers = #tpu.dot_dimension_numbers<[1], [0], [0], [1], [0, 0, 1, 1], [], []>} : vector<72x12xf32>, vector<12x288xf32>, vector<72x288xf32> -> vector<72x288xf32>
    %c0_3 = arith.constant 0 : index
    %c0_4 = arith.constant 0 : index
    %3 = vector.load %arg3[%c0_3, %c0_4] : memref<72x288xf32, #tpu.memory_space<vmem>>, vector<72x288xf32>
    tpu.vector_store %arg3[%c0_3, %c0_4], %2 {strides = array<i32>} : memref<72x288xf32, #tpu.memory_space<vmem>>, vector<72x288xf32>,
    return
  }
  func.func @transform_0(%arg0: i32) -> (i32, i32) {
    %c0_i32 = arith.constant 0 : i32
    %c0_i32_0 = arith.constant 0 : i32
    %c0_i32_1 = arith.constant 0 : i32
    return %c0_i32, %c0_i32_0 : i32, i32
  }
  func.func @transform_1(%arg0: i32) -> (i32, i32) {
    %c0_i32 = arith.constant 0 : i32
    %c0_i32_0 = arith.constant 0 : i32
    %c0_i32_1 = arith.constant 0 : i32
    return %c0_i32, %c0_i32_0 : i32, i32
  }
  func.func @transform_2(%arg0: i32) -> (i32, i32) {
    %c0_i32 = arith.constant 0 : i32
    %c0_i32_0 = arith.constant 0 : i32
    %c0_i32_1 = arith.constant 0 : i32
    return %c0_i32, %c0_i32_0 : i32, i32
  }
}

module attributes {stable_mosaic.version = 11 : i64} {
  func.func @_gemm_t_kernel(%arg0: i32, %arg1: memref<36x8xf32, #tpu.memory_space<vmem>>, %arg2: memref<8x1056xf32, #tpu.memory_space<vmem>>, %arg3: memref<36x1056xf32, #tpu.memory_space<vmem>>) attributes {dimension_semantics = [#tpu.dimension_semantics<arbitrary>], iteration_bounds = array<i64: 1>, scalar_prefetch = 0 : i64, scratch_operands = 0 : i64, tpu.core_type = #tpu.core_type<tc>, window_params = [{pipeline_mode = #tpu.pipeline_mode<synchronous>, transform_indices = @transform_0, window_bounds = array<i64: 36, 8>}, {pipeline_mode = #tpu.pipeline_mode<synchronous>, transform_indices = @transform_1, window_bounds = array<i64: 8, 1056>}, {pipeline_mode = #tpu.pipeline_mode<synchronous>, transform_indices = @transform_2, window_bounds = array<i64: 36, 1056>}]} {
    %c0 = arith.constant 0 : index
    %c0_0 = arith.constant 0 : index
    %0 = vector.load %arg1[%c0, %c0_0] : memref<36x8xf32, #tpu.memory_space<vmem>>, vector<36x8xf32>
    %c0_1 = arith.constant 0 : index
    %c0_2 = arith.constant 0 : index
    %1 = vector.load %arg2[%c0_1, %c0_2] : memref<8x1056xf32, #tpu.memory_space<vmem>>, vector<8x1056xf32>
    %cst = arith.constant dense<0.000000e+00> : vector<36x1056xf32>
    %2 = tpu.matmul %0, %1, %cst {dimension_numbers = #tpu.dot_dimension_numbers<[1], [0], [0], [1], [0, 0, 1, 1], [], []>} : vector<36x8xf32>, vector<8x1056xf32>, vector<36x1056xf32> -> vector<36x1056xf32>
    %c0_3 = arith.constant 0 : index
    %c0_4 = arith.constant 0 : index
    %3 = vector.load %arg3[%c0_3, %c0_4] : memref<36x1056xf32, #tpu.memory_space<vmem>>, vector<36x1056xf32>
    tpu.vector_store %arg3[%c0_3, %c0_4], %2 {strides = array<i32>} : memref<36x1056xf32, #tpu.memory_space<vmem>>, vector<36x1056xf32>,
    return
  }
  func.func @transform_0(%arg0: i32) -> (i32, i32) {
    %c0_i32 = arith.constant 0 : i32
    %c0_i32_0 = arith.constant 0 : i32
    %c0_i32_1 = arith.constant 0 : i32
    return %c0_i32, %c0_i32_0 : i32, i32
  }
  func.func @transform_1(%arg0: i32) -> (i32, i32) {
    %c0_i32 = arith.constant 0 : i32
    %c0_i32_0 = arith.constant 0 : i32
    %c0_i32_1 = arith.constant 0 : i32
    return %c0_i32, %c0_i32_0 : i32, i32
  }
  func.func @transform_2(%arg0: i32) -> (i32, i32) {
    %c0_i32 = arith.constant 0 : i32
    %c0_i32_0 = arith.constant 0 : i32
    %c0_i32_1 = arith.constant 0 : i32
    return %c0_i32, %c0_i32_0 : i32, i32
  }
}

module attributes {stable_mosaic.version = 11 : i64} {
  func.func @_gemm_t_kernel(%arg0: i32, %arg1: memref<25x4xf32, #tpu.memory_space<vmem>>, %arg2: memref<4x4032xf32, #tpu.memory_space<vmem>>, %arg3: memref<25x4032xf32, #tpu.memory_space<vmem>>) attributes {dimension_semantics = [#tpu.dimension_semantics<arbitrary>], iteration_bounds = array<i64: 1>, scalar_prefetch = 0 : i64, scratch_operands = 0 : i64, tpu.core_type = #tpu.core_type<tc>, window_params = [{pipeline_mode = #tpu.pipeline_mode<synchronous>, transform_indices = @transform_0, window_bounds = array<i64: 25, 4>}, {pipeline_mode = #tpu.pipeline_mode<synchronous>, transform_indices = @transform_1, window_bounds = array<i64: 4, 4032>}, {pipeline_mode = #tpu.pipeline_mode<synchronous>, transform_indices = @transform_2, window_bounds = array<i64: 25, 4032>}]} {
    %c0 = arith.constant 0 : index
    %c0_0 = arith.constant 0 : index
    %0 = vector.load %arg1[%c0, %c0_0] : memref<25x4xf32, #tpu.memory_space<vmem>>, vector<25x4xf32>
    %c0_1 = arith.constant 0 : index
    %c0_2 = arith.constant 0 : index
    %1 = vector.load %arg2[%c0_1, %c0_2] : memref<4x4032xf32, #tpu.memory_space<vmem>>, vector<4x4032xf32>
    %cst = arith.constant dense<0.000000e+00> : vector<25x4032xf32>
    %2 = tpu.matmul %0, %1, %cst {dimension_numbers = #tpu.dot_dimension_numbers<[1], [0], [0], [1], [0, 0, 1, 1], [], []>} : vector<25x4xf32>, vector<4x4032xf32>, vector<25x4032xf32> -> vector<25x4032xf32>
    %c0_3 = arith.constant 0 : index
    %c0_4 = arith.constant 0 : index
    %3 = vector.load %arg3[%c0_3, %c0_4] : memref<25x4032xf32, #tpu.memory_space<vmem>>, vector<25x4032xf32>
    tpu.vector_store %arg3[%c0_3, %c0_4], %2 {strides = array<i32>} : memref<25x4032xf32, #tpu.memory_space<vmem>>, vector<25x4032xf32>,
    return
  }
  func.func @transform_0(%arg0: i32) -> (i32, i32) {
    %c0_i32 = arith.constant 0 : i32
    %c0_i32_0 = arith.constant 0 : i32
    %c0_i32_1 = arith.constant 0 : i32
    return %c0_i32, %c0_i32_0 : i32, i32
  }
  func.func @transform_1(%arg0: i32) -> (i32, i32) {
    %c0_i32 = arith.constant 0 : i32
    %c0_i32_0 = arith.constant 0 : i32
    %c0_i32_1 = arith.constant 0 : i32
    return %c0_i32, %c0_i32_0 : i32, i32
  }
  func.func @transform_2(%arg0: i32) -> (i32, i32) {
    %c0_i32 = arith.constant 0 : i32
    %c0_i32_0 = arith.constant 0 : i32
    %c0_i32_1 = arith.constant 0 : i32
    return %c0_i32, %c0_i32_0 : i32, i32
  }
}

</mosaic_0001>

<llo_original>
// kernel: _lambda_.7
$region0: #{_lambda_.7}
  #allocation0 [shape = 'u32[]', space=smem, size = 0x4, offset = 0x4, fixed_abs, tag = 'smem constant byte address 0x4 - core index']
  #allocation1 [shape = 'u32[144,128]{1,0:T(1,128)}', space=vmem, size = 0x12000, scoped, tag = 'internal scratch']
  %s0 = inlined_call_operand.vmem [shape: f32[4,25], index: 0, kind: input, shape index: {}]
  %s1 = inlined_call_operand.vmem [shape: f32[25,4032], index: 1, kind: input, shape index: {}]
  %s2 = inlined_call_operand.vmem [shape: f32[4,1], index: 2, kind: input, shape index: {}]
  %s3 = inlined_call_operand.vmem [shape: f32[4,4032], index: 3, kind: output, shape index: {}]
  %s4 = sld [smem:[#allocation0]]
  $region22: #{_lambda_.7} parent=0
    _
  %s6 = ssub.s32 1, %s4
  %s7 = scalar_select 0, %s6, %s4
  // Predicated region
  $region2: #{_lambda_.7} parent=0 // pred_check
    _
  $region3: #{_lambda_.7} parent=0 // pred_check_branch
    %9 = sbr.rel (0) target = $region5
  $region4: #{_lambda_.7} parent=0 // pred_region
    _
  $region5: #{_lambda_.7} parent=0 // pred_fallthru
    _
  // Predicated region
  $region6: #{_lambda_.7} parent=0 // pred_check
    _
  $region7: #{_lambda_.7} parent=0 // pred_check_branch
    %11 = sbr.rel (0) target = $region9
  $region8: #{_lambda_.7} parent=0 // pred_region
    _
  $region9: #{_lambda_.7} parent=0 // pred_fallthru
    _
  // Predicated region
  $region10: #{_lambda_.7} parent=0 // pred_check
    _
  $region11: #{_lambda_.7} parent=0 // pred_check_branch
    %13 = sbr.rel (0) target = $region13
  $region12: #{_lambda_.7} parent=0 // pred_region
    _
  $region13: #{_lambda_.7} parent=0 // pred_fallthru
    _
  %v14 = vld [vmem:[%s0] sm:$0xf]
  %v15 = vld [vmem:[%s1] sm:$0xff]
  %v16 = vld [vmem:[%s1 + $0x8] sm:$0xff]
  %v17 = vld [vmem:[%s1 + $0x10] sm:$0xff]
  %v18 = vld [vmem:[%s1 + $0x18] sm:$0xff]
  %v19 = vld [vmem:[%s1 + $0x20] sm:$0xff]
  %v20 = vld [vmem:[%s1 + $0x28] sm:$0xff]
  %v21 = vld [vmem:[%s1 + $0x30] sm:$0xff]
  %v22 = vld [vmem:[%s1 + $0x38] sm:$0xff]
  %v23 = vld [vmem:[%s1 + $0x40] sm:$0xff]
  %v24 = vld [vmem:[%s1 + $0x48] sm:$0xff]
  %v25 = vld [vmem:[%s1 + $0x50] sm:$0xff]
  %v26 = vld [vmem:[%s1 + $0x58] sm:$0xff]
  %v27 = vld [vmem:[%s1 + $0x60] sm:$0xff]
  %v28 = vld [vmem:[%s1 + $0x68] sm:$0xff]
  %v29 = vld [vmem:[%s1 + $0x70] sm:$0xff]
  %v30 = vld [vmem:[%s1 + $0x78] sm:$0xff]
  %v31 = vld [vmem:[%s1 + $0x80] sm:$0xff]
  %v32 = vld [vmem:[%s1 + $0x88] sm:$0xff]
  %v33 = vld [vmem:[%s1 + $0x90] sm:$0xff]
  %v34 = vld [vmem:[%s1 + $0x98] sm:$0xff]
  %v35 = vld [vmem:[%s1 + $0xa0] sm:$0xff]
  %v36 = vld [vmem:[%s1 + $0xa8] sm:$0xff]
  %v37 = vld [vmem:[%s1 + $0xb0] sm:$0xff]
  %v38 = vld [vmem:[%s1 + $0xb8] sm:$0xff]
  %v39 = vld [vmem:[%s1 + $0xc0] sm:$0xff]
  %v40 = vld [vmem:[%s1 + $0xc8] sm:$0xff]
  %v41 = vld [vmem:[%s1 + $0xd0] sm:$0xff]
  %v42 = vld [vmem:[%s1 + $0xd8] sm:$0xff]
  %v43 = vld [vmem:[%s1 + $0xe0] sm:$0xff]
  %v44 = vld [vmem:[%s1 + $0xe8] sm:$0xff]
  %v45 = vld [vmem:[%s1 + $0xf0] sm:$0xff]
  %v46 = vld [vmem:[%s1 + $0xf8] sm:$0xff]
  %v47 = vld [vmem:[%s1 + $0x100] sm:$0xff]
  %v48 = vld [vmem:[%s1 + $0x108] sm:$0xff]
  %v49 = vld [vmem:[%s1 + $0x110] sm:$0xff]
  %v50 = vld [vmem:[%s1 + $0x118] sm:$0xff]
  %v51 = vld [vmem:[%s1 + $0x120] sm:$0xff]
  %v52 = vld [vmem:[%s1 + $0x128] sm:$0xff]
  %v53 = vld [vmem:[%s1 + $0x130] sm:$0xff]
  %v54 = vld [vmem:[%s1 + $0x138] sm:$0xff]
  %v55 = vld [vmem:[%s1 + $0x140] sm:$0xff]
  %v56 = vld [vmem:[%s1 + $0x148] sm:$0xff]
  %v57 = vld [vmem:[%s1 + $0x150] sm:$0xff]
  %v58 = vld [vmem:[%s1 + $0x158] sm:$0xff]
  %v59 = vld [vmem:[%s1 + $0x160] sm:$0xff]
  %v60 = vld [vmem:[%s1 + $0x168] sm:$0xff]
  %v61 = vld [vmem:[%s1 + $0x170] sm:$0xff]
  %v62 = vld [vmem:[%s1 + $0x178] sm:$0xff]
  %v63 = vld [vmem:[%s1 + $0x180] sm:$0xff]
  %v64 = vld [vmem:[%s1 + $0x188] sm:$0xff]
  %v65 = vld [vmem:[%s1 + $0x190] sm:$0xff]
  %v66 = vld [vmem:[%s1 + $0x198] sm:$0xff]
  %v67 = vld [vmem:[%s1 + $0x1a0] sm:$0xff]
  %v68 = vld [vmem:[%s1 + $0x1a8] sm:$0xff]
  %v69 = vld [vmem:[%s1 + $0x1b0] sm:$0xff]
  %v70 = vld [vmem:[%s1 + $0x1b8] sm:$0xff]
  %v71 = vld [vmem:[%s1 + $0x1c0] sm:$0xff]
  %v72 = vld [vmem:[%s1 + $0x1c8] sm:$0xff]
  %v73 = vld [vmem:[%s1 + $0x1d0] sm:$0xff]
  %v74 = vld [vmem:[%s1 + $0x1d8] sm:$0xff]
  %v75 = vld [vmem:[%s1 + $0x1e0] sm:$0xff]
  %v76 = vld [vmem:[%s1 + $0x1e8] sm:$0xff]
  %v77 = vld [vmem:[%s1 + $0x1f0] sm:$0xff]
  %v78 = vld [vmem:[%s1 + $0x1f8] sm:$0xff]
  %v79 = vld [vmem:[%s1 + $0x200] sm:$0xff]
  %v80 = vld [vmem:[%s1 + $0x208] sm:$0xff]
  %v81 = vld [vmem:[%s1 + $0x210] sm:$0xff]
  %v82 = vld [vmem:[%s1 + $0x218] sm:$0xff]
  %v83 = vld [vmem:[%s1 + $0x220] sm:$0xff]
  %v84 = vld [vmem:[%s1 + $0x228] sm:$0xff]
  %v85 = vld [vmem:[%s1 + $0x230] sm:$0xff]
  %v86 = vld [vmem:[%s1 + $0x238] sm:$0xff]
  %v87 = vld [vmem:[%s1 + $0x240] sm:$0xff]
  %v88 = vld [vmem:[%s1 + $0x248] sm:$0xff]
  %v89 = vld [vmem:[%s1 + $0x250] sm:$0xff]
  %v90 = vld [vmem:[%s1 + $0x258] sm:$0xff]
  %v91 = vld [vmem:[%s1 + $0x260] sm:$0xff]
  %v92 = vld [vmem:[%s1 + $0x268] sm:$0xff]
  %v93 = vld [vmem:[%s1 + $0x270] sm:$0xff]
  %v94 = vld [vmem:[%s1 + $0x278] sm:$0xff]
  %v95 = vld [vmem:[%s1 + $0x280] sm:$0xff]
  %v96 = vld [vmem:[%s1 + $0x288] sm:$0xff]
  %v97 = vld [vmem:[%s1 + $0x290] sm:$0xff]
  %v98 = vld [vmem:[%s1 + $0x298] sm:$0xff]
  %v99 = vld [vmem:[%s1 + $0x2a0] sm:$0xff]
  %v100 = vld [vmem:[%s1 + $0x2a8] sm:$0xff]
  %v101 = vld [vmem:[%s1 + $0x2b0] sm:$0xff]
  %v102 = vld [vmem:[%s1 + $0x2b8] sm:$0xff]
  %v103 = vld [vmem:[%s1 + $0x2c0] sm:$0xff]
  %v104 = vld [vmem:[%s1 + $0x2c8] sm:$0xff]
  %v105 = vld [vmem:[%s1 + $0x2d0] sm:$0xff]
  %v106 = vld [vmem:[%s1 + $0x2d8] sm:$0xff]
  %v107 = vld [vmem:[%s1 + $0x2e0] sm:$0xff]
  %v108 = vld [vmem:[%s1 + $0x2e8] sm:$0xff]
  %v109 = vld [vmem:[%s1 + $0x2f0] sm:$0xff]
  %v110 = vld [vmem:[%s1 + $0x2f8] sm:$0xff]
  %v111 = vld [vmem:[%s1 + $0x300] sm:$0x1]
  %v112 = vld [vmem:[%s1 + $0x308] sm:$0x1]
  %v113 = vld [vmem:[%s1 + $0x310] sm:$0x1]
  %v114 = vld [vmem:[%s1 + $0x318] sm:$0x1]
  %v115 = vld [vmem:[%s1 + $0x320] sm:$0x1]
  %v116 = vld [vmem:[%s1 + $0x328] sm:$0x1]
  %v117 = vld [vmem:[%s1 + $0x330] sm:$0x1]
  %v118 = vld [vmem:[%s1 + $0x338] sm:$0x1]
  %v119 = vld [vmem:[%s1 + $0x340] sm:$0x1]
  %v120 = vld [vmem:[%s1 + $0x348] sm:$0x1]
  %v121 = vld [vmem:[%s1 + $0x350] sm:$0x1]
  %v122 = vld [vmem:[%s1 + $0x358] sm:$0x1]
  %v123 = vld [vmem:[%s1 + $0x360] sm:$0x1]
  %v124 = vld [vmem:[%s1 + $0x368] sm:$0x1]
  %v125 = vld [vmem:[%s1 + $0x370] sm:$0x1]
  %v126 = vld [vmem:[%s1 + $0x378] sm:$0x1]
  %v127 = vld [vmem:[%s1 + $0x380] sm:$0x1]
  %v128 = vld [vmem:[%s1 + $0x388] sm:$0x1]
  %v129 = vld [vmem:[%s1 + $0x390] sm:$0x1]
  %v130 = vld [vmem:[%s1 + $0x398] sm:$0x1]
  %v131 = vld [vmem:[%s1 + $0x3a0] sm:$0x1]
  %v132 = vld [vmem:[%s1 + $0x3a8] sm:$0x1]
  %v133 = vld [vmem:[%s1 + $0x3b0] sm:$0x1]
  %v134 = vld [vmem:[%s1 + $0x3b8] sm:$0x1]
  %v135 = vld [vmem:[%s1 + $0x3c0] sm:$0x1]
  %v136 = vld [vmem:[%s1 + $0x3c8] sm:$0x1]
  %v137 = vld [vmem:[%s1 + $0x3d0] sm:$0x1]
  %v138 = vld [vmem:[%s1 + $0x3d8] sm:$0x1]
  %v139 = vld [vmem:[%s1 + $0x3e0] sm:$0x1]
  %v140 = vld [vmem:[%s1 + $0x3e8] sm:$0x1]
  %v141 = vld [vmem:[%s1 + $0x3f0] sm:$0x1]
  %v142 = vld [vmem:[%s1 + $0x3f8] sm:$0x1]
  %v143 = vld [vmem:[%s2] sm:$0xf]
  %145 = vset.pattern.permute.xlu0 0
  %146 = vperm.xlu0 %145, %v143
  %v147 = vpop.permute.xlu0 %146
  %vm149 = vcmask 203776
  %v151 = vsel %vm149, %v14, 0
  %vm153 = vcmask 1040384
  %v155 = vsel %vm153, %v111, 0
  %v158 = vsel %vm153, %v112, 0
  %v161 = vsel %vm153, %v113, 0
  %v164 = vsel %vm153, %v114, 0
  %v167 = vsel %vm153, %v115, 0
  %v170 = vsel %vm153, %v116, 0
  %v173 = vsel %vm153, %v117, 0
  %v176 = vsel %vm153, %v118, 0
  %v179 = vsel %vm153, %v119, 0
  %v182 = vsel %vm153, %v120, 0
  %v185 = vsel %vm153, %v121, 0
  %v188 = vsel %vm153, %v122, 0
  %v191 = vsel %vm153, %v123, 0
  %v194 = vsel %vm153, %v124, 0
  %v197 = vsel %vm153, %v125, 0
  %v200 = vsel %vm153, %v126, 0
  %v203 = vsel %vm153, %v127, 0
  %v206 = vsel %vm153, %v128, 0
  %v209 = vsel %vm153, %v129, 0
  %v212 = vsel %vm153, %v130, 0
  %v215 = vsel %vm153, %v131, 0
  %v218 = vsel %vm153, %v132, 0
  %v221 = vsel %vm153, %v133, 0
  %v224 = vsel %vm153, %v134, 0
  %v227 = vsel %vm153, %v135, 0
  %v230 = vsel %vm153, %v136, 0
  %v233 = vsel %vm153, %v137, 0
  %v236 = vsel %vm153, %v138, 0
  %v239 = vsel %vm153, %v139, 0
  %v242 = vsel %vm153, %v140, 0
  %v245 = vsel %vm153, %v141, 0
  %v248 = vsel %vm153, %v142, 0
  %250 = vmatprep.subr.mxu0 %v16
  %251 = vmatpush1.msra.mxu0 %v15
  %252 = vmatprep.subr.mxu0 %v48
  %253 = vmatpush1.msra.mxu0 %v47
  %254 = vmatprep.subr.mxu0 %v80
  %255 = vmatpush1.msra.mxu0 %v79
  %256 = vmatprep.subr.mxu0 %v158
  %257 = vmatpush1.msra.mxu0 %v155
  %258 = vmatprep.subr.mxu0 0.0
  %259 = vmatpush1.msra.mxu0 0.0
  %260 = vmatprep.subr.mxu0 0.0
  %261 = vmatpush1.msra.mxu0 0.0
  %262 = vmatprep.subr.mxu0 0.0
  %263 = vmatpush1.msra.mxu0 0.0
  %264 = vmatprep.subr.mxu0 0.0
  %265 = vmatpush1.msra.mxu0 0.0
  %266 = vmatprep.subr.mxu0 0.0
  %267 = vmatpush1.msra.mxu0 0.0
  %268 = vmatprep.subr.mxu0 0.0
  %269 = vmatpush1.msra.mxu0 0.0
  %270 = vmatprep.subr.mxu0 0.0
  %271 = vmatpush1.msra.mxu0 0.0
  %272 = vmatprep.subr.mxu0 0.0
  %273 = vmatpush1.msra.mxu0 0.0
  %274 = vmatprep.subr.mxu0 0.0
  %275 = vmatpush1.msra.mxu0 0.0
  %276 = vmatprep.subr.mxu0 0.0
  %277 = vmatpush1.msra.mxu0 0.0
  %278 = vmatprep.subr.mxu0 0.0
  %279 = vmatpush1.msra.mxu0 0.0
  %280 = vmatprep.subr.mxu0 0.0
  %281 = vmatpush1.msra.mxu0 0.0
  %282 = vmatprep.subr.mxu0 0.0
  %283 = vmatpush1.msra.mxu0 0.0
  %284 = vmatprep.subr.mxu0 0.0
  %285 = vmatpush1.msra.mxu0 0.0
  %286 = vmatprep.subr.mxu0 0.0
  %287 = vmatpush1.msra.mxu0 0.0
  %288 = vmatprep.subr.mxu0 0.0
  %289 = vmatpush1.msra.mxu0 0.0
  %290 = vmatprep.subr.mxu0 0.0
  %291 = vmatpush1.msra.mxu0 0.0
  %292 = vmatprep.subr.mxu0 0.0
  %293 = vmatpush1.msra.mxu0 0.0
  %294 = vmatprep.subr.mxu0 0.0
  %295 = vmatpush1.msra.mxu0 0.0
  %296 = vmatprep.subr.mxu0 0.0
  %297 = vmatpush1.msra.mxu0 0.0
  %298 = vmatprep.subr.mxu0 0.0
  %299 = vmatpush1.msra.mxu0 0.0
  %300 = vmatprep.subr.mxu0 0.0
  %301 = vmatpush1.msra.mxu0 0.0
  %302 = vmatprep.subr.mxu0 0.0
  %303 = vmatpush1.msra.mxu0 0.0
  %304 = vmatprep.subr.mxu0 0.0
  %305 = vmatpush1.msra.mxu0 0.0
  %306 = vmatprep.subr.mxu0 0.0
  %307 = vmatpush1.msra.mxu0 0.0
  %308 = vmatprep.subr.mxu0 0.0
  %309 = vmatpush1.msra.mxu0 0.0
  %310 = vmatprep.subr.mxu0 0.0
  %311 = vmatpush1.msra.mxu0 0.0
  %312 = vmatprep.subr.mxu0 0.0
  %313 = vmatpush1.msra.mxu0 0.0
  %314 = vmatprep.mubr.f32.mxu0 0.0
  %315 = vmatmul.mubr.f32.gmra.mrb[0].mxu0 %v151
  %v316 = vpop.f32.mrb[0].mxu0
  %v317 = vadd.f32 %v147, %v316
  %v318 = vpop.f32.mrb[0].mxu0
  %v319 = vadd.f32 %v147, %v318
  %320 = vdwg.mxu0
  %321 = vmatprep.subr.mxu0 %v18
  %322 = vmatpush1.msra.mxu0 %v17
  %323 = vmatprep.subr.mxu0 %v50
  %324 = vmatpush1.msra.mxu0 %v49
  %325 = vmatprep.subr.mxu0 %v82
  %326 = vmatpush1.msra.mxu0 %v81
  %327 = vmatprep.subr.mxu0 %v164
  %328 = vmatpush1.msra.mxu0 %v161
  %329 = vmatprep.subr.mxu0 0.0
  %330 = vmatpush1.msra.mxu0 0.0
  %331 = vmatprep.subr.mxu0 0.0
  %332 = vmatpush1.msra.mxu0 0.0
  %333 = vmatprep.subr.mxu0 0.0
  %334 = vmatpush1.msra.mxu0 0.0
  %335 = vmatprep.subr.mxu0 0.0
  %336 = vmatpush1.msra.mxu0 0.0
  %337 = vmatprep.subr.mxu0 0.0
  %338 = vmatpush1.msra.mxu0 0.0
  %339 = vmatprep.subr.mxu0 0.0
  %340 = vmatpush1.msra.mxu0 0.0
  %341 = vmatprep.subr.mxu0 0.0
  %342 = vmatpush1.msra.mxu0 0.0
  %343 = vmatprep.subr.mxu0 0.0
  %344 = vmatpush1.msra.mxu0 0.0
  %345 = vmatprep.subr.mxu0 0.0
  %346 = vmatpush1.msra.mxu0 0.0
  %347 = vmatprep.subr.mxu0 0.0
  %348 = vmatpush1.msra.mxu0 0.0
  %349 = vmatprep.subr.mxu0 0.0
  %350 = vmatpush1.msra.mxu0 0.0
  %351 = vmatprep.subr.mxu0 0.0
  %352 = vmatpush1.msra.mxu0 0.0
  %353 = vmatprep.subr.mxu0 0.0
  %354 = vmatpush1.msra.mxu0 0.0
  %355 = vmatprep.subr.mxu0 0.0
  %356 = vmatpush1.msra.mxu0 0.0
  %357 = vmatprep.subr.mxu0 0.0
  %358 = vmatpush1.msra.mxu0 0.0
  %359 = vmatprep.subr.mxu0 0.0
  %360 = vmatpush1.msra.mxu0 0.0
  %361 = vmatprep.subr.mxu0 0.0
  %362 = vmatpush1.msra.mxu0 0.0
  %363 = vmatprep.subr.mxu0 0.0
  %364 = vmatpush1.msra.mxu0 0.0
  %365 = vmatprep.subr.mxu0 0.0
  %366 = vmatpush1.msra.mxu0 0.0
  %367 = vmatprep.subr.mxu0 0.0
  %368 = vmatpush1.msra.mxu0 0.0
  %369 = vmatprep.subr.mxu0 0.0
  %370 = vmatpush1.msra.mxu0 0.0
  %371 = vmatprep.subr.mxu0 0.0
  %372 = vmatpush1.msra.mxu0 0.0
  %373 = vmatprep.subr.mxu0 0.0
  %374 = vmatpush1.msra.mxu0 0.0
  %375 = vmatprep.subr.mxu0 0.0
  %376 = vmatpush1.msra.mxu0 0.0
  %377 = vmatprep.subr.mxu0 0.0
  %378 = vmatpush1.msra.mxu0 0.0
  %379 = vmatprep.subr.mxu0 0.0
  %380 = vmatpush1.msra.mxu0 0.0
  %381 = vmatprep.subr.mxu0 0.0
  %382 = vmatpush1.msra.mxu0 0.0
  %383 = vmatprep.subr.mxu0 0.0
  %384 = vmatpush1.msra.mxu0 0.0
  %385 = vmatprep.mubr.f32.mxu0 0.0
  %386 = vmatmul.mubr.f32.gmra.mrb[0].mxu0 %v151
  %v387 = vpop.f32.mrb[0].mxu0
  %v388 = vadd.f32 %v147, %v387
  %v389 = vpop.f32.mrb[0].mxu0
  %v390 = vadd.f32 %v147, %v389
  %391 = vdwg.mxu0
  %392 = vmatprep.subr.mxu0 %v20
  %393 = vmatpush1.msra.mxu0 %v19
  %394 = vmatprep.subr.mxu0 %v52
  %395 = vmatpush1.msra.mxu0 %v51
  %396 = vmatprep.subr.mxu0 %v84
  %397 = vmatpush1.msra.mxu0 %v83
  %398 = vmatprep.subr.mxu0 %v170
  %399 = vmatpush1.msra.mxu0 %v167
  %400 = vmatprep.subr.mxu0 0.0
  %401 = vmatpush1.msra.mxu0 0.0
  %402 = vmatprep.subr.mxu0 0.0
  %403 = vmatpush1.msra.mxu0 0.0
  %404 = vmatprep.subr.mxu0 0.0
  %405 = vmatpush1.msra.mxu0 0.0
  %406 = vmatprep.subr.mxu0 0.0
  %407 = vmatpush1.msra.mxu0 0.0
  %408 = vmatprep.subr.mxu0 0.0
  %409 = vmatpush1.msra.mxu0 0.0
  %410 = vmatprep.subr.mxu0 0.0
  %411 = vmatpush1.msra.mxu0 0.0
  %412 = vmatprep.subr.mxu0 0.0
  %413 = vmatpush1.msra.mxu0 0.0
  %414 = vmatprep.subr.mxu0 0.0
  %415 = vmatpush1.msra.mxu0 0.0
  %416 = vmatprep.subr.mxu0 0.0
  %417 = vmatpush1.msra.mxu0 0.0
  %418 = vmatprep.subr.mxu0 0.0
  %419 = vmatpush1.msra.mxu0 0.0
  %420 = vmatprep.subr.mxu0 0.0
  %421 = vmatpush1.msra.mxu0 0.0
  %422 = vmatprep.subr.mxu0 0.0
  %423 = vmatpush1.msra.mxu0 0.0
  %424 = vmatprep.subr.mxu0 0.0
  %425 = vmatpush1.msra.mxu0 0.0
  %426 = vmatprep.subr.mxu0 0.0
  %427 = vmatpush1.msra.mxu0 0.0
  %428 = vmatprep.subr.mxu0 0.0
  %429 = vmatpush1.msra.mxu0 0.0
  %430 = vmatprep.subr.mxu0 0.0
  %431 = vmatpush1.msra.mxu0 0.0
  %432 = vmatprep.subr.mxu0 0.0
  %433 = vmatpush1.msra.mxu0 0.0
  %434 = vmatprep.subr.mxu0 0.0
  %435 = vmatpush1.msra.mxu0 0.0
  %436 = vmatprep.subr.mxu0 0.0
  %437 = vmatpush1.msra.mxu0 0.0
  %438 = vmatprep.subr.mxu0 0.0
  %439 = vmatpush1.msra.mxu0 0.0
  %440 = vmatprep.subr.mxu0 0.0
  %441 = vmatpush1.msra.mxu0 0.0
  %442 = vmatprep.subr.mxu0 0.0
  %443 = vmatpush1.msra.mxu0 0.0
  %444 = vmatprep.subr.mxu0 0.0
  %445 = vmatpush1.msra.mxu0 0.0
  %446 = vmatprep.subr.mxu0 0.0
  %447 = vmatpush1.msra.mxu0 0.0
  %448 = vmatprep.subr.mxu0 0.0
  %449 = vmatpush1.msra.mxu0 0.0
  %450 = vmatprep.subr.mxu0 0.0
  %451 = vmatpush1.msra.mxu0 0.0
  %452 = vmatprep.subr.mxu0 0.0
  %453 = vmatpush1.msra.mxu0 0.0
  %454 = vmatprep.subr.mxu0 0.0
  %455 = vmatpush1.msra.mxu0 0.0
  %456 = vmatprep.mubr.f32.mxu0 0.0
  %457 = vmatmul.mubr.f32.gmra.mrb[0].mxu0 %v151
  %v458 = vpop.f32.mrb[0].mxu0
  %v459 = vadd.f32 %v147, %v458
  %v460 = vpop.f32.mrb[0].mxu0
  %v461 = vadd.f32 %v147, %v460
  %462 = vdwg.mxu0
  %463 = vmatprep.subr.mxu0 %v22
  %464 = vmatpush1.msra.mxu0 %v21
  %465 = vmatprep.subr.mxu0 %v54
  %466 = vmatpush1.msra.mxu0 %v53
  %467 = vmatprep.subr.mxu0 %v86
  %468 = vmatpush1.msra.mxu0 %v85
  %469 = vmatprep.subr.mxu0 %v176
  %470 = vmatpush1.msra.mxu0 %v173
  %471 = vmatprep.subr.mxu0 0.0
  %472 = vmatpush1.msra.mxu0 0.0
  %473 = vmatprep.subr.mxu0 0.0
  %474 = vmatpush1.msra.mxu0 0.0
  %475 = vmatprep.subr.mxu0 0.0
  %476 = vmatpush1.msra.mxu0 0.0
  %477 = vmatprep.subr.mxu0 0.0
  %478 = vmatpush1.msra.mxu0 0.0
  %479 = vmatprep.subr.mxu0 0.0
  %480 = vmatpush1.msra.mxu0 0.0
  %481 = vmatprep.subr.mxu0 0.0
  %482 = vmatpush1.msra.mxu0 0.0
  %483 = vmatprep.subr.mxu0 0.0
  %484 = vmatpush1.msra.mxu0 0.0
  %485 = vmatprep.subr.mxu0 0.0
  %486 = vmatpush1.msra.mxu0 0.0
  %487 = vmatprep.subr.mxu0 0.0
  %488 = vmatpush1.msra.mxu0 0.0
  %489 = vmatprep.subr.mxu0 0.0
  %490 = vmatpush1.msra.mxu0 0.0
  %491 = vmatprep.subr.mxu0 0.0
  %492 = vmatpush1.msra.mxu0 0.0
  %493 = vmatprep.subr.mxu0 0.0
  %494 = vmatpush1.msra.mxu0 0.0
  %495 = vmatprep.subr.mxu0 0.0
  %496 = vmatpush1.msra.mxu0 0.0
  %497 = vmatprep.subr.mxu0 0.0
  %498 = vmatpush1.msra.mxu0 0.0
  %499 = vmatprep.subr.mxu0 0.0
  %500 = vmatpush1.msra.mxu0 0.0
  %501 = vmatprep.subr.mxu0 0.0
  %502 = vmatpush1.msra.mxu0 0.0
  %503 = vmatprep.subr.mxu0 0.0
  %504 = vmatpush1.msra.mxu0 0.0
  %505 = vmatprep.subr.mxu0 0.0
  %506 = vmatpush1.msra.mxu0 0.0
  %507 = vmatprep.subr.mxu0 0.0
  %508 = vmatpush1.msra.mxu0 0.0
  %509 = vmatprep.subr.mxu0 0.0
  %510 = vmatpush1.msra.mxu0 0.0
  %511 = vmatprep.subr.mxu0 0.0
  %512 = vmatpush1.msra.mxu0 0.0
  %513 = vmatprep.subr.mxu0 0.0
  %514 = vmatpush1.msra.mxu0 0.0
  %515 = vmatprep.subr.mxu0 0.0
  %516 = vmatpush1.msra.mxu0 0.0
  %517 = vmatprep.subr.mxu0 0.0
  %518 = vmatpush1.msra.mxu0 0.0
  %519 = vmatprep.subr.mxu0 0.0
  %520 = vmatpush1.msra.mxu0 0.0
  %521 = vmatprep.subr.mxu0 0.0
  %522 = vmatpush1.msra.mxu0 0.0
  %523 = vmatprep.subr.mxu0 0.0
  %524 = vmatpush1.msra.mxu0 0.0
  %525 = vmatprep.subr.mxu0 0.0
  %526 = vmatpush1.msra.mxu0 0.0
  %527 = vmatprep.mubr.f32.mxu0 0.0
  %528 = vmatmul.mubr.f32.gmra.mrb[0].mxu0 %v151
  %v529 = vpop.f32.mrb[0].mxu0
  %v530 = vadd.f32 %v147, %v529
  %v531 = vpop.f32.mrb[0].mxu0
  %v532 = vadd.f32 %v147, %v531
  %533 = vdwg.mxu0
  %534 = vmatprep.subr.mxu0 %v24
  %535 = vmatpush1.msra.mxu0 %v23
  %536 = vmatprep.subr.mxu0 %v56
  %537 = vmatpush1.msra.mxu0 %v55
  %538 = vmatprep.subr.mxu0 %v88
  %539 = vmatpush1.msra.mxu0 %v87
  %540 = vmatprep.subr.mxu0 %v182
  %541 = vmatpush1.msra.mxu0 %v179
  %542 = vmatprep.subr.mxu0 0.0
  %543 = vmatpush1.msra.mxu0 0.0
  %544 = vmatprep.subr.mxu0 0.0
  %545 = vmatpush1.msra.mxu0 0.0
  %546 = vmatprep.subr.mxu0 0.0
  %547 = vmatpush1.msra.mxu0 0.0
  %548 = vmatprep.subr.mxu0 0.0
  %549 = vmatpush1.msra.mxu0 0.0
  %550 = vmatprep.subr.mxu0 0.0
  %551 = vmatpush1.msra.mxu0 0.0
  %552 = vmatprep.subr.mxu0 0.0
  %553 = vmatpush1.msra.mxu0 0.0
  %554 = vmatprep.subr.mxu0 0.0
  %555 = vmatpush1.msra.mxu0 0.0
  %556 = vmatprep.subr.mxu0 0.0
  %557 = vmatpush1.msra.mxu0 0.0
  %558 = vmatprep.subr.mxu0 0.0
  %559 = vmatpush1.msra.mxu0 0.0
  %560 = vmatprep.subr.mxu0 0.0
  %561 = vmatpush1.msra.mxu0 0.0
  %562 = vmatprep.subr.mxu0 0.0
  %563 = vmatpush1.msra.mxu0 0.0
  %564 = vmatprep.subr.mxu0 0.0
  %565 = vmatpush1.msra.mxu0 0.0
  %566 = vmatprep.subr.mxu0 0.0
  %567 = vmatpush1.msra.mxu0 0.0
  %568 = vmatprep.subr.mxu0 0.0
  %569 = vmatpush1.msra.mxu0 0.0
  %570 = vmatprep.subr.mxu0 0.0
  %571 = vmatpush1.msra.mxu0 0.0
  %572 = vmatprep.subr.mxu0 0.0
  %573 = vmatpush1.msra.mxu0 0.0
  %574 = vmatprep.subr.mxu0 0.0
  %575 = vmatpush1.msra.mxu0 0.0
  %576 = vmatprep.subr.mxu0 0.0
  %577 = vmatpush1.msra.mxu0 0.0
  %578 = vmatprep.subr.mxu0 0.0
  %579 = vmatpush1.msra.mxu0 0.0
  %580 = vmatprep.subr.mxu0 0.0
  %581 = vmatpush1.msra.mxu0 0.0
  %582 = vmatprep.subr.mxu0 0.0
  %583 = vmatpush1.msra.mxu0 0.0
  %584 = vmatprep.subr.mxu0 0.0
  %585 = vmatpush1.msra.mxu0 0.0
  %586 = vmatprep.subr.mxu0 0.0
  %587 = vmatpush1.msra.mxu0 0.0
  %588 = vmatprep.subr.mxu0 0.0
  %589 = vmatpush1.msra.mxu0 0.0
  %590 = vmatprep.subr.mxu0 0.0
  %591 = vmatpush1.msra.mxu0 0.0
  %592 = vmatprep.subr.mxu0 0.0
  %593 = vmatpush1.msra.mxu0 0.0
  %594 = vmatprep.subr.mxu0 0.0
  %595 = vmatpush1.msra.mxu0 0.0
  %596 = vmatprep.subr.mxu0 0.0
  %597 = vmatpush1.msra.mxu0 0.0
  %598 = vmatprep.mubr.f32.mxu0 0.0
  %599 = vmatmul.mubr.f32.gmra.mrb[0].mxu0 %v151
  %v600 = vpop.f32.mrb[0].mxu0
  %v601 = vadd.f32 %v147, %v600
  %v602 = vpop.f32.mrb[0].mxu0
  %v603 = vadd.f32 %v147, %v602
  %604 = vdwg.mxu0
  %605 = vmatprep.subr.mxu0 %v26
  %606 = vmatpush1.msra.mxu0 %v25
  %607 = vmatprep.subr.mxu0 %v58
  %608 = vmatpush1.msra.mxu0 %v57
  %609 = vmatprep.subr.mxu0 %v90
  %610 = vmatpush1.msra.mxu0 %v89
  %611 = vmatprep.subr.mxu0 %v188
  %612 = vmatpush1.msra.mxu0 %v185
  %613 = vmatprep.subr.mxu0 0.0
  %614 = vmatpush1.msra.mxu0 0.0
  %615 = vmatprep.subr.mxu0 0.0
  %616 = vmatpush1.msra.mxu0 0.0
  %617 = vmatprep.subr.mxu0 0.0
  %618 = vmatpush1.msra.mxu0 0.0
  %619 = vmatprep.subr.mxu0 0.0
  %620 = vmatpush1.msra.mxu0 0.0
  %621 = vmatprep.subr.mxu0 0.0
  %622 = vmatpush1.msra.mxu0 0.0
  %623 = vmatprep.subr.mxu0 0.0
  %624 = vmatpush1.msra.mxu0 0.0
  %625 = vmatprep.subr.mxu0 0.0
  %626 = vmatpush1.msra.mxu0 0.0
  %627 = vmatprep.subr.mxu0 0.0
  %628 = vmatpush1.msra.mxu0 0.0
  %629 = vmatprep.subr.mxu0 0.0
  %630 = vmatpush1.msra.mxu0 0.0
  %631 = vmatprep.subr.mxu0 0.0
  %632 = vmatpush1.msra.mxu0 0.0
  %633 = vmatprep.subr.mxu0 0.0
  %634 = vmatpush1.msra.mxu0 0.0
  %635 = vmatprep.subr.mxu0 0.0
  %636 = vmatpush1.msra.mxu0 0.0
  %637 = vmatprep.subr.mxu0 0.0
  %638 = vmatpush1.msra.mxu0 0.0
  %639 = vmatprep.subr.mxu0 0.0
  %640 = vmatpush1.msra.mxu0 0.0
  %641 = vmatprep.subr.mxu0 0.0
  %642 = vmatpush1.msra.mxu0 0.0
  %643 = vmatprep.subr.mxu0 0.0
  %644 = vmatpush1.msra.mxu0 0.0
  %645 = vmatprep.subr.mxu0 0.0
  %646 = vmatpush1.msra.mxu0 0.0
  %647 = vmatprep.subr.mxu0 0.0
  %648 = vmatpush1.msra.mxu0 0.0
  %649 = vmatprep.subr.mxu0 0.0
  %650 = vmatpush1.msra.mxu0 0.0
  %651 = vmatprep.subr.mxu0 0.0
  %652 = vmatpush1.msra.mxu0 0.0
  %653 = vmatprep.subr.mxu0 0.0
  %654 = vmatpush1.msra.mxu0 0.0
  %655 = vmatprep.subr.mxu0 0.0
  %656 = vmatpush1.msra.mxu0 0.0
  %657 = vmatprep.subr.mxu0 0.0
  %658 = vmatpush1.msra.mxu0 0.0
  %659 = vmatprep.subr.mxu0 0.0
  %660 = vmatpush1.msra.mxu0 0.0
  %661 = vmatprep.subr.mxu0 0.0
  %662 = vmatpush1.msra.mxu0 0.0
  %663 = vmatprep.subr.mxu0 0.0
  %664 = vmatpush1.msra.mxu0 0.0
  %665 = vmatprep.subr.mxu0 0.0
  %666 = vmatpush1.msra.mxu0 0.0
  %667 = vmatprep.subr.mxu0 0.0
  %668 = vmatpush1.msra.mxu0 0.0
  %669 = vmatprep.mubr.f32.mxu0 0.0
  %670 = vmatmul.mubr.f32.gmra.mrb[0].mxu0 %v151
  %v671 = vpop.f32.mrb[0].mxu0
  %v672 = vadd.f32 %v147, %v671
  %v673 = vpop.f32.mrb[0].mxu0
  %v674 = vadd.f32 %v147, %v673
  %675 = vdwg.mxu0
  %676 = vmatprep.subr.mxu0 %v28
  %677 = vmatpush1.msra.mxu0 %v27
  %678 = vmatprep.subr.mxu0 %v60
  %679 = vmatpush1.msra.mxu0 %v59
  %680 = vmatprep.subr.mxu0 %v92
  %681 = vmatpush1.msra.mxu0 %v91
  %682 = vmatprep.subr.mxu0 %v194
  %683 = vmatpush1.msra.mxu0 %v191
  %684 = vmatprep.subr.mxu0 0.0
  %685 = vmatpush1.msra.mxu0 0.0
  %686 = vmatprep.subr.mxu0 0.0
  %687 = vmatpush1.msra.mxu0 0.0
  %688 = vmatprep.subr.mxu0 0.0
  %689 = vmatpush1.msra.mxu0 0.0
  %690 = vmatprep.subr.mxu0 0.0
  %691 = vmatpush1.msra.mxu0 0.0
  %692 = vmatprep.subr.mxu0 0.0
  %693 = vmatpush1.msra.mxu0 0.0
  %694 = vmatprep.subr.mxu0 0.0
  %695 = vmatpush1.msra.mxu0 0.0
  %696 = vmatprep.subr.mxu0 0.0
  %697 = vmatpush1.msra.mxu0 0.0
  %698 = vmatprep.subr.mxu0 0.0
  %699 = vmatpush1.msra.mxu0 0.0
  %700 = vmatprep.subr.mxu0 0.0
  %701 = vmatpush1.msra.mxu0 0.0
  %702 = vmatprep.subr.mxu0 0.0
  %703 = vmatpush1.msra.mxu0 0.0
  %704 = vmatprep.subr.mxu0 0.0
  %705 = vmatpush1.msra.mxu0 0.0
  %706 = vmatprep.subr.mxu0 0.0
  %707 = vmatpush1.msra.mxu0 0.0
  %708 = vmatprep.subr.mxu0 0.0
  %709 = vmatpush1.msra.mxu0 0.0
  %710 = vmatprep.subr.mxu0 0.0
  %711 = vmatpush1.msra.mxu0 0.0
  %712 = vmatprep.subr.mxu0 0.0
  %713 = vmatpush1.msra.mxu0 0.0
  %714 = vmatprep.subr.mxu0 0.0
  %715 = vmatpush1.msra.mxu0 0.0
  %716 = vmatprep.subr.mxu0 0.0
  %717 = vmatpush1.msra.mxu0 0.0
  %718 = vmatprep.subr.mxu0 0.0
  %719 = vmatpush1.msra.mxu0 0.0
  %720 = vmatprep.subr.mxu0 0.0
  %721 = vmatpush1.msra.mxu0 0.0
  %722 = vmatprep.subr.mxu0 0.0
  %723 = vmatpush1.msra.mxu0 0.0
  %724 = vmatprep.subr.mxu0 0.0
  %725 = vmatpush1.msra.mxu0 0.0
  %726 = vmatprep.subr.mxu0 0.0
  %727 = vmatpush1.msra.mxu0 0.0
  %728 = vmatprep.subr.mxu0 0.0
  %729 = vmatpush1.msra.mxu0 0.0
  %730 = vmatprep.subr.mxu0 0.0
  %731 = vmatpush1.msra.mxu0 0.0
  %732 = vmatprep.subr.mxu0 0.0
  %733 = vmatpush1.msra.mxu0 0.0
  %734 = vmatprep.subr.mxu0 0.0
  %735 = vmatpush1.msra.mxu0 0.0
  %736 = vmatprep.subr.mxu0 0.0
  %737 = vmatpush1.msra.mxu0 0.0
  %738 = vmatprep.subr.mxu0 0.0
  %739 = vmatpush1.msra.mxu0 0.0
  %740 = vmatprep.mubr.f32.mxu0 0.0
  %741 = vmatmul.mubr.f32.gmra.mrb[0].mxu0 %v151
  %v742 = vpop.f32.mrb[0].mxu0
  %v743 = vadd.f32 %v147, %v742
  %v744 = vpop.f32.mrb[0].mxu0
  %v745 = vadd.f32 %v147, %v744
  %746 = vdwg.mxu0
  %747 = vmatprep.subr.mxu0 %v30
  %748 = vmatpush1.msra.mxu0 %v29
  %749 = vmatprep.subr.mxu0 %v62
  %750 = vmatpush1.msra.mxu0 %v61
  %751 = vmatprep.subr.mxu0 %v94
  %752 = vmatpush1.msra.mxu0 %v93
  %753 = vmatprep.subr.mxu0 %v200
  %754 = vmatpush1.msra.mxu0 %v197
  %755 = vmatprep.subr.mxu0 0.0
  %756 = vmatpush1.msra.mxu0 0.0
  %757 = vmatprep.subr.mxu0 0.0
  %758 = vmatpush1.msra.mxu0 0.0
  %759 = vmatprep.subr.mxu0 0.0
  %760 = vmatpush1.msra.mxu0 0.0
  %761 = vmatprep.subr.mxu0 0.0
  %762 = vmatpush1.msra.mxu0 0.0
  %763 = vmatprep.subr.mxu0 0.0
  %764 = vmatpush1.msra.mxu0 0.0
  %765 = vmatprep.subr.mxu0 0.0
  %766 = vmatpush1.msra.mxu0 0.0
  %767 = vmatprep.subr.mxu0 0.0
  %768 = vmatpush1.msra.mxu0 0.0
  %769 = vmatprep.subr.mxu0 0.0
  %770 = vmatpush1.msra.mxu0 0.0
  %771 = vmatprep.subr.mxu0 0.0
  %772 = vmatpush1.msra.mxu0 0.0
  %773 = vmatprep.subr.mxu0 0.0
  %774 = vmatpush1.msra.mxu0 0.0
  %775 = vmatprep.subr.mxu0 0.0
  %776 = vmatpush1.msra.mxu0 0.0
  %777 = vmatprep.subr.mxu0 0.0
  %778 = vmatpush1.msra.mxu0 0.0
  %779 = vmatprep.subr.mxu0 0.0
  %780 = vmatpush1.msra.mxu0 0.0
  %781 = vmatprep.subr.mxu0 0.0
  %782 = vmatpush1.msra.mxu0 0.0
  %783 = vmatprep.subr.mxu0 0.0
  %784 = vmatpush1.msra.mxu0 0.0
  %785 = vmatprep.subr.mxu0 0.0
  %786 = vmatpush1.msra.mxu0 0.0
  %787 = vmatprep.subr.mxu0 0.0
  %788 = vmatpush1.msra.mxu0 0.0
  %789 = vmatprep.subr.mxu0 0.0
  %790 = vmatpush1.msra.mxu0 0.0
  %791 = vmatprep.subr.mxu0 0.0
  %792 = vmatpush1.msra.mxu0 0.0
  %793 = vmatprep.subr.mxu0 0.0
  %794 = vmatpush1.msra.mxu0 0.0
  %795 = vmatprep.subr.mxu0 0.0
  %796 = vmatpush1.msra.mxu0 0.0
  %797 = vmatprep.subr.mxu0 0.0
  %798 = vmatpush1.msra.mxu0 0.0
  %799 = vmatprep.subr.mxu0 0.0
  %800 = vmatpush1.msra.mxu0 0.0
  %801 = vmatprep.subr.mxu0 0.0
  %802 = vmatpush1.msra.mxu0 0.0
  %803 = vmatprep.subr.mxu0 0.0
  %804 = vmatpush1.msra.mxu0 0.0
  %805 = vmatprep.subr.mxu0 0.0
  %806 = vmatpush1.msra.mxu0 0.0
  %807 = vmatprep.subr.mxu0 0.0
  %808 = vmatpush1.msra.mxu0 0.0
  %809 = vmatprep.subr.mxu0 0.0
  %810 = vmatpush1.msra.mxu0 0.0
  %811 = vmatprep.mubr.f32.mxu0 0.0
  %812 = vmatmul.mubr.f32.gmra.mrb[0].mxu0 %v151
  %v813 = vpop.f32.mrb[0].mxu0
  %v814 = vadd.f32 %v147, %v813
  %v815 = vpop.f32.mrb[0].mxu0
  %v816 = vadd.f32 %v147, %v815
  %817 = vdwg.mxu0
  %818 = vmatprep.subr.mxu0 %v32
  %819 = vmatpush1.msra.mxu0 %v31
  %820 = vmatprep.subr.mxu0 %v64
  %821 = vmatpush1.msra.mxu0 %v63
  %822 = vmatprep.subr.mxu0 %v96
  %823 = vmatpush1.msra.mxu0 %v95
  %824 = vmatprep.subr.mxu0 %v206
  %825 = vmatpush1.msra.mxu0 %v203
  %826 = vmatprep.subr.mxu0 0.0
  %827 = vmatpush1.msra.mxu0 0.0
  %828 = vmatprep.subr.mxu0 0.0
  %829 = vmatpush1.msra.mxu0 0.0
  %830 = vmatprep.subr.mxu0 0.0
  %831 = vmatpush1.msra.mxu0 0.0
  %832 = vmatprep.subr.mxu0 0.0
  %833 = vmatpush1.msra.mxu0 0.0
  %834 = vmatprep.subr.mxu0 0.0
  %835 = vmatpush1.msra.mxu0 0.0
  %836 = vmatprep.subr.mxu0 0.0
  %837 = vmatpush1.msra.mxu0 0.0
  %838 = vmatprep.subr.mxu0 0.0
  %839 = vmatpush1.msra.mxu0 0.0
  %840 = vmatprep.subr.mxu0 0.0
  %841 = vmatpush1.msra.mxu0 0.0
  %842 = vmatprep.subr.mxu0 0.0
  %843 = vmatpush1.msra.mxu0 0.0
  %844 = vmatprep.subr.mxu0 0.0
  %845 = vmatpush1.msra.mxu0 0.0
  %846 = vmatprep.subr.mxu0 0.0
  %847 = vmatpush1.msra.mxu0 0.0
  %848 = vmatprep.subr.mxu0 0.0
  %849 = vmatpush1.msra.mxu0 0.0
  %850 = vmatprep.subr.mxu0 0.0
  %851 = vmatpush1.msra.mxu0 0.0
  %852 = vmatprep.subr.mxu0 0.0
  %853 = vmatpush1.msra.mxu0 0.0
  %854 = vmatprep.subr.mxu0 0.0
  %855 = vmatpush1.msra.mxu0 0.0
  %856 = vmatprep.subr.mxu0 0.0
  %857 = vmatpush1.msra.mxu0 0.0
  %858 = vmatprep.subr.mxu0 0.0
  %859 = vmatpush1.msra.mxu0 0.0
  %860 = vmatprep.subr.mxu0 0.0
  %861 = vmatpush1.msra.mxu0 0.0
  %862 = vmatprep.subr.mxu0 0.0
  %863 = vmatpush1.msra.mxu0 0.0
  %864 = vmatprep.subr.mxu0 0.0
  %865 = vmatpush1.msra.mxu0 0.0
  %866 = vmatprep.subr.mxu0 0.0
  %867 = vmatpush1.msra.mxu0 0.0
  %868 = vmatprep.subr.mxu0 0.0
  %869 = vmatpush1.msra.mxu0 0.0
  %870 = vmatprep.subr.mxu0 0.0
  %871 = vmatpush1.msra.mxu0 0.0
  %872 = vmatprep.subr.mxu0 0.0
  %873 = vmatpush1.msra.mxu0 0.0
  %874 = vmatprep.subr.mxu0 0.0
  %875 = vmatpush1.msra.mxu0 0.0
  %876 = vmatprep.subr.mxu0 0.0
  %877 = vmatpush1.msra.mxu0 0.0
  %878 = vmatprep.subr.mxu0 0.0
  %879 = vmatpush1.msra.mxu0 0.0
  %880 = vmatprep.subr.mxu0 0.0
  %881 = vmatpush1.msra.mxu0 0.0
  %882 = vmatprep.mubr.f32.mxu0 0.0
  %883 = vmatmul.mubr.f32.gmra.mrb[0].mxu0 %v151
  %v884 = vpop.f32.mrb[0].mxu0
  %v885 = vadd.f32 %v147, %v884
  %v886 = vpop.f32.mrb[0].mxu0
  %v887 = vadd.f32 %v147, %v886
  %888 = vdwg.mxu0
  %889 = vmatprep.subr.mxu0 %v34
  %890 = vmatpush1.msra.mxu0 %v33
  %891 = vmatprep.subr.mxu0 %v66
  %892 = vmatpush1.msra.mxu0 %v65
  %893 = vmatprep.subr.mxu0 %v98
  %894 = vmatpush1.msra.mxu0 %v97
  %895 = vmatprep.subr.mxu0 %v212
  %896 = vmatpush1.msra.mxu0 %v209
  %897 = vmatprep.subr.mxu0 0.0
  %898 = vmatpush1.msra.mxu0 0.0
  %899 = vmatprep.subr.mxu0 0.0
  %900 = vmatpush1.msra.mxu0 0.0
  %901 = vmatprep.subr.mxu0 0.0
  %902 = vmatpush1.msra.mxu0 0.0
  %903 = vmatprep.subr.mxu0 0.0
  %904 = vmatpush1.msra.mxu0 0.0
  %905 = vmatprep.subr.mxu0 0.0
  %906 = vmatpush1.msra.mxu0 0.0
  %907 = vmatprep.subr.mxu0 0.0
  %908 = vmatpush1.msra.mxu0 0.0
  %909 = vmatprep.subr.mxu0 0.0
  %910 = vmatpush1.msra.mxu0 0.0
  %911 = vmatprep.subr.mxu0 0.0
  %912 = vmatpush1.msra.mxu0 0.0
  %913 = vmatprep.subr.mxu0 0.0
  %914 = vmatpush1.msra.mxu0 0.0
  %915 = vmatprep.subr.mxu0 0.0
  %916 = vmatpush1.msra.mxu0 0.0
  %917 = vmatprep.subr.mxu0 0.0
  %918 = vmatpush1.msra.mxu0 0.0
  %919 = vmatprep.subr.mxu0 0.0
  %920 = vmatpush1.msra.mxu0 0.0
  %921 = vmatprep.subr.mxu0 0.0
  %922 = vmatpush1.msra.mxu0 0.0
  %923 = vmatprep.subr.mxu0 0.0
  %924 = vmatpush1.msra.mxu0 0.0
  %925 = vmatprep.subr.mxu0 0.0
  %926 = vmatpush1.msra.mxu0 0.0
  %927 = vmatprep.subr.mxu0 0.0
  %928 = vmatpush1.msra.mxu0 0.0
  %929 = vmatprep.subr.mxu0 0.0
  %930 = vmatpush1.msra.mxu0 0.0
  %931 = vmatprep.subr.mxu0 0.0
  %932 = vmatpush1.msra.mxu0 0.0
  %933 = vmatprep.subr.mxu0 0.0
  %934 = vmatpush1.msra.mxu0 0.0
  %935 = vmatprep.subr.mxu0 0.0
  %936 = vmatpush1.msra.mxu0 0.0
  %937 = vmatprep.subr.mxu0 0.0
  %938 = vmatpush1.msra.mxu0 0.0
  %939 = vmatprep.subr.mxu0 0.0
  %940 = vmatpush1.msra.mxu0 0.0
  %941 = vmatprep.subr.mxu0 0.0
  %942 = vmatpush1.msra.mxu0 0.0
  %943 = vmatprep.subr.mxu0 0.0
  %944 = vmatpush1.msra.mxu0 0.0
  %945 = vmatprep.subr.mxu0 0.0
  %946 = vmatpush1.msra.mxu0 0.0
  %947 = vmatprep.subr.mxu0 0.0
  %948 = vmatpush1.msra.mxu0 0.0
  %949 = vmatprep.subr.mxu0 0.0
  %950 = vmatpush1.msra.mxu0 0.0
  %951 = vmatprep.subr.mxu0 0.0
  %952 = vmatpush1.msra.mxu0 0.0
  %953 = vmatprep.mubr.f32.mxu0 0.0
  %954 = vmatmul.mubr.f32.gmra.mrb[0].mxu0 %v151
  %v955 = vpop.f32.mrb[0].mxu0
  %v956 = vadd.f32 %v147, %v955
  %v957 = vpop.f32.mrb[0].mxu0
  %v958 = vadd.f32 %v147, %v957
  %959 = vdwg.mxu0
  %960 = vmatprep.subr.mxu0 %v36
  %961 = vmatpush1.msra.mxu0 %v35
  %962 = vmatprep.subr.mxu0 %v68
  %963 = vmatpush1.msra.mxu0 %v67
  %964 = vmatprep.subr.mxu0 %v100
  %965 = vmatpush1.msra.mxu0 %v99
  %966 = vmatprep.subr.mxu0 %v218
  %967 = vmatpush1.msra.mxu0 %v215
  %968 = vmatprep.subr.mxu0 0.0
  %969 = vmatpush1.msra.mxu0 0.0
  %970 = vmatprep.subr.mxu0 0.0
  %971 = vmatpush1.msra.mxu0 0.0
  %972 = vmatprep.subr.mxu0 0.0
  %973 = vmatpush1.msra.mxu0 0.0
  %974 = vmatprep.subr.mxu0 0.0
  %975 = vmatpush1.msra.mxu0 0.0
  %976 = vmatprep.subr.mxu0 0.0
  %977 = vmatpush1.msra.mxu0 0.0
  %978 = vmatprep.subr.mxu0 0.0
  %979 = vmatpush1.msra.mxu0 0.0
  %980 = vmatprep.subr.mxu0 0.0
  %981 = vmatpush1.msra.mxu0 0.0
  %982 = vmatprep.subr.mxu0 0.0
  %983 = vmatpush1.msra.mxu0 0.0
  %984 = vmatprep.subr.mxu0 0.0
  %985 = vmatpush1.msra.mxu0 0.0
  %986 = vmatprep.subr.mxu0 0.0
  %987 = vmatpush1.msra.mxu0 0.0
  %988 = vmatprep.subr.mxu0 0.0
  %989 = vmatpush1.msra.mxu0 0.0
  %990 = vmatprep.subr.mxu0 0.0
  %991 = vmatpush1.msra.mxu0 0.0
  %992 = vmatprep.subr.mxu0 0.0
  %993 = vmatpush1.msra.mxu0 0.0
  %994 = vmatprep.subr.mxu0 0.0
  %995 = vmatpush1.msra.mxu0 0.0
  %996 = vmatprep.subr.mxu0 0.0
  %997 = vmatpush1.msra.mxu0 0.0
  %998 = vmatprep.subr.mxu0 0.0
  %999 = vmatpush1.msra.mxu0 0.0
  %1000 = vmatprep.subr.mxu0 0.0
  %1001 = vmatpush1.msra.mxu0 0.0
  %1002 = vmatprep.subr.mxu0 0.0
  %1003 = vmatpush1.msra.mxu0 0.0
  %1004 = vmatprep.subr.mxu0 0.0
  %1005 = vmatpush1.msra.mxu0 0.0
  %1006 = vmatprep.subr.mxu0 0.0
  %1007 = vmatpush1.msra.mxu0 0.0
  %1008 = vmatprep.subr.mxu0 0.0
  %1009 = vmatpush1.msra.mxu0 0.0
  %1010 = vmatprep.subr.mxu0 0.0
  %1011 = vmatpush1.msra.mxu0 0.0
  %1012 = vmatprep.subr.mxu0 0.0
  %1013 = vmatpush1.msra.mxu0 0.0
  %1014 = vmatprep.subr.mxu0 0.0
  %1015 = vmatpush1.msra.mxu0 0.0
  %1016 = vmatprep.subr.mxu0 0.0
  %1017 = vmatpush1.msra.mxu0 0.0
  %1018 = vmatprep.subr.mxu0 0.0
  %1019 = vmatpush1.msra.mxu0 0.0
  %1020 = vmatprep.subr.mxu0 0.0
  %1021 = vmatpush1.msra.mxu0 0.0
  %1022 = vmatprep.subr.mxu0 0.0
  %1023 = vmatpush1.msra.mxu0 0.0
  %1024 = vmatprep.mubr.f32.mxu0 0.0
  %1025 = vmatmul.mubr.f32.gmra.mrb[0].mxu0 %v151
  %v1026 = vpop.f32.mrb[0].mxu0
  %v1027 = vadd.f32 %v147, %v1026
  %v1028 = vpop.f32.mrb[0].mxu0
  %v1029 = vadd.f32 %v147, %v1028
  %1030 = vdwg.mxu0
  %1031 = vmatprep.subr.mxu0 %v38
  %1032 = vmatpush1.msra.mxu0 %v37
  %1033 = vmatprep.subr.mxu0 %v70
  %1034 = vmatpush1.msra.mxu0 %v69
  %1035 = vmatprep.subr.mxu0 %v102
  %1036 = vmatpush1.msra.mxu0 %v101
  %1037 = vmatprep.subr.mxu0 %v224
  %1038 = vmatpush1.msra.mxu0 %v221
  %1039 = vmatprep.subr.mxu0 0.0
  %1040 = vmatpush1.msra.mxu0 0.0
  %1041 = vmatprep.subr.mxu0 0.0
  %1042 = vmatpush1.msra.mxu0 0.0
  %1043 = vmatprep.subr.mxu0 0.0
  %1044 = vmatpush1.msra.mxu0 0.0
  %1045 = vmatprep.subr.mxu0 0.0
  %1046 = vmatpush1.msra.mxu0 0.0
  %1047 = vmatprep.subr.mxu0 0.0
  %1048 = vmatpush1.msra.mxu0 0.0
  %1049 = vmatprep.subr.mxu0 0.0
  %1050 = vmatpush1.msra.mxu0 0.0
  %1051 = vmatprep.subr.mxu0 0.0
  %1052 = vmatpush1.msra.mxu0 0.0
  %1053 = vmatprep.subr.mxu0 0.0
  %1054 = vmatpush1.msra.mxu0 0.0
  %1055 = vmatprep.subr.mxu0 0.0
  %1056 = vmatpush1.msra.mxu0 0.0
  %1057 = vmatprep.subr.mxu0 0.0
  %1058 = vmatpush1.msra.mxu0 0.0
  %1059 = vmatprep.subr.mxu0 0.0
  %1060 = vmatpush1.msra.mxu0 0.0
  %1061 = vmatprep.subr.mxu0 0.0
  %1062 = vmatpush1.msra.mxu0 0.0
  %1063 = vmatprep.subr.mxu0 0.0
  %1064 = vmatpush1.msra.mxu0 0.0
  %1065 = vmatprep.subr.mxu0 0.0
  %1066 = vmatpush1.msra.mxu0 0.0
  %1067 = vmatprep.subr.mxu0 0.0
  %1068 = vmatpush1.msra.mxu0 0.0
  %1069 = vmatprep.subr.mxu0 0.0
  %1070 = vmatpush1.msra.mxu0 0.0
  %1071 = vmatprep.subr.mxu0 0.0
  %1072 = vmatpush1.msra.mxu0 0.0
  %1073 = vmatprep.subr.mxu0 0.0
  %1074 = vmatpush1.msra.mxu0 0.0
  %1075 = vmatprep.subr.mxu0 0.0
  %1076 = vmatpush1.msra.mxu0 0.0
  %1077 = vmatprep.subr.mxu0 0.0
  %1078 = vmatpush1.msra.mxu0 0.0
  %1079 = vmatprep.subr.mxu0 0.0
  %1080 = vmatpush1.msra.mxu0 0.0
  %1081 = vmatprep.subr.mxu0 0.0
  %1082 = vmatpush1.msra.mxu0 0.0
  %1083 = vmatprep.subr.mxu0 0.0
  %1084 = vmatpush1.msra.mxu0 0.0
  %1085 = vmatprep.subr.mxu0 0.0
  %1086 = vmatpush1.msra.mxu0 0.0
  %1087 = vmatprep.subr.mxu0 0.0
  %1088 = vmatpush1.msra.mxu0 0.0
  %1089 = vmatprep.subr.mxu0 0.0
  %1090 = vmatpush1.msra.mxu0 0.0
  %1091 = vmatprep.subr.mxu0 0.0
  %1092 = vmatpush1.msra.mxu0 0.0
  %1093 = vmatprep.subr.mxu0 0.0
  %1094 = vmatpush1.msra.mxu0 0.0
  %1095 = vmatprep.mubr.f32.mxu0 0.0
  %1096 = vmatmul.mubr.f32.gmra.mrb[0].mxu0 %v151
  %v1097 = vpop.f32.mrb[0].mxu0
  %v1098 = vadd.f32 %v147, %v1097
  %v1099 = vpop.f32.mrb[0].mxu0
  %v1100 = vadd.f32 %v147, %v1099
  %1101 = vdwg.mxu0
  %1102 = vmatprep.subr.mxu0 %v40
  %1103 = vmatpush1.msra.mxu0 %v39
  %1104 = vmatprep.subr.mxu0 %v72
  %1105 = vmatpush1.msra.mxu0 %v71
  %1106 = vmatprep.subr.mxu0 %v104
  %1107 = vmatpush1.msra.mxu0 %v103
  %1108 = vmatprep.subr.mxu0 %v230
  %1109 = vmatpush1.msra.mxu0 %v227
  %1110 = vmatprep.subr.mxu0 0.0
  %1111 = vmatpush1.msra.mxu0 0.0
  %1112 = vmatprep.subr.mxu0 0.0
  %1113 = vmatpush1.msra.mxu0 0.0
  %1114 = vmatprep.subr.mxu0 0.0
  %1115 = vmatpush1.msra.mxu0 0.0
  %1116 = vmatprep.subr.mxu0 0.0
  %1117 = vmatpush1.msra.mxu0 0.0
  %1118 = vmatprep.subr.mxu0 0.0
  %1119 = vmatpush1.msra.mxu0 0.0
  %1120 = vmatprep.subr.mxu0 0.0
  %1121 = vmatpush1.msra.mxu0 0.0
  %1122 = vmatprep.subr.mxu0 0.0
  %1123 = vmatpush1.msra.mxu0 0.0
  %1124 = vmatprep.subr.mxu0 0.0
  %1125 = vmatpush1.msra.mxu0 0.0
  %1126 = vmatprep.subr.mxu0 0.0
  %1127 = vmatpush1.msra.mxu0 0.0
  %1128 = vmatprep.subr.mxu0 0.0
  %1129 = vmatpush1.msra.mxu0 0.0
  %1130 = vmatprep.subr.mxu0 0.0
  %1131 = vmatpush1.msra.mxu0 0.0
  %1132 = vmatprep.subr.mxu0 0.0
  %1133 = vmatpush1.msra.mxu0 0.0
  %1134 = vmatprep.subr.mxu0 0.0
  %1135 = vmatpush1.msra.mxu0 0.0
  %1136 = vmatprep.subr.mxu0 0.0
  %1137 = vmatpush1.msra.mxu0 0.0
  %1138 = vmatprep.subr.mxu0 0.0
  %1139 = vmatpush1.msra.mxu0 0.0
  %1140 = vmatprep.subr.mxu0 0.0
  %1141 = vmatpush1.msra.mxu0 0.0
  %1142 = vmatprep.subr.mxu0 0.0
  %1143 = vmatpush1.msra.mxu0 0.0
  %1144 = vmatprep.subr.mxu0 0.0
  %1145 = vmatpush1.msra.mxu0 0.0
  %1146 = vmatprep.subr.mxu0 0.0
  %1147 = vmatpush1.msra.mxu0 0.0
  %1148 = vmatprep.subr.mxu0 0.0
  %1149 = vmatpush1.msra.mxu0 0.0
  %1150 = vmatprep.subr.mxu0 0.0
  %1151 = vmatpush1.msra.mxu0 0.0
  %1152 = vmatprep.subr.mxu0 0.0
  %1153 = vmatpush1.msra.mxu0 0.0
  %1154 = vmatprep.subr.mxu0 0.0
  %1155 = vmatpush1.msra.mxu0 0.0
  %1156 = vmatprep.subr.mxu0 0.0
  %1157 = vmatpush1.msra.mxu0 0.0
  %1158 = vmatprep.subr.mxu0 0.0
  %1159 = vmatpush1.msra.mxu0 0.0
  %1160 = vmatprep.subr.mxu0 0.0
  %1161 = vmatpush1.msra.mxu0 0.0
  %1162 = vmatprep.subr.mxu0 0.0
  %1163 = vmatpush1.msra.mxu0 0.0
  %1164 = vmatprep.subr.mxu0 0.0
  %1165 = vmatpush1.msra.mxu0 0.0
  %1166 = vmatprep.mubr.f32.mxu0 0.0
  %1167 = vmatmul.mubr.f32.gmra.mrb[0].mxu0 %v151
  %v1168 = vpop.f32.mrb[0].mxu0
  %v1169 = vadd.f32 %v147, %v1168
  %v1170 = vpop.f32.mrb[0].mxu0
  %v1171 = vadd.f32 %v147, %v1170
  %1172 = vdwg.mxu0
  %1173 = vmatprep.subr.mxu0 %v42
  %1174 = vmatpush1.msra.mxu0 %v41
  %1175 = vmatprep.subr.mxu0 %v74
  %1176 = vmatpush1.msra.mxu0 %v73
  %1177 = vmatprep.subr.mxu0 %v106
  %1178 = vmatpush1.msra.mxu0 %v105
  %1179 = vmatprep.subr.mxu0 %v236
  %1180 = vmatpush1.msra.mxu0 %v233
  %1181 = vmatprep.subr.mxu0 0.0
  %1182 = vmatpush1.msra.mxu0 0.0
  %1183 = vmatprep.subr.mxu0 0.0
  %1184 = vmatpush1.msra.mxu0 0.0
  %1185 = vmatprep.subr.mxu0 0.0
  %1186 = vmatpush1.msra.mxu0 0.0
  %1187 = vmatprep.subr.mxu0 0.0
  %1188 = vmatpush1.msra.mxu0 0.0
  %1189 = vmatprep.subr.mxu0 0.0
  %1190 = vmatpush1.msra.mxu0 0.0
  %1191 = vmatprep.subr.mxu0 0.0
  %1192 = vmatpush1.msra.mxu0 0.0
  %1193 = vmatprep.subr.mxu0 0.0
  %1194 = vmatpush1.msra.mxu0 0.0
  %1195 = vmatprep.subr.mxu0 0.0
  %1196 = vmatpush1.msra.mxu0 0.0
  %1197 = vmatprep.subr.mxu0 0.0
  %1198 = vmatpush1.msra.mxu0 0.0
  %1199 = vmatprep.subr.mxu0 0.0
  %1200 = vmatpush1.msra.mxu0 0.0
  %1201 = vmatprep.subr.mxu0 0.0
  %1202 = vmatpush1.msra.mxu0 0.0
  %1203 = vmatprep.subr.mxu0 0.0
  %1204 = vmatpush1.msra.mxu0 0.0
  %1205 = vmatprep.subr.mxu0 0.0
  %1206 = vmatpush1.msra.mxu0 0.0
  %1207 = vmatprep.subr.mxu0 0.0
  %1208 = vmatpush1.msra.mxu0 0.0
  %1209 = vmatprep.subr.mxu0 0.0
  %1210 = vmatpush1.msra.mxu0 0.0
  %1211 = vmatprep.subr.mxu0 0.0
  %1212 = vmatpush1.msra.mxu0 0.0
  %1213 = vmatprep.subr.mxu0 0.0
  %1214 = vmatpush1.msra.mxu0 0.0
  %1215 = vmatprep.subr.mxu0 0.0
  %1216 = vmatpush1.msra.mxu0 0.0
  %1217 = vmatprep.subr.mxu0 0.0
  %1218 = vmatpush1.msra.mxu0 0.0
  %1219 = vmatprep.subr.mxu0 0.0
  %1220 = vmatpush1.msra.mxu0 0.0
  %1221 = vmatprep.subr.mxu0 0.0
  %1222 = vmatpush1.msra.mxu0 0.0
  %1223 = vmatprep.subr.mxu0 0.0
  %1224 = vmatpush1.msra.mxu0 0.0
  %1225 = vmatprep.subr.mxu0 0.0
  %1226 = vmatpush1.msra.mxu0 0.0
  %1227 = vmatprep.subr.mxu0 0.0
  %1228 = vmatpush1.msra.mxu0 0.0
  %1229 = vmatprep.subr.mxu0 0.0
  %1230 = vmatpush1.msra.mxu0 0.0
  %1231 = vmatprep.subr.mxu0 0.0
  %1232 = vmatpush1.msra.mxu0 0.0
  %1233 = vmatprep.subr.mxu0 0.0
  %1234 = vmatpush1.msra.mxu0 0.0
  %1235 = vmatprep.subr.mxu0 0.0
  %1236 = vmatpush1.msra.mxu0 0.0
  %1237 = vmatprep.mubr.f32.mxu0 0.0
  %1238 = vmatmul.mubr.f32.gmra.mrb[0].mxu0 %v151
  %v1239 = vpop.f32.mrb[0].mxu0
  %v1240 = vadd.f32 %v147, %v1239
  %v1241 = vpop.f32.mrb[0].mxu0
  %v1242 = vadd.f32 %v147, %v1241
  %1243 = vdwg.mxu0
  %1244 = vmatprep.subr.mxu0 %v44
  %1245 = vmatpush1.msra.mxu0 %v43
  %1246 = vmatprep.subr.mxu0 %v76
  %1247 = vmatpush1.msra.mxu0 %v75
  %1248 = vmatprep.subr.mxu0 %v108
  %1249 = vmatpush1.msra.mxu0 %v107
  %1250 = vmatprep.subr.mxu0 %v242
  %1251 = vmatpush1.msra.mxu0 %v239
  %1252 = vmatprep.subr.mxu0 0.0
  %1253 = vmatpush1.msra.mxu0 0.0
  %1254 = vmatprep.subr.mxu0 0.0
  %1255 = vmatpush1.msra.mxu0 0.0
  %1256 = vmatprep.subr.mxu0 0.0
  %1257 = vmatpush1.msra.mxu0 0.0
  %1258 = vmatprep.subr.mxu0 0.0
  %1259 = vmatpush1.msra.mxu0 0.0
  %1260 = vmatprep.subr.mxu0 0.0
  %1261 = vmatpush1.msra.mxu0 0.0
  %1262 = vmatprep.subr.mxu0 0.0
  %1263 = vmatpush1.msra.mxu0 0.0
  %1264 = vmatprep.subr.mxu0 0.0
  %1265 = vmatpush1.msra.mxu0 0.0
  %1266 = vmatprep.subr.mxu0 0.0
  %1267 = vmatpush1.msra.mxu0 0.0
  %1268 = vmatprep.subr.mxu0 0.0
  %1269 = vmatpush1.msra.mxu0 0.0
  %1270 = vmatprep.subr.mxu0 0.0
  %1271 = vmatpush1.msra.mxu0 0.0
  %1272 = vmatprep.subr.mxu0 0.0
  %1273 = vmatpush1.msra.mxu0 0.0
  %1274 = vmatprep.subr.mxu0 0.0
  %1275 = vmatpush1.msra.mxu0 0.0
  %1276 = vmatprep.subr.mxu0 0.0
  %1277 = vmatpush1.msra.mxu0 0.0
  %1278 = vmatprep.subr.mxu0 0.0
  %1279 = vmatpush1.msra.mxu0 0.0
  %1280 = vmatprep.subr.mxu0 0.0
  %1281 = vmatpush1.msra.mxu0 0.0
  %1282 = vmatprep.subr.mxu0 0.0
  %1283 = vmatpush1.msra.mxu0 0.0
  %1284 = vmatprep.subr.mxu0 0.0
  %1285 = vmatpush1.msra.mxu0 0.0
  %1286 = vmatprep.subr.mxu0 0.0
  %1287 = vmatpush1.msra.mxu0 0.0
  %1288 = vmatprep.subr.mxu0 0.0
  %1289 = vmatpush1.msra.mxu0 0.0
  %1290 = vmatprep.subr.mxu0 0.0
  %1291 = vmatpush1.msra.mxu0 0.0
  %1292 = vmatprep.subr.mxu0 0.0
  %1293 = vmatpush1.msra.mxu0 0.0
  %1294 = vmatprep.subr.mxu0 0.0
  %1295 = vmatpush1.msra.mxu0 0.0
  %1296 = vmatprep.subr.mxu0 0.0
  %1297 = vmatpush1.msra.mxu0 0.0
  %1298 = vmatprep.subr.mxu0 0.0
  %1299 = vmatpush1.msra.mxu0 0.0
  %1300 = vmatprep.subr.mxu0 0.0
  %1301 = vmatpush1.msra.mxu0 0.0
  %1302 = vmatprep.subr.mxu0 0.0
  %1303 = vmatpush1.msra.mxu0 0.0
  %1304 = vmatprep.subr.mxu0 0.0
  %1305 = vmatpush1.msra.mxu0 0.0
  %1306 = vmatprep.subr.mxu0 0.0
  %1307 = vmatpush1.msra.mxu0 0.0
  %1308 = vmatprep.mubr.f32.mxu0 0.0
  %1309 = vmatmul.mubr.f32.gmra.mrb[0].mxu0 %v151
  %v1310 = vpop.f32.mrb[0].mxu0
  %v1311 = vadd.f32 %v147, %v1310
  %v1312 = vpop.f32.mrb[0].mxu0
  %v1313 = vadd.f32 %v147, %v1312
  %1314 = vdwg.mxu0
  %1315 = vmatprep.subr.mxu0 %v46
  %1316 = vmatpush1.msra.mxu0 %v45
  %1317 = vmatprep.subr.mxu0 %v78
  %1318 = vmatpush1.msra.mxu0 %v77
  %1319 = vmatprep.subr.mxu0 %v110
  %1320 = vmatpush1.msra.mxu0 %v109
  %1321 = vmatprep.subr.mxu0 %v248
  %1322 = vmatpush1.msra.mxu0 %v245
  %1323 = vmatprep.subr.mxu0 0.0
  %1324 = vmatpush1.msra.mxu0 0.0
  %1325 = vmatprep.subr.mxu0 0.0
  %1326 = vmatpush1.msra.mxu0 0.0
  %1327 = vmatprep.subr.mxu0 0.0
  %1328 = vmatpush1.msra.mxu0 0.0
  %1329 = vmatprep.subr.mxu0 0.0
  %1330 = vmatpush1.msra.mxu0 0.0
  %1331 = vmatprep.subr.mxu0 0.0
  %1332 = vmatpush1.msra.mxu0 0.0
  %1333 = vmatprep.subr.mxu0 0.0
  %1334 = vmatpush1.msra.mxu0 0.0
  %1335 = vmatprep.subr.mxu0 0.0
  %1336 = vmatpush1.msra.mxu0 0.0
  %1337 = vmatprep.subr.mxu0 0.0
  %1338 = vmatpush1.msra.mxu0 0.0
  %1339 = vmatprep.subr.mxu0 0.0
  %1340 = vmatpush1.msra.mxu0 0.0
  %1341 = vmatprep.subr.mxu0 0.0
  %1342 = vmatpush1.msra.mxu0 0.0
  %1343 = vmatprep.subr.mxu0 0.0
  %1344 = vmatpush1.msra.mxu0 0.0
  %1345 = vmatprep.subr.mxu0 0.0
  %1346 = vmatpush1.msra.mxu0 0.0
  %1347 = vmatprep.subr.mxu0 0.0
  %1348 = vmatpush1.msra.mxu0 0.0
  %1349 = vmatprep.subr.mxu0 0.0
  %1350 = vmatpush1.msra.mxu0 0.0
  %1351 = vmatprep.subr.mxu0 0.0
  %1352 = vmatpush1.msra.mxu0 0.0
  %1353 = vmatprep.subr.mxu0 0.0
  %1354 = vmatpush1.msra.mxu0 0.0
  %1355 = vmatprep.subr.mxu0 0.0
  %1356 = vmatpush1.msra.mxu0 0.0
  %1357 = vmatprep.subr.mxu0 0.0
  %1358 = vmatpush1.msra.mxu0 0.0
  %1359 = vmatprep.subr.mxu0 0.0
  %1360 = vmatpush1.msra.mxu0 0.0
  %1361 = vmatprep.subr.mxu0 0.0
  %1362 = vmatpush1.msra.mxu0 0.0
  %1363 = vmatprep.subr.mxu0 0.0
  %1364 = vmatpush1.msra.mxu0 0.0
  %1365 = vmatprep.subr.mxu0 0.0
  %1366 = vmatpush1.msra.mxu0 0.0
  %1367 = vmatprep.subr.mxu0 0.0
  %1368 = vmatpush1.msra.mxu0 0.0
  %1369 = vmatprep.subr.mxu0 0.0
  %1370 = vmatpush1.msra.mxu0 0.0
  %1371 = vmatprep.subr.mxu0 0.0
  %1372 = vmatpush1.msra.mxu0 0.0
  %1373 = vmatprep.subr.mxu0 0.0
  %1374 = vmatpush1.msra.mxu0 0.0
  %1375 = vmatprep.subr.mxu0 0.0
  %1376 = vmatpush1.msra.mxu0 0.0
  %1377 = vmatprep.subr.mxu0 0.0
  %1378 = vmatpush1.msra.mxu0 0.0
  %1379 = vmatprep.mubr.f32.mxu0 0.0
  %1380 = vmatmul.mubr.f32.gmra.mrb[0].mxu0 %v151
  %v1381 = vpop.f32.mrb[0].mxu0
  %v1382 = vadd.f32 %v147, %v1381
  %v1383 = vpop.f32.mrb[0].mxu0
  %v1384 = vadd.f32 %v147, %v1383
  %1385 = vdwg.mxu0
  %v1386 = vmax.f32 %v317, 0.0
  %v1387 = vmax.f32 %v319, 0.0
  %v1388 = vmax.f32 %v388, 0.0
  %v1389 = vmax.f32 %v390, 0.0
  %v1390 = vmax.f32 %v459, 0.0
  %v1391 = vmax.f32 %v461, 0.0
  %v1392 = vmax.f32 %v530, 0.0
  %v1393 = vmax.f32 %v532, 0.0
  %v1394 = vmax.f32 %v601, 0.0
  %v1395 = vmax.f32 %v603, 0.0
  %v1396 = vmax.f32 %v672, 0.0
  %v1397 = vmax.f32 %v674, 0.0
  %v1398 = vmax.f32 %v743, 0.0
  %v1399 = vmax.f32 %v745, 0.0
  %v1400 = vmax.f32 %v814, 0.0
  %v1401 = vmax.f32 %v816, 0.0
  %v1402 = vmax.f32 %v885, 0.0
  %v1403 = vmax.f32 %v887, 0.0
  %v1404 = vmax.f32 %v956, 0.0
  %v1405 = vmax.f32 %v958, 0.0
  %v1406 = vmax.f32 %v1027, 0.0
  %v1407 = vmax.f32 %v1029, 0.0
  %v1408 = vmax.f32 %v1098, 0.0
  %v1409 = vmax.f32 %v1100, 0.0
  %v1410 = vmax.f32 %v1169, 0.0
  %v1411 = vmax.f32 %v1171, 0.0
  %v1412 = vmax.f32 %v1240, 0.0
  %v1413 = vmax.f32 %v1242, 0.0
  %v1414 = vmax.f32 %v1311, 0.0
  %v1415 = vmax.f32 %v1313, 0.0
  %v1416 = vmax.f32 %v1382, 0.0
  %v1417 = vmax.f32 %v1384, 0.0
  %v1450 = vcombine.low %v1386, %v1387
  %v1451 = vcombine.low %v1388, %v1389
  %v1452 = vcombine.low %v1390, %v1391
  %v1453 = vcombine.low %v1392, %v1393
  %v1454 = vcombine.low %v1394, %v1395
  %v1455 = vcombine.low %v1396, %v1397
  %v1456 = vcombine.low %v1398, %v1399
  %v1457 = vcombine.low %v1400, %v1401
  %v1458 = vcombine.low %v1402, %v1403
  %v1459 = vcombine.low %v1404, %v1405
  %v1460 = vcombine.low %v1406, %v1407
  %v1461 = vcombine.low %v1408, %v1409
  %v1462 = vcombine.low %v1410, %v1411
  %v1463 = vcombine.low %v1412, %v1413
  %v1464 = vcombine.low %v1414, %v1415
  %v1465 = vcombine.low %v1416, %v1417
  %1482 = vst [vmem:[%s3] sm:$0xff] %v1450
  %1483 = vst [vmem:[%s3 + $0x8] sm:$0xff] %v1451
  %1484 = vst [vmem:[%s3 + $0x10] sm:$0xff] %v1452
  %1485 = vst [vmem:[%s3 + $0x18] sm:$0xff] %v1453
  %1486 = vst [vmem:[%s3 + $0x20] sm:$0xff] %v1454
  %1487 = vst [vmem:[%s3 + $0x28] sm:$0xff] %v1455
  %1488 = vst [vmem:[%s3 + $0x30] sm:$0xff] %v1456
  %1489 = vst [vmem:[%s3 + $0x38] sm:$0xff] %v1457
  %1490 = vst [vmem:[%s3 + $0x40] sm:$0xff] %v1458
  %1491 = vst [vmem:[%s3 + $0x48] sm:$0xff] %v1459
  %1492 = vst [vmem:[%s3 + $0x50] sm:$0xff] %v1460
  %1493 = vst [vmem:[%s3 + $0x58] sm:$0xff] %v1461
  %1494 = vst [vmem:[%s3 + $0x60] sm:$0xff] %v1462
  %1495 = vst [vmem:[%s3 + $0x68] sm:$0xff] %v1463
  %1496 = vst [vmem:[%s3 + $0x70] sm:$0xff] %v1464
  %vm1497 = vcmask 1043456
  %vm1498 = vcmask 523268
  %vm1499 = vmor %vm1498, %vm1497
  %1500 = vst.msk [vmem:[%s3 + $0x78] sm:$0xff] %vm1499, %v1465
  // Predicated region
  $region14: #{_lambda_.7} parent=0 // pred_check
    _
  $region15: #{_lambda_.7} parent=0 // pred_check_branch
    %1502 = sbr.rel (0) target = $region17
  $region16: #{_lambda_.7} parent=0 // pred_region
    _
  $region17: #{_lambda_.7} parent=0 // pred_fallthru
    _
  // Predicated region
  $region18: #{_lambda_.7} parent=0 // pred_check
    _
  $region19: #{_lambda_.7} parent=0 // pred_check_branch
    %1504 = sbr.rel (0) target = $region21
  $region20: #{_lambda_.7} parent=0 // pred_region
    _
  $region21: #{_lambda_.7} parent=0 // pred_fallthru
    _

// kernel: _lambda_.8
$region0: #{_lambda_.8}
  #allocation0 [shape = 'u32[]', space=smem, size = 0x4, offset = 0x4, fixed_abs, tag = 'smem constant byte address 0x4 - core index']
  #allocation1 [shape = 'u32[144,128]{1,0:T(1,128)}', space=vmem, size = 0x12000, scoped, tag = 'internal scratch']
  %s0 = inlined_call_operand.vmem [shape: f32[8,36], index: 0, kind: input, shape index: {}]
  %s1 = inlined_call_operand.vmem [shape: f32[36,1056], index: 1, kind: input, shape index: {}]
  %s2 = inlined_call_operand.vmem [shape: f32[8,1], index: 2, kind: input, shape index: {}]
  %s3 = inlined_call_operand.vmem [shape: f32[8,1056], index: 3, kind: output, shape index: {}]
  %s4 = sld [smem:[#allocation0]]
  $region22: #{_lambda_.8} parent=0
    _
  %s6 = ssub.s32 1, %s4
  %s7 = scalar_select 0, %s6, %s4
  // Predicated region
  $region2: #{_lambda_.8} parent=0 // pred_check
    _
  $region3: #{_lambda_.8} parent=0 // pred_check_branch
    %9 = sbr.rel (0) target = $region5
  $region4: #{_lambda_.8} parent=0 // pred_region
    _
  $region5: #{_lambda_.8} parent=0 // pred_fallthru
    _
  // Predicated region
  $region6: #{_lambda_.8} parent=0 // pred_check
    _
  $region7: #{_lambda_.8} parent=0 // pred_check_branch
    %11 = sbr.rel (0) target = $region9
  $region8: #{_lambda_.8} parent=0 // pred_region
    _
  $region9: #{_lambda_.8} parent=0 // pred_fallthru
    _
  // Predicated region
  $region10: #{_lambda_.8} parent=0 // pred_check
    _
  $region11: #{_lambda_.8} parent=0 // pred_check_branch
    %13 = sbr.rel (0) target = $region13
  $region12: #{_lambda_.8} parent=0 // pred_region
    _
  $region13: #{_lambda_.8} parent=0 // pred_fallthru
    _
  %v14 = vld [vmem:[%s0] sm:$0xff]
  %v15 = vld [vmem:[%s1] sm:$0xff]
  %v16 = vld [vmem:[%s1 + $0x8] sm:$0xff]
  %v17 = vld [vmem:[%s1 + $0x10] sm:$0xff]
  %v18 = vld [vmem:[%s1 + $0x18] sm:$0xff]
  %v19 = vld [vmem:[%s1 + $0x20] sm:$0xff]
  %v20 = vld [vmem:[%s1 + $0x28] sm:$0xff]
  %v21 = vld [vmem:[%s1 + $0x30] sm:$0xff]
  %v22 = vld [vmem:[%s1 + $0x38] sm:$0xff]
  %v23 = vld [vmem:[%s1 + $0x40] sm:$0xff]
  %v24 = vld [vmem:[%s1 + $0x48] sm:$0xff]
  %v25 = vld [vmem:[%s1 + $0x50] sm:$0xff]
  %v26 = vld [vmem:[%s1 + $0x58] sm:$0xff]
  %v27 = vld [vmem:[%s1 + $0x60] sm:$0xff]
  %v28 = vld [vmem:[%s1 + $0x68] sm:$0xff]
  %v29 = vld [vmem:[%s1 + $0x70] sm:$0xff]
  %v30 = vld [vmem:[%s1 + $0x78] sm:$0xff]
  %v31 = vld [vmem:[%s1 + $0x80] sm:$0xff]
  %v32 = vld [vmem:[%s1 + $0x88] sm:$0xff]
  %v33 = vld [vmem:[%s1 + $0x90] sm:$0xff]
  %v34 = vld [vmem:[%s1 + $0x98] sm:$0xff]
  %v35 = vld [vmem:[%s1 + $0xa0] sm:$0xff]
  %v36 = vld [vmem:[%s1 + $0xa8] sm:$0xff]
  %v37 = vld [vmem:[%s1 + $0xb0] sm:$0xff]
  %v38 = vld [vmem:[%s1 + $0xb8] sm:$0xff]
  %v39 = vld [vmem:[%s1 + $0xc0] sm:$0xff]
  %v40 = vld [vmem:[%s1 + $0xc8] sm:$0xff]
  %v41 = vld [vmem:[%s1 + $0xd0] sm:$0xff]
  %v42 = vld [vmem:[%s1 + $0xd8] sm:$0xff]
  %v43 = vld [vmem:[%s1 + $0xe0] sm:$0xff]
  %v44 = vld [vmem:[%s1 + $0xe8] sm:$0xff]
  %v45 = vld [vmem:[%s1 + $0xf0] sm:$0xff]
  %v46 = vld [vmem:[%s1 + $0xf8] sm:$0xff]
  %v47 = vld [vmem:[%s1 + $0x100] sm:$0xff]
  %v48 = vld [vmem:[%s1 + $0x108] sm:$0xff]
  %v49 = vld [vmem:[%s1 + $0x110] sm:$0xff]
  %v50 = vld [vmem:[%s1 + $0x118] sm:$0xff]
  %v51 = vld [vmem:[%s1 + $0x120] sm:$0xf]
  %v52 = vld [vmem:[%s1 + $0x128] sm:$0xf]
  %v53 = vld [vmem:[%s1 + $0x130] sm:$0xf]
  %v54 = vld [vmem:[%s1 + $0x138] sm:$0xf]
  %v55 = vld [vmem:[%s1 + $0x140] sm:$0xf]
  %v56 = vld [vmem:[%s1 + $0x148] sm:$0xf]
  %v57 = vld [vmem:[%s1 + $0x150] sm:$0xf]
  %v58 = vld [vmem:[%s1 + $0x158] sm:$0xf]
  %v59 = vld [vmem:[%s1 + $0x160] sm:$0xf]
  %v60 = vld [vmem:[%s2] sm:$0xff]
  %62 = vset.pattern.permute.xlu0 0
  %63 = vperm.xlu0 %62, %v60
  %v64 = vpop.permute.xlu0 %63
  %vm66 = vcmask 293888
  %v68 = vsel %vm66, %v14, 0
  %vm70 = vcmask 1043456
  %v72 = vsel %vm70, %v51, 0
  %v75 = vsel %vm70, %v52, 0
  %v78 = vsel %vm70, %v53, 0
  %v81 = vsel %vm70, %v54, 0
  %v84 = vsel %vm70, %v55, 0
  %v87 = vsel %vm70, %v56, 0
  %v90 = vsel %vm70, %v57, 0
  %v93 = vsel %vm70, %v58, 0
  %v96 = vsel %vm70, %v59, 0
  %98 = vmatprep.subr.mxu0 %v16
  %99 = vmatpush1.msra.mxu0 %v15
  %100 = vmatprep.subr.mxu0 %v25
  %101 = vmatpush1.msra.mxu0 %v24
  %102 = vmatprep.subr.mxu0 %v34
  %103 = vmatpush1.msra.mxu0 %v33
  %104 = vmatprep.subr.mxu0 %v43
  %105 = vmatpush1.msra.mxu0 %v42
  %106 = vmatprep.subr.mxu0 %v75
  %107 = vmatpush1.msra.mxu0 %v72
  %108 = vmatprep.subr.mxu0 0.0
  %109 = vmatpush1.msra.mxu0 0.0
  %110 = vmatprep.subr.mxu0 0.0
  %111 = vmatpush1.msra.mxu0 0.0
  %112 = vmatprep.subr.mxu0 0.0
  %113 = vmatpush1.msra.mxu0 0.0
  %114 = vmatprep.subr.mxu0 0.0
  %115 = vmatpush1.msra.mxu0 0.0
  %116 = vmatprep.subr.mxu0 0.0
  %117 = vmatpush1.msra.mxu0 0.0
  %118 = vmatprep.subr.mxu0 0.0
  %119 = vmatpush1.msra.mxu0 0.0
  %120 = vmatprep.subr.mxu0 0.0
  %121 = vmatpush1.msra.mxu0 0.0
  %122 = vmatprep.subr.mxu0 0.0
  %123 = vmatpush1.msra.mxu0 0.0
  %124 = vmatprep.subr.mxu0 0.0
  %125 = vmatpush1.msra.mxu0 0.0
  %126 = vmatprep.subr.mxu0 0.0
  %127 = vmatpush1.msra.mxu0 0.0
  %128 = vmatprep.subr.mxu0 0.0
  %129 = vmatpush1.msra.mxu0 0.0
  %130 = vmatprep.subr.mxu0 0.0
  %131 = vmatpush1.msra.mxu0 0.0
  %132 = vmatprep.subr.mxu0 0.0
  %133 = vmatpush1.msra.mxu0 0.0
  %134 = vmatprep.subr.mxu0 0.0
  %135 = vmatpush1.msra.mxu0 0.0
  %136 = vmatprep.subr.mxu0 0.0
  %137 = vmatpush1.msra.mxu0 0.0
  %138 = vmatprep.subr.mxu0 0.0
  %139 = vmatpush1.msra.mxu0 0.0
  %140 = vmatprep.subr.mxu0 0.0
  %141 = vmatpush1.msra.mxu0 0.0
  %142 = vmatprep.subr.mxu0 0.0
  %143 = vmatpush1.msra.mxu0 0.0
  %144 = vmatprep.subr.mxu0 0.0
  %145 = vmatpush1.msra.mxu0 0.0
  %146 = vmatprep.subr.mxu0 0.0
  %147 = vmatpush1.msra.mxu0 0.0
  %148 = vmatprep.subr.mxu0 0.0
  %149 = vmatpush1.msra.mxu0 0.0
  %150 = vmatprep.subr.mxu0 0.0
  %151 = vmatpush1.msra.mxu0 0.0
  %152 = vmatprep.subr.mxu0 0.0
  %153 = vmatpush1.msra.mxu0 0.0
  %154 = vmatprep.subr.mxu0 0.0
  %155 = vmatpush1.msra.mxu0 0.0
  %156 = vmatprep.subr.mxu0 0.0
  %157 = vmatpush1.msra.mxu0 0.0
  %158 = vmatprep.subr.mxu0 0.0
  %159 = vmatpush1.msra.mxu0 0.0
  %160 = vmatprep.subr.mxu0 0.0
  %161 = vmatpush1.msra.mxu0 0.0
  %162 = vmatprep.mubr.f32.mxu0 0.0
  %163 = vmatmul.mubr.f32.gmra.mrb[0].mxu0 %v68
  %v164 = vpop.f32.mrb[0].mxu0
  %v165 = vadd.f32 %v64, %v164
  %v166 = vpop.f32.mrb[0].mxu0
  %v167 = vadd.f32 %v64, %v166
  %168 = vdwg.mxu0
  %169 = vmatprep.subr.mxu0 %v18
  %170 = vmatpush1.msra.mxu0 %v17
  %171 = vmatprep.subr.mxu0 %v27
  %172 = vmatpush1.msra.mxu0 %v26
  %173 = vmatprep.subr.mxu0 %v36
  %174 = vmatpush1.msra.mxu0 %v35
  %175 = vmatprep.subr.mxu0 %v45
  %176 = vmatpush1.msra.mxu0 %v44
  %177 = vmatprep.subr.mxu0 %v81
  %178 = vmatpush1.msra.mxu0 %v78
  %179 = vmatprep.subr.mxu0 0.0
  %180 = vmatpush1.msra.mxu0 0.0
  %181 = vmatprep.subr.mxu0 0.0
  %182 = vmatpush1.msra.mxu0 0.0
  %183 = vmatprep.subr.mxu0 0.0
  %184 = vmatpush1.msra.mxu0 0.0
  %185 = vmatprep.subr.mxu0 0.0
  %186 = vmatpush1.msra.mxu0 0.0
  %187 = vmatprep.subr.mxu0 0.0
  %188 = vmatpush1.msra.mxu0 0.0
  %189 = vmatprep.subr.mxu0 0.0
  %190 = vmatpush1.msra.mxu0 0.0
  %191 = vmatprep.subr.mxu0 0.0
  %192 = vmatpush1.msra.mxu0 0.0
  %193 = vmatprep.subr.mxu0 0.0
  %194 = vmatpush1.msra.mxu0 0.0
  %195 = vmatprep.subr.mxu0 0.0
  %196 = vmatpush1.msra.mxu0 0.0
  %197 = vmatprep.subr.mxu0 0.0
  %198 = vmatpush1.msra.mxu0 0.0
  %199 = vmatprep.subr.mxu0 0.0
  %200 = vmatpush1.msra.mxu0 0.0
  %201 = vmatprep.subr.mxu0 0.0
  %202 = vmatpush1.msra.mxu0 0.0
  %203 = vmatprep.subr.mxu0 0.0
  %204 = vmatpush1.msra.mxu0 0.0
  %205 = vmatprep.subr.mxu0 0.0
  %206 = vmatpush1.msra.mxu0 0.0
  %207 = vmatprep.subr.mxu0 0.0
  %208 = vmatpush1.msra.mxu0 0.0
  %209 = vmatprep.subr.mxu0 0.0
  %210 = vmatpush1.msra.mxu0 0.0
  %211 = vmatprep.subr.mxu0 0.0
  %212 = vmatpush1.msra.mxu0 0.0
  %213 = vmatprep.subr.mxu0 0.0
  %214 = vmatpush1.msra.mxu0 0.0
  %215 = vmatprep.subr.mxu0 0.0
  %216 = vmatpush1.msra.mxu0 0.0
  %217 = vmatprep.subr.mxu0 0.0
  %218 = vmatpush1.msra.mxu0 0.0
  %219 = vmatprep.subr.mxu0 0.0
  %220 = vmatpush1.msra.mxu0 0.0
  %221 = vmatprep.subr.mxu0 0.0
  %222 = vmatpush1.msra.mxu0 0.0
  %223 = vmatprep.subr.mxu0 0.0
  %224 = vmatpush1.msra.mxu0 0.0
  %225 = vmatprep.subr.mxu0 0.0
  %226 = vmatpush1.msra.mxu0 0.0
  %227 = vmatprep.subr.mxu0 0.0
  %228 = vmatpush1.msra.mxu0 0.0
  %229 = vmatprep.subr.mxu0 0.0
  %230 = vmatpush1.msra.mxu0 0.0
  %231 = vmatprep.subr.mxu0 0.0
  %232 = vmatpush1.msra.mxu0 0.0
  %233 = vmatprep.mubr.f32.mxu0 0.0
  %234 = vmatmul.mubr.f32.gmra.mrb[0].mxu0 %v68
  %v235 = vpop.f32.mrb[0].mxu0
  %v236 = vadd.f32 %v64, %v235
  %v237 = vpop.f32.mrb[0].mxu0
  %v238 = vadd.f32 %v64, %v237
  %239 = vdwg.mxu0
  %240 = vmatprep.subr.mxu0 %v20
  %241 = vmatpush1.msra.mxu0 %v19
  %242 = vmatprep.subr.mxu0 %v29
  %243 = vmatpush1.msra.mxu0 %v28
  %244 = vmatprep.subr.mxu0 %v38
  %245 = vmatpush1.msra.mxu0 %v37
  %246 = vmatprep.subr.mxu0 %v47
  %247 = vmatpush1.msra.mxu0 %v46
  %248 = vmatprep.subr.mxu0 %v87
  %249 = vmatpush1.msra.mxu0 %v84
  %250 = vmatprep.subr.mxu0 0.0
  %251 = vmatpush1.msra.mxu0 0.0
  %252 = vmatprep.subr.mxu0 0.0
  %253 = vmatpush1.msra.mxu0 0.0
  %254 = vmatprep.subr.mxu0 0.0
  %255 = vmatpush1.msra.mxu0 0.0
  %256 = vmatprep.subr.mxu0 0.0
  %257 = vmatpush1.msra.mxu0 0.0
  %258 = vmatprep.subr.mxu0 0.0
  %259 = vmatpush1.msra.mxu0 0.0
  %260 = vmatprep.subr.mxu0 0.0
  %261 = vmatpush1.msra.mxu0 0.0
  %262 = vmatprep.subr.mxu0 0.0
  %263 = vmatpush1.msra.mxu0 0.0
  %264 = vmatprep.subr.mxu0 0.0
  %265 = vmatpush1.msra.mxu0 0.0
  %266 = vmatprep.subr.mxu0 0.0
  %267 = vmatpush1.msra.mxu0 0.0
  %268 = vmatprep.subr.mxu0 0.0
  %269 = vmatpush1.msra.mxu0 0.0
  %270 = vmatprep.subr.mxu0 0.0
  %271 = vmatpush1.msra.mxu0 0.0
  %272 = vmatprep.subr.mxu0 0.0
  %273 = vmatpush1.msra.mxu0 0.0
  %274 = vmatprep.subr.mxu0 0.0
  %275 = vmatpush1.msra.mxu0 0.0
  %276 = vmatprep.subr.mxu0 0.0
  %277 = vmatpush1.msra.mxu0 0.0
  %278 = vmatprep.subr.mxu0 0.0
  %279 = vmatpush1.msra.mxu0 0.0
  %280 = vmatprep.subr.mxu0 0.0
  %281 = vmatpush1.msra.mxu0 0.0
  %282 = vmatprep.subr.mxu0 0.0
  %283 = vmatpush1.msra.mxu0 0.0
  %284 = vmatprep.subr.mxu0 0.0
  %285 = vmatpush1.msra.mxu0 0.0
  %286 = vmatprep.subr.mxu0 0.0
  %287 = vmatpush1.msra.mxu0 0.0
  %288 = vmatprep.subr.mxu0 0.0
  %289 = vmatpush1.msra.mxu0 0.0
  %290 = vmatprep.subr.mxu0 0.0
  %291 = vmatpush1.msra.mxu0 0.0
  %292 = vmatprep.subr.mxu0 0.0
  %293 = vmatpush1.msra.mxu0 0.0
  %294 = vmatprep.subr.mxu0 0.0
  %295 = vmatpush1.msra.mxu0 0.0
  %296 = vmatprep.subr.mxu0 0.0
  %297 = vmatpush1.msra.mxu0 0.0
  %298 = vmatprep.subr.mxu0 0.0
  %299 = vmatpush1.msra.mxu0 0.0
  %300 = vmatprep.subr.mxu0 0.0
  %301 = vmatpush1.msra.mxu0 0.0
  %302 = vmatprep.subr.mxu0 0.0
  %303 = vmatpush1.msra.mxu0 0.0
  %304 = vmatprep.mubr.f32.mxu0 0.0
  %305 = vmatmul.mubr.f32.gmra.mrb[0].mxu0 %v68
  %v306 = vpop.f32.mrb[0].mxu0
  %v307 = vadd.f32 %v64, %v306
  %v308 = vpop.f32.mrb[0].mxu0
  %v309 = vadd.f32 %v64, %v308
  %310 = vdwg.mxu0
  %311 = vmatprep.subr.mxu0 %v22
  %312 = vmatpush1.msra.mxu0 %v21
  %313 = vmatprep.subr.mxu0 %v31
  %314 = vmatpush1.msra.mxu0 %v30
  %315 = vmatprep.subr.mxu0 %v40
  %316 = vmatpush1.msra.mxu0 %v39
  %317 = vmatprep.subr.mxu0 %v49
  %318 = vmatpush1.msra.mxu0 %v48
  %319 = vmatprep.subr.mxu0 %v93
  %320 = vmatpush1.msra.mxu0 %v90
  %321 = vmatprep.subr.mxu0 0.0
  %322 = vmatpush1.msra.mxu0 0.0
  %323 = vmatprep.subr.mxu0 0.0
  %324 = vmatpush1.msra.mxu0 0.0
  %325 = vmatprep.subr.mxu0 0.0
  %326 = vmatpush1.msra.mxu0 0.0
  %327 = vmatprep.subr.mxu0 0.0
  %328 = vmatpush1.msra.mxu0 0.0
  %329 = vmatprep.subr.mxu0 0.0
  %330 = vmatpush1.msra.mxu0 0.0
  %331 = vmatprep.subr.mxu0 0.0
  %332 = vmatpush1.msra.mxu0 0.0
  %333 = vmatprep.subr.mxu0 0.0
  %334 = vmatpush1.msra.mxu0 0.0
  %335 = vmatprep.subr.mxu0 0.0
  %336 = vmatpush1.msra.mxu0 0.0
  %337 = vmatprep.subr.mxu0 0.0
  %338 = vmatpush1.msra.mxu0 0.0
  %339 = vmatprep.subr.mxu0 0.0
  %340 = vmatpush1.msra.mxu0 0.0
  %341 = vmatprep.subr.mxu0 0.0
  %342 = vmatpush1.msra.mxu0 0.0
  %343 = vmatprep.subr.mxu0 0.0
  %344 = vmatpush1.msra.mxu0 0.0
  %345 = vmatprep.subr.mxu0 0.0
  %346 = vmatpush1.msra.mxu0 0.0
  %347 = vmatprep.subr.mxu0 0.0
  %348 = vmatpush1.msra.mxu0 0.0
  %349 = vmatprep.subr.mxu0 0.0
  %350 = vmatpush1.msra.mxu0 0.0
  %351 = vmatprep.subr.mxu0 0.0
  %352 = vmatpush1.msra.mxu0 0.0
  %353 = vmatprep.subr.mxu0 0.0
  %354 = vmatpush1.msra.mxu0 0.0
  %355 = vmatprep.subr.mxu0 0.0
  %356 = vmatpush1.msra.mxu0 0.0
  %357 = vmatprep.subr.mxu0 0.0
  %358 = vmatpush1.msra.mxu0 0.0
  %359 = vmatprep.subr.mxu0 0.0
  %360 = vmatpush1.msra.mxu0 0.0
  %361 = vmatprep.subr.mxu0 0.0
  %362 = vmatpush1.msra.mxu0 0.0
  %363 = vmatprep.subr.mxu0 0.0
  %364 = vmatpush1.msra.mxu0 0.0
  %365 = vmatprep.subr.mxu0 0.0
  %366 = vmatpush1.msra.mxu0 0.0
  %367 = vmatprep.subr.mxu0 0.0
  %368 = vmatpush1.msra.mxu0 0.0
  %369 = vmatprep.subr.mxu0 0.0
  %370 = vmatpush1.msra.mxu0 0.0
  %371 = vmatprep.subr.mxu0 0.0
  %372 = vmatpush1.msra.mxu0 0.0
  %373 = vmatprep.subr.mxu0 0.0
  %374 = vmatpush1.msra.mxu0 0.0
  %375 = vmatprep.mubr.f32.mxu0 0.0
  %376 = vmatmul.mubr.f32.gmra.mrb[0].mxu0 %v68
  %v377 = vpop.f32.mrb[0].mxu0
  %v378 = vadd.f32 %v64, %v377
  %v379 = vpop.f32.mrb[0].mxu0
  %v380 = vadd.f32 %v64, %v379
  %381 = vdwg.mxu0
  %382 = vmatprep.subr.mxu0 0.0
  %383 = vmatpush1.msra.mxu0 %v23
  %384 = vmatprep.subr.mxu0 0.0
  %385 = vmatpush1.msra.mxu0 %v32
  %386 = vmatprep.subr.mxu0 0.0
  %387 = vmatpush1.msra.mxu0 %v41
  %388 = vmatprep.subr.mxu0 0.0
  %389 = vmatpush1.msra.mxu0 %v50
  %390 = vmatprep.subr.mxu0 0.0
  %391 = vmatpush1.msra.mxu0 %v96
  %392 = vmatprep.subr.mxu0 0.0
  %393 = vmatpush1.msra.mxu0 0.0
  %394 = vmatprep.subr.mxu0 0.0
  %395 = vmatpush1.msra.mxu0 0.0
  %396 = vmatprep.subr.mxu0 0.0
  %397 = vmatpush1.msra.mxu0 0.0
  %398 = vmatprep.subr.mxu0 0.0
  %399 = vmatpush1.msra.mxu0 0.0
  %400 = vmatprep.subr.mxu0 0.0
  %401 = vmatpush1.msra.mxu0 0.0
  %402 = vmatprep.subr.mxu0 0.0
  %403 = vmatpush1.msra.mxu0 0.0
  %404 = vmatprep.subr.mxu0 0.0
  %405 = vmatpush1.msra.mxu0 0.0
  %406 = vmatprep.subr.mxu0 0.0
  %407 = vmatpush1.msra.mxu0 0.0
  %408 = vmatprep.subr.mxu0 0.0
  %409 = vmatpush1.msra.mxu0 0.0
  %410 = vmatprep.subr.mxu0 0.0
  %411 = vmatpush1.msra.mxu0 0.0
  %412 = vmatprep.subr.mxu0 0.0
  %413 = vmatpush1.msra.mxu0 0.0
  %414 = vmatprep.subr.mxu0 0.0
  %415 = vmatpush1.msra.mxu0 0.0
  %416 = vmatprep.subr.mxu0 0.0
  %417 = vmatpush1.msra.mxu0 0.0
  %418 = vmatprep.subr.mxu0 0.0
  %419 = vmatpush1.msra.mxu0 0.0
  %420 = vmatprep.subr.mxu0 0.0
  %421 = vmatpush1.msra.mxu0 0.0
  %422 = vmatprep.subr.mxu0 0.0
  %423 = vmatpush1.msra.mxu0 0.0
  %424 = vmatprep.subr.mxu0 0.0
  %425 = vmatpush1.msra.mxu0 0.0
  %426 = vmatprep.subr.mxu0 0.0
  %427 = vmatpush1.msra.mxu0 0.0
  %428 = vmatprep.subr.mxu0 0.0
  %429 = vmatpush1.msra.mxu0 0.0
  %430 = vmatprep.subr.mxu0 0.0
  %431 = vmatpush1.msra.mxu0 0.0
  %432 = vmatprep.subr.mxu0 0.0
  %433 = vmatpush1.msra.mxu0 0.0
  %434 = vmatprep.subr.mxu0 0.0
  %435 = vmatpush1.msra.mxu0 0.0
  %436 = vmatprep.subr.mxu0 0.0
  %437 = vmatpush1.msra.mxu0 0.0
  %438 = vmatprep.subr.mxu0 0.0
  %439 = vmatpush1.msra.mxu0 0.0
  %440 = vmatprep.subr.mxu0 0.0
  %441 = vmatpush1.msra.mxu0 0.0
  %442 = vmatprep.subr.mxu0 0.0
  %443 = vmatpush1.msra.mxu0 0.0
  %444 = vmatprep.subr.mxu0 0.0
  %445 = vmatpush1.msra.mxu0 0.0
  %446 = vmatprep.mubr.f32.mxu0 0.0
  %447 = vmatmul.mubr.f32.gmra.mrb[0].mxu0 %v68
  %v448 = vpop.f32.mrb[0].mxu0
  %v449 = vadd.f32 %v64, %v448
  %v450 = vpop.f32.mrb[0].mxu0
  %451 = vdwg.mxu0
  %v452 = vmax.f32 %v165, 0.0
  %v453 = vmax.f32 %v167, 0.0
  %v454 = vmax.f32 %v236, 0.0
  %v455 = vmax.f32 %v238, 0.0
  %v456 = vmax.f32 %v307, 0.0
  %v457 = vmax.f32 %v309, 0.0
  %v458 = vmax.f32 %v378, 0.0
  %v459 = vmax.f32 %v380, 0.0
  %v460 = vmax.f32 %v449, 0.0
  %461 = vst [vmem:[%s3] sm:$0xff] %v452
  %462 = vst [vmem:[%s3 + $0x8] sm:$0xff] %v453
  %463 = vst [vmem:[%s3 + $0x10] sm:$0xff] %v454
  %464 = vst [vmem:[%s3 + $0x18] sm:$0xff] %v455
  %465 = vst [vmem:[%s3 + $0x20] sm:$0xff] %v456
  %466 = vst [vmem:[%s3 + $0x28] sm:$0xff] %v457
  %467 = vst [vmem:[%s3 + $0x30] sm:$0xff] %v458
  %468 = vst [vmem:[%s3 + $0x38] sm:$0xff] %v459
  %vm469 = vcmask 261120
  %470 = vst.msk [vmem:[%s3 + $0x40] sm:$0xff] %vm469, %v460
  // Predicated region
  $region14: #{_lambda_.8} parent=0 // pred_check
    _
  $region15: #{_lambda_.8} parent=0 // pred_check_branch
    %472 = sbr.rel (0) target = $region17
  $region16: #{_lambda_.8} parent=0 // pred_region
    _
  $region17: #{_lambda_.8} parent=0 // pred_fallthru
    _
  // Predicated region
  $region18: #{_lambda_.8} parent=0 // pred_check
    _
  $region19: #{_lambda_.8} parent=0 // pred_check_branch
    %474 = sbr.rel (0) target = $region21
  $region20: #{_lambda_.8} parent=0 // pred_region
    _
  $region21: #{_lambda_.8} parent=0 // pred_fallthru
    _

// kernel: _lambda_.9
$region0: #{_lambda_.9}
  #allocation0 [shape = 'u32[]', space=smem, size = 0x4, offset = 0x4, fixed_abs, tag = 'smem constant byte address 0x4 - core index']
  #allocation1 [shape = 'u32[144,128]{1,0:T(1,128)}', space=vmem, size = 0x12000, scoped, tag = 'internal scratch']
  %s0 = inlined_call_operand.vmem [shape: f32[12,72], index: 0, kind: input, shape index: {}]
  %s1 = inlined_call_operand.vmem [shape: f32[72,288], index: 1, kind: input, shape index: {}]
  %s2 = inlined_call_operand.vmem [shape: f32[12,1], index: 2, kind: input, shape index: {}]
  %s3 = inlined_call_operand.vmem [shape: f32[12,288], index: 3, kind: output, shape index: {}]
  %s4 = sld [smem:[#allocation0]]
  $region22: #{_lambda_.9} parent=0
    _
  %s6 = ssub.s32 1, %s4
  %s7 = scalar_select 0, %s6, %s4
  // Predicated region
  $region2: #{_lambda_.9} parent=0 // pred_check
    _
  $region3: #{_lambda_.9} parent=0 // pred_check_branch
    %9 = sbr.rel (0) target = $region5
  $region4: #{_lambda_.9} parent=0 // pred_region
    _
  $region5: #{_lambda_.9} parent=0 // pred_fallthru
    _
  // Predicated region
  $region6: #{_lambda_.9} parent=0 // pred_check
    _
  $region7: #{_lambda_.9} parent=0 // pred_check_branch
    %11 = sbr.rel (0) target = $region9
  $region8: #{_lambda_.9} parent=0 // pred_region
    _
  $region9: #{_lambda_.9} parent=0 // pred_fallthru
    _
  // Predicated region
  $region10: #{_lambda_.9} parent=0 // pred_check
    _
  $region11: #{_lambda_.9} parent=0 // pred_check_branch
    %13 = sbr.rel (0) target = $region13
  $region12: #{_lambda_.9} parent=0 // pred_region
    _
  $region13: #{_lambda_.9} parent=0 // pred_fallthru
    _
  %v14 = vld [vmem:[%s0] sm:$0xff]
  %v15 = vld [vmem:[%s0 + $0x8] sm:$0xf]
  %v16 = vld [vmem:[%s1] sm:$0xff]
  %v17 = vld [vmem:[%s1 + $0x8] sm:$0xff]
  %v18 = vld [vmem:[%s1 + $0x10] sm:$0xff]
  %v19 = vld [vmem:[%s1 + $0x18] sm:$0xff]
  %v20 = vld [vmem:[%s1 + $0x20] sm:$0xff]
  %v21 = vld [vmem:[%s1 + $0x28] sm:$0xff]
  %v22 = vld [vmem:[%s1 + $0x30] sm:$0xff]
  %v23 = vld [vmem:[%s1 + $0x38] sm:$0xff]
  %v24 = vld [vmem:[%s1 + $0x40] sm:$0xff]
  %v25 = vld [vmem:[%s1 + $0x48] sm:$0xff]
  %v26 = vld [vmem:[%s1 + $0x50] sm:$0xff]
  %v27 = vld [vmem:[%s1 + $0x58] sm:$0xff]
  %v28 = vld [vmem:[%s1 + $0x60] sm:$0xff]
  %v29 = vld [vmem:[%s1 + $0x68] sm:$0xff]
  %v30 = vld [vmem:[%s1 + $0x70] sm:$0xff]
  %v31 = vld [vmem:[%s1 + $0x78] sm:$0xff]
  %v32 = vld [vmem:[%s1 + $0x80] sm:$0xff]
  %v33 = vld [vmem:[%s1 + $0x88] sm:$0xff]
  %v34 = vld [vmem:[%s1 + $0x90] sm:$0xff]
  %v35 = vld [vmem:[%s1 + $0x98] sm:$0xff]
  %v36 = vld [vmem:[%s1 + $0xa0] sm:$0xff]
  %v37 = vld [vmem:[%s1 + $0xa8] sm:$0xff]
  %v38 = vld [vmem:[%s1 + $0xb0] sm:$0xff]
  %v39 = vld [vmem:[%s1 + $0xb8] sm:$0xff]
  %v40 = vld [vmem:[%s1 + $0xc0] sm:$0xff]
  %v41 = vld [vmem:[%s1 + $0xc8] sm:$0xff]
  %v42 = vld [vmem:[%s1 + $0xd0] sm:$0xff]
  %v43 = vld [vmem:[%s2] sm:$0xff]
  %v44 = vld [vmem:[%s2 + $0x8] sm:$0xf]
  %46 = vset.pattern.permute.xlu0 0
  %47 = vperm.xlu0 %46, %v43
  %v48 = vpop.permute.xlu0 %47
  %51 = vset.pattern.permute.xlu0 0
  %52 = vperm.xlu0 %51, %v44
  %v53 = vpop.permute.xlu0 %52
  %vm55 = vcmask 588800
  %v57 = vsel %vm55, %v14, 0
  %v60 = vsel %vm55, %v15, 0
  %62 = vmatprep.subr.mxu0 %v17
  %63 = vmatpush1.msra.mxu0 %v16
  %64 = vmatprep.subr.mxu0 %v20
  %65 = vmatpush1.msra.mxu0 %v19
  %66 = vmatprep.subr.mxu0 %v23
  %67 = vmatpush1.msra.mxu0 %v22
  %68 = vmatprep.subr.mxu0 %v26
  %69 = vmatpush1.msra.mxu0 %v25
  %70 = vmatprep.subr.mxu0 %v29
  %71 = vmatpush1.msra.mxu0 %v28
  %72 = vmatprep.subr.mxu0 %v32
  %73 = vmatpush1.msra.mxu0 %v31
  %74 = vmatprep.subr.mxu0 %v35
  %75 = vmatpush1.msra.mxu0 %v34
  %76 = vmatprep.subr.mxu0 %v38
  %77 = vmatpush1.msra.mxu0 %v37
  %78 = vmatprep.subr.mxu0 %v41
  %79 = vmatpush1.msra.mxu0 %v40
  %80 = vmatprep.subr.mxu0 0.0
  %81 = vmatpush1.msra.mxu0 0.0
  %82 = vmatprep.subr.mxu0 0.0
  %83 = vmatpush1.msra.mxu0 0.0
  %84 = vmatprep.subr.mxu0 0.0
  %85 = vmatpush1.msra.mxu0 0.0
  %86 = vmatprep.subr.mxu0 0.0
  %87 = vmatpush1.msra.mxu0 0.0
  %88 = vmatprep.subr.mxu0 0.0
  %89 = vmatpush1.msra.mxu0 0.0
  %90 = vmatprep.subr.mxu0 0.0
  %91 = vmatpush1.msra.mxu0 0.0
  %92 = vmatprep.subr.mxu0 0.0
  %93 = vmatpush1.msra.mxu0 0.0
  %94 = vmatprep.subr.mxu0 0.0
  %95 = vmatpush1.msra.mxu0 0.0
  %96 = vmatprep.subr.mxu0 0.0
  %97 = vmatpush1.msra.mxu0 0.0
  %98 = vmatprep.subr.mxu0 0.0
  %99 = vmatpush1.msra.mxu0 0.0
  %100 = vmatprep.subr.mxu0 0.0
  %101 = vmatpush1.msra.mxu0 0.0
  %102 = vmatprep.subr.mxu0 0.0
  %103 = vmatpush1.msra.mxu0 0.0
  %104 = vmatprep.subr.mxu0 0.0
  %105 = vmatpush1.msra.mxu0 0.0
  %106 = vmatprep.subr.mxu0 0.0
  %107 = vmatpush1.msra.mxu0 0.0
  %108 = vmatprep.subr.mxu0 0.0
  %109 = vmatpush1.msra.mxu0 0.0
  %110 = vmatprep.subr.mxu0 0.0
  %111 = vmatpush1.msra.mxu0 0.0
  %112 = vmatprep.subr.mxu0 0.0
  %113 = vmatpush1.msra.mxu0 0.0
  %114 = vmatprep.subr.mxu0 0.0
  %115 = vmatpush1.msra.mxu0 0.0
  %116 = vmatprep.subr.mxu0 0.0
  %117 = vmatpush1.msra.mxu0 0.0
  %118 = vmatprep.subr.mxu0 0.0
  %119 = vmatpush1.msra.mxu0 0.0
  %120 = vmatprep.subr.mxu0 0.0
  %121 = vmatpush1.msra.mxu0 0.0
  %122 = vmatprep.subr.mxu0 0.0
  %123 = vmatpush1.msra.mxu0 0.0
  %124 = vmatprep.subr.mxu0 0.0
  %125 = vmatpush1.msra.mxu0 0.0
  %126 = vmatprep.mubr.f32.mxu0 0.0
  %127 = vmatmul.mubr.f32.gmra.mrb[0].mxu0 %v57
  %v128 = vpop.f32.mrb[0].mxu0
  %v129 = vadd.f32 %v48, %v128
  %v130 = vpop.f32.mrb[0].mxu0
  %v131 = vadd.f32 %v48, %v130
  %132 = vmatprep.mubr.f32.mxu0 0.0
  %133 = vmatmul.mubr.f32.gmra.mrb[0].mxu0 %v60
  %v134 = vpop.f32.mrb[0].mxu0
  %v135 = vadd.f32 %v53, %v134
  %v136 = vpop.f32.mrb[0].mxu0
  %v137 = vadd.f32 %v53, %v136
  %138 = vdwg.mxu0
  %139 = vmatprep.subr.mxu0 0.0
  %140 = vmatpush1.msra.mxu0 %v18
  %141 = vmatprep.subr.mxu0 0.0
  %142 = vmatpush1.msra.mxu0 %v21
  %143 = vmatprep.subr.mxu0 0.0
  %144 = vmatpush1.msra.mxu0 %v24
  %145 = vmatprep.subr.mxu0 0.0
  %146 = vmatpush1.msra.mxu0 %v27
  %147 = vmatprep.subr.mxu0 0.0
  %148 = vmatpush1.msra.mxu0 %v30
  %149 = vmatprep.subr.mxu0 0.0
  %150 = vmatpush1.msra.mxu0 %v33
  %151 = vmatprep.subr.mxu0 0.0
  %152 = vmatpush1.msra.mxu0 %v36
  %153 = vmatprep.subr.mxu0 0.0
  %154 = vmatpush1.msra.mxu0 %v39
  %155 = vmatprep.subr.mxu0 0.0
  %156 = vmatpush1.msra.mxu0 %v42
  %157 = vmatprep.subr.mxu0 0.0
  %158 = vmatpush1.msra.mxu0 0.0
  %159 = vmatprep.subr.mxu0 0.0
  %160 = vmatpush1.msra.mxu0 0.0
  %161 = vmatprep.subr.mxu0 0.0
  %162 = vmatpush1.msra.mxu0 0.0
  %163 = vmatprep.subr.mxu0 0.0
  %164 = vmatpush1.msra.mxu0 0.0
  %165 = vmatprep.subr.mxu0 0.0
  %166 = vmatpush1.msra.mxu0 0.0
  %167 = vmatprep.subr.mxu0 0.0
  %168 = vmatpush1.msra.mxu0 0.0
  %169 = vmatprep.subr.mxu0 0.0
  %170 = vmatpush1.msra.mxu0 0.0
  %171 = vmatprep.subr.mxu0 0.0
  %172 = vmatpush1.msra.mxu0 0.0
  %173 = vmatprep.subr.mxu0 0.0
  %174 = vmatpush1.msra.mxu0 0.0
  %175 = vmatprep.subr.mxu0 0.0
  %176 = vmatpush1.msra.mxu0 0.0
  %177 = vmatprep.subr.mxu0 0.0
  %178 = vmatpush1.msra.mxu0 0.0
  %179 = vmatprep.subr.mxu0 0.0
  %180 = vmatpush1.msra.mxu0 0.0
  %181 = vmatprep.subr.mxu0 0.0
  %182 = vmatpush1.msra.mxu0 0.0
  %183 = vmatprep.subr.mxu0 0.0
  %184 = vmatpush1.msra.mxu0 0.0
  %185 = vmatprep.subr.mxu0 0.0
  %186 = vmatpush1.msra.mxu0 0.0
  %187 = vmatprep.subr.mxu0 0.0
  %188 = vmatpush1.msra.mxu0 0.0
  %189 = vmatprep.subr.mxu0 0.0
  %190 = vmatpush1.msra.mxu0 0.0
  %191 = vmatprep.subr.mxu0 0.0
  %192 = vmatpush1.msra.mxu0 0.0
  %193 = vmatprep.subr.mxu0 0.0
  %194 = vmatpush1.msra.mxu0 0.0
  %195 = vmatprep.subr.mxu0 0.0
  %196 = vmatpush1.msra.mxu0 0.0
  %197 = vmatprep.subr.mxu0 0.0
  %198 = vmatpush1.msra.mxu0 0.0
  %199 = vmatprep.subr.mxu0 0.0
  %200 = vmatpush1.msra.mxu0 0.0
  %201 = vmatprep.subr.mxu0 0.0
  %202 = vmatpush1.msra.mxu0 0.0
  %203 = vmatprep.mubr.f32.mxu0 0.0
  %204 = vmatmul.mubr.f32.gmra.mrb[0].mxu0 %v57
  %v205 = vpop.f32.mrb[0].mxu0
  %v206 = vadd.f32 %v48, %v205
  %v207 = vpop.f32.mrb[0].mxu0
  %208 = vmatprep.mubr.f32.mxu0 0.0
  %209 = vmatmul.mubr.f32.gmra.mrb[0].mxu0 %v60
  %v210 = vpop.f32.mrb[0].mxu0
  %v211 = vadd.f32 %v53, %v210
  %v212 = vpop.f32.mrb[0].mxu0
  %213 = vdwg.mxu0
  %v214 = vmax.f32 %v129, 0.0
  %v215 = vmax.f32 %v131, 0.0
  %v216 = vmax.f32 %v206, 0.0
  %v217 = vmax.f32 %v135, 0.0
  %v218 = vmax.f32 %v137, 0.0
  %v219 = vmax.f32 %v211, 0.0
  %220 = vst [vmem:[%s3] sm:$0xff] %v214
  %221 = vst [vmem:[%s3 + $0x8] sm:$0xff] %v215
  %vm222 = vcmask 261120
  %223 = vst.msk [vmem:[%s3 + $0x10] sm:$0xff] %vm222, %v216
  %224 = vst [vmem:[%s3 + $0x18] sm:$0xf] %v217
  %225 = vst [vmem:[%s3 + $0x20] sm:$0xf] %v218
  %vm226 = vcmask 257024
  %227 = vst.msk [vmem:[%s3 + $0x28] sm:$0xf] %vm226, %v219
  // Predicated region
  $region14: #{_lambda_.9} parent=0 // pred_check
    _
  $region15: #{_lambda_.9} parent=0 // pred_check_branch
    %229 = sbr.rel (0) target = $region17
  $region16: #{_lambda_.9} parent=0 // pred_region
    _
  $region17: #{_lambda_.9} parent=0 // pred_fallthru
    _
  // Predicated region
  $region18: #{_lambda_.9} parent=0 // pred_check
    _
  $region19: #{_lambda_.9} parent=0 // pred_check_branch
    %231 = sbr.rel (0) target = $region21
  $region20: #{_lambda_.9} parent=0 // pred_region
    _
  $region21: #{_lambda_.9} parent=0 // pred_fallthru
    _

// kernel: _lambda_.10
$region0: #{_lambda_.10}
  #allocation0 [shape = 'u32[]', space=smem, size = 0x4, offset = 0x4, fixed_abs, tag = 'smem constant byte address 0x4 - core index']
  #allocation1 [shape = 'u32[144,128]{1,0:T(1,128)}', space=vmem, size = 0x12000, scoped, tag = 'internal scratch']
  #allocation2 [shape = 'f32[8,432]{1,0:T(8,128)}', space=vmem, size = 0x4000, scoped, tag = 'scratch operand']
  %s0 = inlined_call_operand.vmem [shape: f32[8,8], index: 0, kind: input, shape index: {}]
  %s1 = inlined_call_operand.vmem [shape: f32[8,432], index: 1, kind: input, shape index: {}]
  %s2 = inlined_call_operand.vmem [shape: f32[8,432], index: 2, kind: output, shape index: {}]
  %s3 = sld [smem:[#allocation0]]
  $region26: #{_lambda_.10} parent=0
    _
  %s5 = ssub.s32 1, %s3
  %s6 = scalar_select 0, %s5, %s3
  // Predicated region
  $region2: #{_lambda_.10} parent=0 // pred_check
    _
  $region3: #{_lambda_.10} parent=0 // pred_check_branch
    %8 = sbr.rel (0) target = $region5
  $region4: #{_lambda_.10} parent=0 // pred_region
    _
  $region5: #{_lambda_.10} parent=0 // pred_fallthru
    _
  // Predicated region
  $region6: #{_lambda_.10} parent=0 // pred_check
    _
  $region7: #{_lambda_.10} parent=0 // pred_check_branch
    %10 = sbr.rel (0) target = $region9
  $region8: #{_lambda_.10} parent=0 // pred_region
    _
  $region9: #{_lambda_.10} parent=0 // pred_fallthru
    _
  %p11 = scmp.eq.s32.totalorder 0, 0
  // Predicated region
  $region10: #{_lambda_.10} parent=0 // pred_check
    %p12 = pneg %p11
  $region11: #{_lambda_.10} parent=0 // pred_check_branch
    %14 = sbr.rel (%p12) target = $region13
  $region12: #{_lambda_.10} parent=0 // pred_region
    %15 = vst [vmem:[#allocation2] sm:$0xff] 0.0
    %16 = vst [vmem:[#allocation2 + $0x8] sm:$0xff] 0.0
    %17 = vst [vmem:[#allocation2 + $0x10] sm:$0xff] 0.0
    %vm18 = vcmask 392192
    %19 = vst.msk [vmem:[#allocation2 + $0x18] sm:$0xff] %vm18, 0.0
  $region13: #{_lambda_.10} parent=0 // pred_fallthru
    _
  %v20 = vld [vmem:[#allocation2] sm:$0xff]
  %v21 = vld [vmem:[#allocation2 + $0x8] sm:$0xff]
  %v22 = vld [vmem:[#allocation2 + $0x10] sm:$0xff]
  %v23 = vld [vmem:[#allocation2 + $0x18] sm:$0xff]
  %v24 = vld [vmem:[%s0] sm:$0xff]
  %v25 = vld [vmem:[%s1] sm:$0xff]
  %v26 = vld [vmem:[%s1 + $0x8] sm:$0xff]
  %v27 = vld [vmem:[%s1 + $0x10] sm:$0xff]
  %v28 = vld [vmem:[%s1 + $0x18] sm:$0xff]
  %vm29 = vcmask 64512
  %v31 = vsel %vm29, %v24, 0
  %33 = vmatprep.subr.mxu0 %v26
  %34 = vmatpush1.msra.mxu0 %v25
  %35 = vmatprep.subr.mxu0 0.0
  %36 = vmatpush1.msra.mxu0 0.0
  %37 = vmatprep.subr.mxu0 0.0
  %38 = vmatpush1.msra.mxu0 0.0
  %39 = vmatprep.subr.mxu0 0.0
  %40 = vmatpush1.msra.mxu0 0.0
  %41 = vmatprep.subr.mxu0 0.0
  %42 = vmatpush1.msra.mxu0 0.0
  %43 = vmatprep.subr.mxu0 0.0
  %44 = vmatpush1.msra.mxu0 0.0
  %45 = vmatprep.subr.mxu0 0.0
  %46 = vmatpush1.msra.mxu0 0.0
  %47 = vmatprep.subr.mxu0 0.0
  %48 = vmatpush1.msra.mxu0 0.0
  %49 = vmatprep.subr.mxu0 0.0
  %50 = vmatpush1.msra.mxu0 0.0
  %51 = vmatprep.subr.mxu0 0.0
  %52 = vmatpush1.msra.mxu0 0.0
  %53 = vmatprep.subr.mxu0 0.0
  %54 = vmatpush1.msra.mxu0 0.0
  %55 = vmatprep.subr.mxu0 0.0
  %56 = vmatpush1.msra.mxu0 0.0
  %57 = vmatprep.subr.mxu0 0.0
  %58 = vmatpush1.msra.mxu0 0.0
  %59 = vmatprep.subr.mxu0 0.0
  %60 = vmatpush1.msra.mxu0 0.0
  %61 = vmatprep.subr.mxu0 0.0
  %62 = vmatpush1.msra.mxu0 0.0
  %63 = vmatprep.subr.mxu0 0.0
  %64 = vmatpush1.msra.mxu0 0.0
  %65 = vmatprep.subr.mxu0 0.0
  %66 = vmatpush1.msra.mxu0 0.0
  %67 = vmatprep.subr.mxu0 0.0
  %68 = vmatpush1.msra.mxu0 0.0
  %69 = vmatprep.subr.mxu0 0.0
  %70 = vmatpush1.msra.mxu0 0.0
  %71 = vmatprep.subr.mxu0 0.0
  %72 = vmatpush1.msra.mxu0 0.0
  %73 = vmatprep.subr.mxu0 0.0
  %74 = vmatpush1.msra.mxu0 0.0
  %75 = vmatprep.subr.mxu0 0.0
  %76 = vmatpush1.msra.mxu0 0.0
  %77 = vmatprep.subr.mxu0 0.0
  %78 = vmatpush1.msra.mxu0 0.0
  %79 = vmatprep.subr.mxu0 0.0
  %80 = vmatpush1.msra.mxu0 0.0
  %81 = vmatprep.subr.mxu0 0.0
  %82 = vmatpush1.msra.mxu0 0.0
  %83 = vmatprep.subr.mxu0 0.0
  %84 = vmatpush1.msra.mxu0 0.0
  %85 = vmatprep.subr.mxu0 0.0
  %86 = vmatpush1.msra.mxu0 0.0
  %87 = vmatprep.subr.mxu0 0.0
  %88 = vmatpush1.msra.mxu0 0.0
  %89 = vmatprep.subr.mxu0 0.0
  %90 = vmatpush1.msra.mxu0 0.0
  %91 = vmatprep.subr.mxu0 0.0
  %92 = vmatpush1.msra.mxu0 0.0
  %93 = vmatprep.subr.mxu0 0.0
  %94 = vmatpush1.msra.mxu0 0.0
  %95 = vmatprep.subr.mxu0 0.0
  %96 = vmatpush1.msra.mxu0 0.0
  %97 = vmatprep.mubr.f32.mxu0 0.0
  %98 = vmatmul.mubr.f32.gmra.mrb[0].mxu0 %v31
  %v99 = vpop.f32.mrb[0].mxu0
  %v100 = vadd.f32 0.0, %v99
  %v101 = vpop.f32.mrb[0].mxu0
  %v102 = vadd.f32 0.0, %v101
  %103 = vdwg.mxu0
  %104 = vmatprep.subr.mxu0 %v28
  %105 = vmatpush1.msra.mxu0 %v27
  %106 = vmatprep.subr.mxu0 0.0
  %107 = vmatpush1.msra.mxu0 0.0
  %108 = vmatprep.subr.mxu0 0.0
  %109 = vmatpush1.msra.mxu0 0.0
  %110 = vmatprep.subr.mxu0 0.0
  %111 = vmatpush1.msra.mxu0 0.0
  %112 = vmatprep.subr.mxu0 0.0
  %113 = vmatpush1.msra.mxu0 0.0
  %114 = vmatprep.subr.mxu0 0.0
  %115 = vmatpush1.msra.mxu0 0.0
  %116 = vmatprep.subr.mxu0 0.0
  %117 = vmatpush1.msra.mxu0 0.0
  %118 = vmatprep.subr.mxu0 0.0
  %119 = vmatpush1.msra.mxu0 0.0
  %120 = vmatprep.subr.mxu0 0.0
  %121 = vmatpush1.msra.mxu0 0.0
  %122 = vmatprep.subr.mxu0 0.0
  %123 = vmatpush1.msra.mxu0 0.0
  %124 = vmatprep.subr.mxu0 0.0
  %125 = vmatpush1.msra.mxu0 0.0
  %126 = vmatprep.subr.mxu0 0.0
  %127 = vmatpush1.msra.mxu0 0.0
  %128 = vmatprep.subr.mxu0 0.0
  %129 = vmatpush1.msra.mxu0 0.0
  %130 = vmatprep.subr.mxu0 0.0
  %131 = vmatpush1.msra.mxu0 0.0
  %132 = vmatprep.subr.mxu0 0.0
  %133 = vmatpush1.msra.mxu0 0.0
  %134 = vmatprep.subr.mxu0 0.0
  %135 = vmatpush1.msra.mxu0 0.0
  %136 = vmatprep.subr.mxu0 0.0
  %137 = vmatpush1.msra.mxu0 0.0
  %138 = vmatprep.subr.mxu0 0.0
  %139 = vmatpush1.msra.mxu0 0.0
  %140 = vmatprep.subr.mxu0 0.0
  %141 = vmatpush1.msra.mxu0 0.0
  %142 = vmatprep.subr.mxu0 0.0
  %143 = vmatpush1.msra.mxu0 0.0
  %144 = vmatprep.subr.mxu0 0.0
  %145 = vmatpush1.msra.mxu0 0.0
  %146 = vmatprep.subr.mxu0 0.0
  %147 = vmatpush1.msra.mxu0 0.0
  %148 = vmatprep.subr.mxu0 0.0
  %149 = vmatpush1.msra.mxu0 0.0
  %150 = vmatprep.subr.mxu0 0.0
  %151 = vmatpush1.msra.mxu0 0.0
  %152 = vmatprep.subr.mxu0 0.0
  %153 = vmatpush1.msra.mxu0 0.0
  %154 = vmatprep.subr.mxu0 0.0
  %155 = vmatpush1.msra.mxu0 0.0
  %156 = vmatprep.subr.mxu0 0.0
  %157 = vmatpush1.msra.mxu0 0.0
  %158 = vmatprep.subr.mxu0 0.0
  %159 = vmatpush1.msra.mxu0 0.0
  %160 = vmatprep.subr.mxu0 0.0
  %161 = vmatpush1.msra.mxu0 0.0
  %162 = vmatprep.subr.mxu0 0.0
  %163 = vmatpush1.msra.mxu0 0.0
  %164 = vmatprep.subr.mxu0 0.0
  %165 = vmatpush1.msra.mxu0 0.0
  %166 = vmatprep.subr.mxu0 0.0
  %167 = vmatpush1.msra.mxu0 0.0
  %168 = vmatprep.mubr.f32.mxu0 0.0
  %169 = vmatmul.mubr.f32.gmra.mrb[0].mxu0 %v31
  %v170 = vpop.f32.mrb[0].mxu0
  %v171 = vadd.f32 0.0, %v170
  %v172 = vpop.f32.mrb[0].mxu0
  %v173 = vadd.f32 0.0, %v172
  %174 = vdwg.mxu0
  %v175 = vadd.f32 %v20, %v100
  %v176 = vadd.f32 %v21, %v102
  %v177 = vadd.f32 %v22, %v171
  %v178 = vadd.f32 %v23, %v173
  %179 = vst [vmem:[#allocation2] sm:$0xff] %v175
  %180 = vst [vmem:[#allocation2 + $0x8] sm:$0xff] %v176
  %181 = vst [vmem:[#allocation2 + $0x10] sm:$0xff] %v177
  %vm182 = vcmask 392192
  %183 = vst.msk [vmem:[#allocation2 + $0x18] sm:$0xff] %vm182, %v178
  // Predicated region
  $region14: #{_lambda_.10} parent=0 // pred_check
    %p184 = pneg %p11
  $region15: #{_lambda_.10} parent=0 // pred_check_branch
    %186 = sbr.rel (%p184) target = $region17
  $region16: #{_lambda_.10} parent=0 // pred_region
    %v187 = vld [vmem:[#allocation2] sm:$0xff]
    %v188 = vld [vmem:[#allocation2 + $0x8] sm:$0xff]
    %v189 = vld [vmem:[#allocation2 + $0x10] sm:$0xff]
    %v190 = vld [vmem:[#allocation2 + $0x18] sm:$0xff]
    %191 = vst [vmem:[%s2] sm:$0xff] %v187
    %192 = vst [vmem:[%s2 + $0x8] sm:$0xff] %v188
    %193 = vst [vmem:[%s2 + $0x10] sm:$0xff] %v189
    %194 = vst.msk [vmem:[%s2 + $0x18] sm:$0xff] %vm182, %v190
  $region17: #{_lambda_.10} parent=0 // pred_fallthru
    _
  // Predicated region
  $region18: #{_lambda_.10} parent=0 // pred_check
    _
  $region19: #{_lambda_.10} parent=0 // pred_check_branch
    %196 = sbr.rel (0) target = $region21
  $region20: #{_lambda_.10} parent=0 // pred_region
    _
  $region21: #{_lambda_.10} parent=0 // pred_fallthru
    _
  // Predicated region
  $region22: #{_lambda_.10} parent=0 // pred_check
    _
  $region23: #{_lambda_.10} parent=0 // pred_check_branch
    %198 = sbr.rel (0) target = $region25
  $region24: #{_lambda_.10} parent=0 // pred_region
    _
  $region25: #{_lambda_.10} parent=0 // pred_fallthru
    _

// kernel: _lambda_.11
$region0: #{_lambda_.11}
  #allocation0 [shape = 'u32[]', space=smem, size = 0x4, offset = 0x4, fixed_abs, tag = 'smem constant byte address 0x4 - core index']
  #allocation1 [shape = 'u32[144,128]{1,0:T(1,128)}', space=vmem, size = 0x12000, scoped, tag = 'internal scratch']
  %s0 = inlined_call_operand.vmem [shape: f32[72,12], index: 0, kind: input, shape index: {}]
  %s1 = inlined_call_operand.vmem [shape: f32[12,288], index: 1, kind: input, shape index: {}]
  %s2 = inlined_call_operand.vmem [shape: f32[72,288], index: 2, kind: output, shape index: {}]
  %s3 = sld [smem:[#allocation0]]
  $region18: #{_lambda_.11} parent=0
    _
  %s5 = ssub.s32 1, %s3
  %s6 = scalar_select 0, %s5, %s3
  // Predicated region
  $region2: #{_lambda_.11} parent=0 // pred_check
    _
  $region3: #{_lambda_.11} parent=0 // pred_check_branch
    %8 = sbr.rel (0) target = $region5
  $region4: #{_lambda_.11} parent=0 // pred_region
    _
  $region5: #{_lambda_.11} parent=0 // pred_fallthru
    _
  // Predicated region
  $region6: #{_lambda_.11} parent=0 // pred_check
    _
  $region7: #{_lambda_.11} parent=0 // pred_check_branch
    %10 = sbr.rel (0) target = $region9
  $region8: #{_lambda_.11} parent=0 // pred_region
    _
  $region9: #{_lambda_.11} parent=0 // pred_fallthru
    _
  %v11 = vld [vmem:[%s0] sm:$0xff]
  %v12 = vld [vmem:[%s0 + $0x8] sm:$0xff]
  %v13 = vld [vmem:[%s0 + $0x10] sm:$0xff]
  %v14 = vld [vmem:[%s0 + $0x18] sm:$0xff]
  %v15 = vld [vmem:[%s0 + $0x20] sm:$0xff]
  %v16 = vld [vmem:[%s0 + $0x28] sm:$0xff]
  %v17 = vld [vmem:[%s0 + $0x30] sm:$0xff]
  %v18 = vld [vmem:[%s0 + $0x38] sm:$0xff]
  %v19 = vld [vmem:[%s0 + $0x40] sm:$0xff]
  %v20 = vld [vmem:[%s1] sm:$0xff]
  %v21 = vld [vmem:[%s1 + $0x8] sm:$0xff]
  %v22 = vld [vmem:[%s1 + $0x10] sm:$0xff]
  %v23 = vld [vmem:[%s1 + $0x18] sm:$0xf]
  %v24 = vld [vmem:[%s1 + $0x20] sm:$0xf]
  %v25 = vld [vmem:[%s1 + $0x28] sm:$0xf]
  %vm26 = vcmask 97280
  %v28 = vsel %vm26, %v11, 0
  %v31 = vsel %vm26, %v12, 0
  %v34 = vsel %vm26, %v13, 0
  %v37 = vsel %vm26, %v14, 0
  %v40 = vsel %vm26, %v15, 0
  %v43 = vsel %vm26, %v16, 0
  %v46 = vsel %vm26, %v17, 0
  %v49 = vsel %vm26, %v18, 0
  %v52 = vsel %vm26, %v19, 0
  %vm54 = vcmask 1043456
  %v56 = vsel %vm54, %v23, 0
  %v59 = vsel %vm54, %v24, 0
  %v62 = vsel %vm54, %v25, 0
  %64 = vmatprep.subr.mxu0 %v21
  %65 = vmatpush1.msra.mxu0 %v20
  %66 = vmatprep.subr.mxu0 %v59
  %67 = vmatpush1.msra.mxu0 %v56
  %68 = vmatprep.subr.mxu0 0.0
  %69 = vmatpush1.msra.mxu0 0.0
  %70 = vmatprep.subr.mxu0 0.0
  %71 = vmatpush1.msra.mxu0 0.0
  %72 = vmatprep.subr.mxu0 0.0
  %73 = vmatpush1.msra.mxu0 0.0
  %74 = vmatprep.subr.mxu0 0.0
  %75 = vmatpush1.msra.mxu0 0.0
  %76 = vmatprep.subr.mxu0 0.0
  %77 = vmatpush1.msra.mxu0 0.0
  %78 = vmatprep.subr.mxu0 0.0
  %79 = vmatpush1.msra.mxu0 0.0
  %80 = vmatprep.subr.mxu0 0.0
  %81 = vmatpush1.msra.mxu0 0.0
  %82 = vmatprep.subr.mxu0 0.0
  %83 = vmatpush1.msra.mxu0 0.0
  %84 = vmatprep.subr.mxu0 0.0
  %85 = vmatpush1.msra.mxu0 0.0
  %86 = vmatprep.subr.mxu0 0.0
  %87 = vmatpush1.msra.mxu0 0.0
  %88 = vmatprep.subr.mxu0 0.0
  %89 = vmatpush1.msra.mxu0 0.0
  %90 = vmatprep.subr.mxu0 0.0
  %91 = vmatpush1.msra.mxu0 0.0
  %92 = vmatprep.subr.mxu0 0.0
  %93 = vmatpush1.msra.mxu0 0.0
  %94 = vmatprep.subr.mxu0 0.0
  %95 = vmatpush1.msra.mxu0 0.0
  %96 = vmatprep.subr.mxu0 0.0
  %97 = vmatpush1.msra.mxu0 0.0
  %98 = vmatprep.subr.mxu0 0.0
  %99 = vmatpush1.msra.mxu0 0.0
  %100 = vmatprep.subr.mxu0 0.0
  %101 = vmatpush1.msra.mxu0 0.0
  %102 = vmatprep.subr.mxu0 0.0
  %103 = vmatpush1.msra.mxu0 0.0
  %104 = vmatprep.subr.mxu0 0.0
  %105 = vmatpush1.msra.mxu0 0.0
  %106 = vmatprep.subr.mxu0 0.0
  %107 = vmatpush1.msra.mxu0 0.0
  %108 = vmatprep.subr.mxu0 0.0
  %109 = vmatpush1.msra.mxu0 0.0
  %110 = vmatprep.subr.mxu0 0.0
  %111 = vmatpush1.msra.mxu0 0.0
  %112 = vmatprep.subr.mxu0 0.0
  %113 = vmatpush1.msra.mxu0 0.0
  %114 = vmatprep.subr.mxu0 0.0
  %115 = vmatpush1.msra.mxu0 0.0
  %116 = vmatprep.subr.mxu0 0.0
  %117 = vmatpush1.msra.mxu0 0.0
  %118 = vmatprep.subr.mxu0 0.0
  %119 = vmatpush1.msra.mxu0 0.0
  %120 = vmatprep.subr.mxu0 0.0
  %121 = vmatpush1.msra.mxu0 0.0
  %122 = vmatprep.subr.mxu0 0.0
  %123 = vmatpush1.msra.mxu0 0.0
  %124 = vmatprep.subr.mxu0 0.0
  %125 = vmatpush1.msra.mxu0 0.0
  %126 = vmatprep.subr.mxu0 0.0
  %127 = vmatpush1.msra.mxu0 0.0
  %128 = vmatprep.mubr.f32.mxu0 0.0
  %129 = vmatmul.mubr.f32.gmra.mrb[0].mxu0 %v28
  %v130 = vpop.f32.mrb[0].mxu0
  %v131 = vadd.f32 0.0, %v130
  %v132 = vpop.f32.mrb[0].mxu0
  %v133 = vadd.f32 0.0, %v132
  %134 = vmatprep.mubr.f32.mxu0 0.0
  %135 = vmatmul.mubr.f32.gmra.mrb[0].mxu0 %v31
  %v136 = vpop.f32.mrb[0].mxu0
  %v137 = vadd.f32 0.0, %v136
  %v138 = vpop.f32.mrb[0].mxu0
  %v139 = vadd.f32 0.0, %v138
  %140 = vmatprep.mubr.f32.mxu0 0.0
  %141 = vmatmul.mubr.f32.gmra.mrb[0].mxu0 %v34
  %v142 = vpop.f32.mrb[0].mxu0
  %v143 = vadd.f32 0.0, %v142
  %v144 = vpop.f32.mrb[0].mxu0
  %v145 = vadd.f32 0.0, %v144
  %146 = vmatprep.mubr.f32.mxu0 0.0
  %147 = vmatmul.mubr.f32.gmra.mrb[0].mxu0 %v37
  %v148 = vpop.f32.mrb[0].mxu0
  %v149 = vadd.f32 0.0, %v148
  %v150 = vpop.f32.mrb[0].mxu0
  %v151 = vadd.f32 0.0, %v150
  %152 = vmatprep.mubr.f32.mxu0 0.0
  %153 = vmatmul.mubr.f32.gmra.mrb[0].mxu0 %v40
  %v154 = vpop.f32.mrb[0].mxu0
  %v155 = vadd.f32 0.0, %v154
  %v156 = vpop.f32.mrb[0].mxu0
  %v157 = vadd.f32 0.0, %v156
  %158 = vmatprep.mubr.f32.mxu0 0.0
  %159 = vmatmul.mubr.f32.gmra.mrb[0].mxu0 %v43
  %v160 = vpop.f32.mrb[0].mxu0
  %v161 = vadd.f32 0.0, %v160
  %v162 = vpop.f32.mrb[0].mxu0
  %v163 = vadd.f32 0.0, %v162
  %164 = vmatprep.mubr.f32.mxu0 0.0
  %165 = vmatmul.mubr.f32.gmra.mrb[0].mxu0 %v46
  %v166 = vpop.f32.mrb[0].mxu0
  %v167 = vadd.f32 0.0, %v166
  %v168 = vpop.f32.mrb[0].mxu0
  %v169 = vadd.f32 0.0, %v168
  %170 = vmatprep.mubr.f32.mxu0 0.0
  %171 = vmatmul.mubr.f32.gmra.mrb[0].mxu0 %v49
  %v172 = vpop.f32.mrb[0].mxu0
  %v173 = vadd.f32 0.0, %v172
  %v174 = vpop.f32.mrb[0].mxu0
  %v175 = vadd.f32 0.0, %v174
  %176 = vmatprep.mubr.f32.mxu0 0.0
  %177 = vmatmul.mubr.f32.gmra.mrb[0].mxu0 %v52
  %v178 = vpop.f32.mrb[0].mxu0
  %v179 = vadd.f32 0.0, %v178
  %v180 = vpop.f32.mrb[0].mxu0
  %v181 = vadd.f32 0.0, %v180
  %182 = vdwg.mxu0
  %183 = vmatprep.subr.mxu0 0.0
  %184 = vmatpush1.msra.mxu0 %v22
  %185 = vmatprep.subr.mxu0 0.0
  %186 = vmatpush1.msra.mxu0 %v62
  %187 = vmatprep.subr.mxu0 0.0
  %188 = vmatpush1.msra.mxu0 0.0
  %189 = vmatprep.subr.mxu0 0.0
  %190 = vmatpush1.msra.mxu0 0.0
  %191 = vmatprep.subr.mxu0 0.0
  %192 = vmatpush1.msra.mxu0 0.0
  %193 = vmatprep.subr.mxu0 0.0
  %194 = vmatpush1.msra.mxu0 0.0
  %195 = vmatprep.subr.mxu0 0.0
  %196 = vmatpush1.msra.mxu0 0.0
  %197 = vmatprep.subr.mxu0 0.0
  %198 = vmatpush1.msra.mxu0 0.0
  %199 = vmatprep.subr.mxu0 0.0
  %200 = vmatpush1.msra.mxu0 0.0
  %201 = vmatprep.subr.mxu0 0.0
  %202 = vmatpush1.msra.mxu0 0.0
  %203 = vmatprep.subr.mxu0 0.0
  %204 = vmatpush1.msra.mxu0 0.0
  %205 = vmatprep.subr.mxu0 0.0
  %206 = vmatpush1.msra.mxu0 0.0
  %207 = vmatprep.subr.mxu0 0.0
  %208 = vmatpush1.msra.mxu0 0.0
  %209 = vmatprep.subr.mxu0 0.0
  %210 = vmatpush1.msra.mxu0 0.0
  %211 = vmatprep.subr.mxu0 0.0
  %212 = vmatpush1.msra.mxu0 0.0
  %213 = vmatprep.subr.mxu0 0.0
  %214 = vmatpush1.msra.mxu0 0.0
  %215 = vmatprep.subr.mxu0 0.0
  %216 = vmatpush1.msra.mxu0 0.0
  %217 = vmatprep.subr.mxu0 0.0
  %218 = vmatpush1.msra.mxu0 0.0
  %219 = vmatprep.subr.mxu0 0.0
  %220 = vmatpush1.msra.mxu0 0.0
  %221 = vmatprep.subr.mxu0 0.0
  %222 = vmatpush1.msra.mxu0 0.0
  %223 = vmatprep.subr.mxu0 0.0
  %224 = vmatpush1.msra.mxu0 0.0
  %225 = vmatprep.subr.mxu0 0.0
  %226 = vmatpush1.msra.mxu0 0.0
  %227 = vmatprep.subr.mxu0 0.0
  %228 = vmatpush1.msra.mxu0 0.0
  %229 = vmatprep.subr.mxu0 0.0
  %230 = vmatpush1.msra.mxu0 0.0
  %231 = vmatprep.subr.mxu0 0.0
  %232 = vmatpush1.msra.mxu0 0.0
  %233 = vmatprep.subr.mxu0 0.0
  %234 = vmatpush1.msra.mxu0 0.0
  %235 = vmatprep.subr.mxu0 0.0
  %236 = vmatpush1.msra.mxu0 0.0
  %237 = vmatprep.subr.mxu0 0.0
  %238 = vmatpush1.msra.mxu0 0.0
  %239 = vmatprep.subr.mxu0 0.0
  %240 = vmatpush1.msra.mxu0 0.0
  %241 = vmatprep.subr.mxu0 0.0
  %242 = vmatpush1.msra.mxu0 0.0
  %243 = vmatprep.subr.mxu0 0.0
  %244 = vmatpush1.msra.mxu0 0.0
  %245 = vmatprep.subr.mxu0 0.0
  %246 = vmatpush1.msra.mxu0 0.0
  %247 = vmatprep.mubr.f32.mxu0 0.0
  %248 = vmatmul.mubr.f32.gmra.mrb[0].mxu0 %v28
  %v249 = vpop.f32.mrb[0].mxu0
  %v250 = vadd.f32 0.0, %v249
  %v251 = vpop.f32.mrb[0].mxu0
  %252 = vmatprep.mubr.f32.mxu0 0.0
  %253 = vmatmul.mubr.f32.gmra.mrb[0].mxu0 %v31
  %v254 = vpop.f32.mrb[0].mxu0
  %v255 = vadd.f32 0.0, %v254
  %v256 = vpop.f32.mrb[0].mxu0
  %257 = vmatprep.mubr.f32.mxu0 0.0
  %258 = vmatmul.mubr.f32.gmra.mrb[0].mxu0 %v34
  %v259 = vpop.f32.mrb[0].mxu0
  %v260 = vadd.f32 0.0, %v259
  %v261 = vpop.f32.mrb[0].mxu0
  %262 = vmatprep.mubr.f32.mxu0 0.0
  %263 = vmatmul.mubr.f32.gmra.mrb[0].mxu0 %v37
  %v264 = vpop.f32.mrb[0].mxu0
  %v265 = vadd.f32 0.0, %v264
  %v266 = vpop.f32.mrb[0].mxu0
  %267 = vmatprep.mubr.f32.mxu0 0.0
  %268 = vmatmul.mubr.f32.gmra.mrb[0].mxu0 %v40
  %v269 = vpop.f32.mrb[0].mxu0
  %v270 = vadd.f32 0.0, %v269
  %v271 = vpop.f32.mrb[0].mxu0
  %272 = vmatprep.mubr.f32.mxu0 0.0
  %273 = vmatmul.mubr.f32.gmra.mrb[0].mxu0 %v43
  %v274 = vpop.f32.mrb[0].mxu0
  %v275 = vadd.f32 0.0, %v274
  %v276 = vpop.f32.mrb[0].mxu0
  %277 = vmatprep.mubr.f32.mxu0 0.0
  %278 = vmatmul.mubr.f32.gmra.mrb[0].mxu0 %v46
  %v279 = vpop.f32.mrb[0].mxu0
  %v280 = vadd.f32 0.0, %v279
  %v281 = vpop.f32.mrb[0].mxu0
  %282 = vmatprep.mubr.f32.mxu0 0.0
  %283 = vmatmul.mubr.f32.gmra.mrb[0].mxu0 %v49
  %v284 = vpop.f32.mrb[0].mxu0
  %v285 = vadd.f32 0.0, %v284
  %v286 = vpop.f32.mrb[0].mxu0
  %287 = vmatprep.mubr.f32.mxu0 0.0
  %288 = vmatmul.mubr.f32.gmra.mrb[0].mxu0 %v52
  %v289 = vpop.f32.mrb[0].mxu0
  %v290 = vadd.f32 0.0, %v289
  %v291 = vpop.f32.mrb[0].mxu0
  %292 = vdwg.mxu0
  %293 = vst [vmem:[%s2] sm:$0xff] %v131
  %294 = vst [vmem:[%s2 + $0x8] sm:$0xff] %v133
  %vm295 = vcmask 261120
  %296 = vst.msk [vmem:[%s2 + $0x10] sm:$0xff] %vm295, %v250
  %297 = vst [vmem:[%s2 + $0x18] sm:$0xff] %v137
  %298 = vst [vmem:[%s2 + $0x20] sm:$0xff] %v139
  %299 = vst.msk [vmem:[%s2 + $0x28] sm:$0xff] %vm295, %v255
  %300 = vst [vmem:[%s2 + $0x30] sm:$0xff] %v143
  %301 = vst [vmem:[%s2 + $0x38] sm:$0xff] %v145
  %302 = vst.msk [vmem:[%s2 + $0x40] sm:$0xff] %vm295, %v260
  %303 = vst [vmem:[%s2 + $0x48] sm:$0xff] %v149
  %304 = vst [vmem:[%s2 + $0x50] sm:$0xff] %v151
  %305 = vst.msk [vmem:[%s2 + $0x58] sm:$0xff] %vm295, %v265
  %306 = vst [vmem:[%s2 + $0x60] sm:$0xff] %v155
  %307 = vst [vmem:[%s2 + $0x68] sm:$0xff] %v157
  %308 = vst.msk [vmem:[%s2 + $0x70] sm:$0xff] %vm295, %v270
  %309 = vst [vmem:[%s2 + $0x78] sm:$0xff] %v161
  %310 = vst [vmem:[%s2 + $0x80] sm:$0xff] %v163
  %311 = vst.msk [vmem:[%s2 + $0x88] sm:$0xff] %vm295, %v275
  %312 = vst [vmem:[%s2 + $0x90] sm:$0xff] %v167
  %313 = vst [vmem:[%s2 + $0x98] sm:$0xff] %v169
  %314 = vst.msk [vmem:[%s2 + $0xa0] sm:$0xff] %vm295, %v280
  %315 = vst [vmem:[%s2 + $0xa8] sm:$0xff] %v173
  %316 = vst [vmem:[%s2 + $0xb0] sm:$0xff] %v175
  %317 = vst.msk [vmem:[%s2 + $0xb8] sm:$0xff] %vm295, %v285
  %318 = vst [vmem:[%s2 + $0xc0] sm:$0xff] %v179
  %319 = vst [vmem:[%s2 + $0xc8] sm:$0xff] %v181
  %320 = vst.msk [vmem:[%s2 + $0xd0] sm:$0xff] %vm295, %v290
  // Predicated region
  $region10: #{_lambda_.11} parent=0 // pred_check
    _
  $region11: #{_lambda_.11} parent=0 // pred_check_branch
    %322 = sbr.rel (0) target = $region13
  $region12: #{_lambda_.11} parent=0 // pred_region
    _
  $region13: #{_lambda_.11} parent=0 // pred_fallthru
    _
  // Predicated region
  $region14: #{_lambda_.11} parent=0 // pred_check
    _
  $region15: #{_lambda_.11} parent=0 // pred_check_branch
    %324 = sbr.rel (0) target = $region17
  $region16: #{_lambda_.11} parent=0 // pred_region
    _
  $region17: #{_lambda_.11} parent=0 // pred_fallthru
    _

// kernel: _lambda_.12
$region0: #{_lambda_.12}
  #allocation0 [shape = 'u32[]', space=smem, size = 0x4, offset = 0x4, fixed_abs, tag = 'smem constant byte address 0x4 - core index']
  #allocation1 [shape = 'u32[144,128]{1,0:T(1,128)}', space=vmem, size = 0x12000, scoped, tag = 'internal scratch']
  %s0 = inlined_call_operand.vmem [shape: f32[36,8], index: 0, kind: input, shape index: {}]
  %s1 = inlined_call_operand.vmem [shape: f32[8,1056], index: 1, kind: input, shape index: {}]
  %s2 = inlined_call_operand.vmem [shape: f32[36,1056], index: 2, kind: output, shape index: {}]
  %s3 = sld [smem:[#allocation0]]
  $region18: #{_lambda_.12} parent=0
    _
  %s5 = ssub.s32 1, %s3
  %s6 = scalar_select 0, %s5, %s3
  // Predicated region
  $region2: #{_lambda_.12} parent=0 // pred_check
    _
  $region3: #{_lambda_.12} parent=0 // pred_check_branch
    %8 = sbr.rel (0) target = $region5
  $region4: #{_lambda_.12} parent=0 // pred_region
    _
  $region5: #{_lambda_.12} parent=0 // pred_fallthru
    _
  // Predicated region
  $region6: #{_lambda_.12} parent=0 // pred_check
    _
  $region7: #{_lambda_.12} parent=0 // pred_check_branch
    %10 = sbr.rel (0) target = $region9
  $region8: #{_lambda_.12} parent=0 // pred_region
    _
  $region9: #{_lambda_.12} parent=0 // pred_fallthru
    _
  %v11 = vld [vmem:[%s0] sm:$0xff]
  %v12 = vld [vmem:[%s0 + $0x8] sm:$0xff]
  %v13 = vld [vmem:[%s0 + $0x10] sm:$0xff]
  %v14 = vld [vmem:[%s0 + $0x18] sm:$0xff]
  %v15 = vld [vmem:[%s0 + $0x20] sm:$0xf]
  %v16 = vld [vmem:[%s1] sm:$0xff]
  %v17 = vld [vmem:[%s1 + $0x8] sm:$0xff]
  %v18 = vld [vmem:[%s1 + $0x10] sm:$0xff]
  %v19 = vld [vmem:[%s1 + $0x18] sm:$0xff]
  %v20 = vld [vmem:[%s1 + $0x20] sm:$0xff]
  %v21 = vld [vmem:[%s1 + $0x28] sm:$0xff]
  %v22 = vld [vmem:[%s1 + $0x30] sm:$0xff]
  %v23 = vld [vmem:[%s1 + $0x38] sm:$0xff]
  %v24 = vld [vmem:[%s1 + $0x40] sm:$0xff]
  %vm25 = vcmask 64512
  %v27 = vsel %vm25, %v11, 0
  %v30 = vsel %vm25, %v12, 0
  %v33 = vsel %vm25, %v13, 0
  %v36 = vsel %vm25, %v14, 0
  %v39 = vsel %vm25, %v15, 0
  %41 = vmatprep.subr.mxu0 %v17
  %42 = vmatpush1.msra.mxu0 %v16
  %43 = vmatprep.subr.mxu0 0.0
  %44 = vmatpush1.msra.mxu0 0.0
  %45 = vmatprep.subr.mxu0 0.0
  %46 = vmatpush1.msra.mxu0 0.0
  %47 = vmatprep.subr.mxu0 0.0
  %48 = vmatpush1.msra.mxu0 0.0
  %49 = vmatprep.subr.mxu0 0.0
  %50 = vmatpush1.msra.mxu0 0.0
  %51 = vmatprep.subr.mxu0 0.0
  %52 = vmatpush1.msra.mxu0 0.0
  %53 = vmatprep.subr.mxu0 0.0
  %54 = vmatpush1.msra.mxu0 0.0
  %55 = vmatprep.subr.mxu0 0.0
  %56 = vmatpush1.msra.mxu0 0.0
  %57 = vmatprep.subr.mxu0 0.0
  %58 = vmatpush1.msra.mxu0 0.0
  %59 = vmatprep.subr.mxu0 0.0
  %60 = vmatpush1.msra.mxu0 0.0
  %61 = vmatprep.subr.mxu0 0.0
  %62 = vmatpush1.msra.mxu0 0.0
  %63 = vmatprep.subr.mxu0 0.0
  %64 = vmatpush1.msra.mxu0 0.0
  %65 = vmatprep.subr.mxu0 0.0
  %66 = vmatpush1.msra.mxu0 0.0
  %67 = vmatprep.subr.mxu0 0.0
  %68 = vmatpush1.msra.mxu0 0.0
  %69 = vmatprep.subr.mxu0 0.0
  %70 = vmatpush1.msra.mxu0 0.0
  %71 = vmatprep.subr.mxu0 0.0
  %72 = vmatpush1.msra.mxu0 0.0
  %73 = vmatprep.subr.mxu0 0.0
  %74 = vmatpush1.msra.mxu0 0.0
  %75 = vmatprep.subr.mxu0 0.0
  %76 = vmatpush1.msra.mxu0 0.0
  %77 = vmatprep.subr.mxu0 0.0
  %78 = vmatpush1.msra.mxu0 0.0
  %79 = vmatprep.subr.mxu0 0.0
  %80 = vmatpush1.msra.mxu0 0.0
  %81 = vmatprep.subr.mxu0 0.0
  %82 = vmatpush1.msra.mxu0 0.0
  %83 = vmatprep.subr.mxu0 0.0
  %84 = vmatpush1.msra.mxu0 0.0
  %85 = vmatprep.subr.mxu0 0.0
  %86 = vmatpush1.msra.mxu0 0.0
  %87 = vmatprep.subr.mxu0 0.0
  %88 = vmatpush1.msra.mxu0 0.0
  %89 = vmatprep.subr.mxu0 0.0
  %90 = vmatpush1.msra.mxu0 0.0
  %91 = vmatprep.subr.mxu0 0.0
  %92 = vmatpush1.msra.mxu0 0.0
  %93 = vmatprep.subr.mxu0 0.0
  %94 = vmatpush1.msra.mxu0 0.0
  %95 = vmatprep.subr.mxu0 0.0
  %96 = vmatpush1.msra.mxu0 0.0
  %97 = vmatprep.subr.mxu0 0.0
  %98 = vmatpush1.msra.mxu0 0.0
  %99 = vmatprep.subr.mxu0 0.0
  %100 = vmatpush1.msra.mxu0 0.0
  %101 = vmatprep.subr.mxu0 0.0
  %102 = vmatpush1.msra.mxu0 0.0
  %103 = vmatprep.subr.mxu0 0.0
  %104 = vmatpush1.msra.mxu0 0.0
  %105 = vmatprep.mubr.f32.mxu0 0.0
  %106 = vmatmul.mubr.f32.gmra.mrb[0].mxu0 %v27
  %v107 = vpop.f32.mrb[0].mxu0
  %v108 = vadd.f32 0.0, %v107
  %v109 = vpop.f32.mrb[0].mxu0
  %v110 = vadd.f32 0.0, %v109
  %111 = vmatprep.mubr.f32.mxu0 0.0
  %112 = vmatmul.mubr.f32.gmra.mrb[0].mxu0 %v30
  %v113 = vpop.f32.mrb[0].mxu0
  %v114 = vadd.f32 0.0, %v113
  %v115 = vpop.f32.mrb[0].mxu0
  %v116 = vadd.f32 0.0, %v115
  %117 = vmatprep.mubr.f32.mxu0 0.0
  %118 = vmatmul.mubr.f32.gmra.mrb[0].mxu0 %v33
  %v119 = vpop.f32.mrb[0].mxu0
  %v120 = vadd.f32 0.0, %v119
  %v121 = vpop.f32.mrb[0].mxu0
  %v122 = vadd.f32 0.0, %v121
  %123 = vmatprep.mubr.f32.mxu0 0.0
  %124 = vmatmul.mubr.f32.gmra.mrb[0].mxu0 %v36
  %v125 = vpop.f32.mrb[0].mxu0
  %v126 = vadd.f32 0.0, %v125
  %v127 = vpop.f32.mrb[0].mxu0
  %v128 = vadd.f32 0.0, %v127
  %129 = vmatprep.mubr.f32.mxu0 0.0
  %130 = vmatmul.mubr.f32.gmra.mrb[0].mxu0 %v39
  %v131 = vpop.f32.mrb[0].mxu0
  %v132 = vadd.f32 0.0, %v131
  %v133 = vpop.f32.mrb[0].mxu0
  %v134 = vadd.f32 0.0, %v133
  %135 = vdwg.mxu0
  %136 = vmatprep.subr.mxu0 %v19
  %137 = vmatpush1.msra.mxu0 %v18
  %138 = vmatprep.subr.mxu0 0.0
  %139 = vmatpush1.msra.mxu0 0.0
  %140 = vmatprep.subr.mxu0 0.0
  %141 = vmatpush1.msra.mxu0 0.0
  %142 = vmatprep.subr.mxu0 0.0
  %143 = vmatpush1.msra.mxu0 0.0
  %144 = vmatprep.subr.mxu0 0.0
  %145 = vmatpush1.msra.mxu0 0.0
  %146 = vmatprep.subr.mxu0 0.0
  %147 = vmatpush1.msra.mxu0 0.0
  %148 = vmatprep.subr.mxu0 0.0
  %149 = vmatpush1.msra.mxu0 0.0
  %150 = vmatprep.subr.mxu0 0.0
  %151 = vmatpush1.msra.mxu0 0.0
  %152 = vmatprep.subr.mxu0 0.0
  %153 = vmatpush1.msra.mxu0 0.0
  %154 = vmatprep.subr.mxu0 0.0
  %155 = vmatpush1.msra.mxu0 0.0
  %156 = vmatprep.subr.mxu0 0.0
  %157 = vmatpush1.msra.mxu0 0.0
  %158 = vmatprep.subr.mxu0 0.0
  %159 = vmatpush1.msra.mxu0 0.0
  %160 = vmatprep.subr.mxu0 0.0
  %161 = vmatpush1.msra.mxu0 0.0
  %162 = vmatprep.subr.mxu0 0.0
  %163 = vmatpush1.msra.mxu0 0.0
  %164 = vmatprep.subr.mxu0 0.0
  %165 = vmatpush1.msra.mxu0 0.0
  %166 = vmatprep.subr.mxu0 0.0
  %167 = vmatpush1.msra.mxu0 0.0
  %168 = vmatprep.subr.mxu0 0.0
  %169 = vmatpush1.msra.mxu0 0.0
  %170 = vmatprep.subr.mxu0 0.0
  %171 = vmatpush1.msra.mxu0 0.0
  %172 = vmatprep.subr.mxu0 0.0
  %173 = vmatpush1.msra.mxu0 0.0
  %174 = vmatprep.subr.mxu0 0.0
  %175 = vmatpush1.msra.mxu0 0.0
  %176 = vmatprep.subr.mxu0 0.0
  %177 = vmatpush1.msra.mxu0 0.0
  %178 = vmatprep.subr.mxu0 0.0
  %179 = vmatpush1.msra.mxu0 0.0
  %180 = vmatprep.subr.mxu0 0.0
  %181 = vmatpush1.msra.mxu0 0.0
  %182 = vmatprep.subr.mxu0 0.0
  %183 = vmatpush1.msra.mxu0 0.0
  %184 = vmatprep.subr.mxu0 0.0
  %185 = vmatpush1.msra.mxu0 0.0
  %186 = vmatprep.subr.mxu0 0.0
  %187 = vmatpush1.msra.mxu0 0.0
  %188 = vmatprep.subr.mxu0 0.0
  %189 = vmatpush1.msra.mxu0 0.0
  %190 = vmatprep.subr.mxu0 0.0
  %191 = vmatpush1.msra.mxu0 0.0
  %192 = vmatprep.subr.mxu0 0.0
  %193 = vmatpush1.msra.mxu0 0.0
  %194 = vmatprep.subr.mxu0 0.0
  %195 = vmatpush1.msra.mxu0 0.0
  %196 = vmatprep.subr.mxu0 0.0
  %197 = vmatpush1.msra.mxu0 0.0
  %198 = vmatprep.subr.mxu0 0.0
  %199 = vmatpush1.msra.mxu0 0.0
  %200 = vmatprep.mubr.f32.mxu0 0.0
  %201 = vmatmul.mubr.f32.gmra.mrb[0].mxu0 %v27
  %v202 = vpop.f32.mrb[0].mxu0
  %v203 = vadd.f32 0.0, %v202
  %v204 = vpop.f32.mrb[0].mxu0
  %v205 = vadd.f32 0.0, %v204
  %206 = vmatprep.mubr.f32.mxu0 0.0
  %207 = vmatmul.mubr.f32.gmra.mrb[0].mxu0 %v30
  %v208 = vpop.f32.mrb[0].mxu0
  %v209 = vadd.f32 0.0, %v208
  %v210 = vpop.f32.mrb[0].mxu0
  %v211 = vadd.f32 0.0, %v210
  %212 = vmatprep.mubr.f32.mxu0 0.0
  %213 = vmatmul.mubr.f32.gmra.mrb[0].mxu0 %v33
  %v214 = vpop.f32.mrb[0].mxu0
  %v215 = vadd.f32 0.0, %v214
  %v216 = vpop.f32.mrb[0].mxu0
  %v217 = vadd.f32 0.0, %v216
  %218 = vmatprep.mubr.f32.mxu0 0.0
  %219 = vmatmul.mubr.f32.gmra.mrb[0].mxu0 %v36
  %v220 = vpop.f32.mrb[0].mxu0
  %v221 = vadd.f32 0.0, %v220
  %v222 = vpop.f32.mrb[0].mxu0
  %v223 = vadd.f32 0.0, %v222
  %224 = vmatprep.mubr.f32.mxu0 0.0
  %225 = vmatmul.mubr.f32.gmra.mrb[0].mxu0 %v39
  %v226 = vpop.f32.mrb[0].mxu0
  %v227 = vadd.f32 0.0, %v226
  %v228 = vpop.f32.mrb[0].mxu0
  %v229 = vadd.f32 0.0, %v228
  %230 = vdwg.mxu0
  %231 = vmatprep.subr.mxu0 %v21
  %232 = vmatpush1.msra.mxu0 %v20
  %233 = vmatprep.subr.mxu0 0.0
  %234 = vmatpush1.msra.mxu0 0.0
  %235 = vmatprep.subr.mxu0 0.0
  %236 = vmatpush1.msra.mxu0 0.0
  %237 = vmatprep.subr.mxu0 0.0
  %238 = vmatpush1.msra.mxu0 0.0
  %239 = vmatprep.subr.mxu0 0.0
  %240 = vmatpush1.msra.mxu0 0.0
  %241 = vmatprep.subr.mxu0 0.0
  %242 = vmatpush1.msra.mxu0 0.0
  %243 = vmatprep.subr.mxu0 0.0
  %244 = vmatpush1.msra.mxu0 0.0
  %245 = vmatprep.subr.mxu0 0.0
  %246 = vmatpush1.msra.mxu0 0.0
  %247 = vmatprep.subr.mxu0 0.0
  %248 = vmatpush1.msra.mxu0 0.0
  %249 = vmatprep.subr.mxu0 0.0
  %250 = vmatpush1.msra.mxu0 0.0
  %251 = vmatprep.subr.mxu0 0.0
  %252 = vmatpush1.msra.mxu0 0.0
  %253 = vmatprep.subr.mxu0 0.0
  %254 = vmatpush1.msra.mxu0 0.0
  %255 = vmatprep.subr.mxu0 0.0
  %256 = vmatpush1.msra.mxu0 0.0
  %257 = vmatprep.subr.mxu0 0.0
  %258 = vmatpush1.msra.mxu0 0.0
  %259 = vmatprep.subr.mxu0 0.0
  %260 = vmatpush1.msra.mxu0 0.0
  %261 = vmatprep.subr.mxu0 0.0
  %262 = vmatpush1.msra.mxu0 0.0
  %263 = vmatprep.subr.mxu0 0.0
  %264 = vmatpush1.msra.mxu0 0.0
  %265 = vmatprep.subr.mxu0 0.0
  %266 = vmatpush1.msra.mxu0 0.0
  %267 = vmatprep.subr.mxu0 0.0
  %268 = vmatpush1.msra.mxu0 0.0
  %269 = vmatprep.subr.mxu0 0.0
  %270 = vmatpush1.msra.mxu0 0.0
  %271 = vmatprep.subr.mxu0 0.0
  %272 = vmatpush1.msra.mxu0 0.0
  %273 = vmatprep.subr.mxu0 0.0
  %274 = vmatpush1.msra.mxu0 0.0
  %275 = vmatprep.subr.mxu0 0.0
  %276 = vmatpush1.msra.mxu0 0.0
  %277 = vmatprep.subr.mxu0 0.0
  %278 = vmatpush1.msra.mxu0 0.0
  %279 = vmatprep.subr.mxu0 0.0
  %280 = vmatpush1.msra.mxu0 0.0
  %281 = vmatprep.subr.mxu0 0.0
  %282 = vmatpush1.msra.mxu0 0.0
  %283 = vmatprep.subr.mxu0 0.0
  %284 = vmatpush1.msra.mxu0 0.0
  %285 = vmatprep.subr.mxu0 0.0
  %286 = vmatpush1.msra.mxu0 0.0
  %287 = vmatprep.subr.mxu0 0.0
  %288 = vmatpush1.msra.mxu0 0.0
  %289 = vmatprep.subr.mxu0 0.0
  %290 = vmatpush1.msra.mxu0 0.0
  %291 = vmatprep.subr.mxu0 0.0
  %292 = vmatpush1.msra.mxu0 0.0
  %293 = vmatprep.subr.mxu0 0.0
  %294 = vmatpush1.msra.mxu0 0.0
  %295 = vmatprep.mubr.f32.mxu0 0.0
  %296 = vmatmul.mubr.f32.gmra.mrb[0].mxu0 %v27
  %v297 = vpop.f32.mrb[0].mxu0
  %v298 = vadd.f32 0.0, %v297
  %v299 = vpop.f32.mrb[0].mxu0
  %v300 = vadd.f32 0.0, %v299
  %301 = vmatprep.mubr.f32.mxu0 0.0
  %302 = vmatmul.mubr.f32.gmra.mrb[0].mxu0 %v30
  %v303 = vpop.f32.mrb[0].mxu0
  %v304 = vadd.f32 0.0, %v303
  %v305 = vpop.f32.mrb[0].mxu0
  %v306 = vadd.f32 0.0, %v305
  %307 = vmatprep.mubr.f32.mxu0 0.0
  %308 = vmatmul.mubr.f32.gmra.mrb[0].mxu0 %v33
  %v309 = vpop.f32.mrb[0].mxu0
  %v310 = vadd.f32 0.0, %v309
  %v311 = vpop.f32.mrb[0].mxu0
  %v312 = vadd.f32 0.0, %v311
  %313 = vmatprep.mubr.f32.mxu0 0.0
  %314 = vmatmul.mubr.f32.gmra.mrb[0].mxu0 %v36
  %v315 = vpop.f32.mrb[0].mxu0
  %v316 = vadd.f32 0.0, %v315
  %v317 = vpop.f32.mrb[0].mxu0
  %v318 = vadd.f32 0.0, %v317
  %319 = vmatprep.mubr.f32.mxu0 0.0
  %320 = vmatmul.mubr.f32.gmra.mrb[0].mxu0 %v39
  %v321 = vpop.f32.mrb[0].mxu0
  %v322 = vadd.f32 0.0, %v321
  %v323 = vpop.f32.mrb[0].mxu0
  %v324 = vadd.f32 0.0, %v323
  %325 = vdwg.mxu0
  %326 = vmatprep.subr.mxu0 %v23
  %327 = vmatpush1.msra.mxu0 %v22
  %328 = vmatprep.subr.mxu0 0.0
  %329 = vmatpush1.msra.mxu0 0.0
  %330 = vmatprep.subr.mxu0 0.0
  %331 = vmatpush1.msra.mxu0 0.0
  %332 = vmatprep.subr.mxu0 0.0
  %333 = vmatpush1.msra.mxu0 0.0
  %334 = vmatprep.subr.mxu0 0.0
  %335 = vmatpush1.msra.mxu0 0.0
  %336 = vmatprep.subr.mxu0 0.0
  %337 = vmatpush1.msra.mxu0 0.0
  %338 = vmatprep.subr.mxu0 0.0
  %339 = vmatpush1.msra.mxu0 0.0
  %340 = vmatprep.subr.mxu0 0.0
  %341 = vmatpush1.msra.mxu0 0.0
  %342 = vmatprep.subr.mxu0 0.0
  %343 = vmatpush1.msra.mxu0 0.0
  %344 = vmatprep.subr.mxu0 0.0
  %345 = vmatpush1.msra.mxu0 0.0
  %346 = vmatprep.subr.mxu0 0.0
  %347 = vmatpush1.msra.mxu0 0.0
  %348 = vmatprep.subr.mxu0 0.0
  %349 = vmatpush1.msra.mxu0 0.0
  %350 = vmatprep.subr.mxu0 0.0
  %351 = vmatpush1.msra.mxu0 0.0
  %352 = vmatprep.subr.mxu0 0.0
  %353 = vmatpush1.msra.mxu0 0.0
  %354 = vmatprep.subr.mxu0 0.0
  %355 = vmatpush1.msra.mxu0 0.0
  %356 = vmatprep.subr.mxu0 0.0
  %357 = vmatpush1.msra.mxu0 0.0
  %358 = vmatprep.subr.mxu0 0.0
  %359 = vmatpush1.msra.mxu0 0.0
  %360 = vmatprep.subr.mxu0 0.0
  %361 = vmatpush1.msra.mxu0 0.0
  %362 = vmatprep.subr.mxu0 0.0
  %363 = vmatpush1.msra.mxu0 0.0
  %364 = vmatprep.subr.mxu0 0.0
  %365 = vmatpush1.msra.mxu0 0.0
  %366 = vmatprep.subr.mxu0 0.0
  %367 = vmatpush1.msra.mxu0 0.0
  %368 = vmatprep.subr.mxu0 0.0
  %369 = vmatpush1.msra.mxu0 0.0
  %370 = vmatprep.subr.mxu0 0.0
  %371 = vmatpush1.msra.mxu0 0.0
  %372 = vmatprep.subr.mxu0 0.0
  %373 = vmatpush1.msra.mxu0 0.0
  %374 = vmatprep.subr.mxu0 0.0
  %375 = vmatpush1.msra.mxu0 0.0
  %376 = vmatprep.subr.mxu0 0.0
  %377 = vmatpush1.msra.mxu0 0.0
  %378 = vmatprep.subr.mxu0 0.0
  %379 = vmatpush1.msra.mxu0 0.0
  %380 = vmatprep.subr.mxu0 0.0
  %381 = vmatpush1.msra.mxu0 0.0
  %382 = vmatprep.subr.mxu0 0.0
  %383 = vmatpush1.msra.mxu0 0.0
  %384 = vmatprep.subr.mxu0 0.0
  %385 = vmatpush1.msra.mxu0 0.0
  %386 = vmatprep.subr.mxu0 0.0
  %387 = vmatpush1.msra.mxu0 0.0
  %388 = vmatprep.subr.mxu0 0.0
  %389 = vmatpush1.msra.mxu0 0.0
  %390 = vmatprep.mubr.f32.mxu0 0.0
  %391 = vmatmul.mubr.f32.gmra.mrb[0].mxu0 %v27
  %v392 = vpop.f32.mrb[0].mxu0
  %v393 = vadd.f32 0.0, %v392
  %v394 = vpop.f32.mrb[0].mxu0
  %v395 = vadd.f32 0.0, %v394
  %396 = vmatprep.mubr.f32.mxu0 0.0
  %397 = vmatmul.mubr.f32.gmra.mrb[0].mxu0 %v30
  %v398 = vpop.f32.mrb[0].mxu0
  %v399 = vadd.f32 0.0, %v398
  %v400 = vpop.f32.mrb[0].mxu0
  %v401 = vadd.f32 0.0, %v400
  %402 = vmatprep.mubr.f32.mxu0 0.0
  %403 = vmatmul.mubr.f32.gmra.mrb[0].mxu0 %v33
  %v404 = vpop.f32.mrb[0].mxu0
  %v405 = vadd.f32 0.0, %v404
  %v406 = vpop.f32.mrb[0].mxu0
  %v407 = vadd.f32 0.0, %v406
  %408 = vmatprep.mubr.f32.mxu0 0.0
  %409 = vmatmul.mubr.f32.gmra.mrb[0].mxu0 %v36
  %v410 = vpop.f32.mrb[0].mxu0
  %v411 = vadd.f32 0.0, %v410
  %v412 = vpop.f32.mrb[0].mxu0
  %v413 = vadd.f32 0.0, %v412
  %414 = vmatprep.mubr.f32.mxu0 0.0
  %415 = vmatmul.mubr.f32.gmra.mrb[0].mxu0 %v39
  %v416 = vpop.f32.mrb[0].mxu0
  %v417 = vadd.f32 0.0, %v416
  %v418 = vpop.f32.mrb[0].mxu0
  %v419 = vadd.f32 0.0, %v418
  %420 = vdwg.mxu0
  %421 = vmatprep.subr.mxu0 0.0
  %422 = vmatpush1.msra.mxu0 %v24
  %423 = vmatprep.subr.mxu0 0.0
  %424 = vmatpush1.msra.mxu0 0.0
  %425 = vmatprep.subr.mxu0 0.0
  %426 = vmatpush1.msra.mxu0 0.0
  %427 = vmatprep.subr.mxu0 0.0
  %428 = vmatpush1.msra.mxu0 0.0
  %429 = vmatprep.subr.mxu0 0.0
  %430 = vmatpush1.msra.mxu0 0.0
  %431 = vmatprep.subr.mxu0 0.0
  %432 = vmatpush1.msra.mxu0 0.0
  %433 = vmatprep.subr.mxu0 0.0
  %434 = vmatpush1.msra.mxu0 0.0
  %435 = vmatprep.subr.mxu0 0.0
  %436 = vmatpush1.msra.mxu0 0.0
  %437 = vmatprep.subr.mxu0 0.0
  %438 = vmatpush1.msra.mxu0 0.0
  %439 = vmatprep.subr.mxu0 0.0
  %440 = vmatpush1.msra.mxu0 0.0
  %441 = vmatprep.subr.mxu0 0.0
  %442 = vmatpush1.msra.mxu0 0.0
  %443 = vmatprep.subr.mxu0 0.0
  %444 = vmatpush1.msra.mxu0 0.0
  %445 = vmatprep.subr.mxu0 0.0
  %446 = vmatpush1.msra.mxu0 0.0
  %447 = vmatprep.subr.mxu0 0.0
  %448 = vmatpush1.msra.mxu0 0.0
  %449 = vmatprep.subr.mxu0 0.0
  %450 = vmatpush1.msra.mxu0 0.0
  %451 = vmatprep.subr.mxu0 0.0
  %452 = vmatpush1.msra.mxu0 0.0
  %453 = vmatprep.subr.mxu0 0.0
  %454 = vmatpush1.msra.mxu0 0.0
  %455 = vmatprep.subr.mxu0 0.0
  %456 = vmatpush1.msra.mxu0 0.0
  %457 = vmatprep.subr.mxu0 0.0
  %458 = vmatpush1.msra.mxu0 0.0
  %459 = vmatprep.subr.mxu0 0.0
  %460 = vmatpush1.msra.mxu0 0.0
  %461 = vmatprep.subr.mxu0 0.0
  %462 = vmatpush1.msra.mxu0 0.0
  %463 = vmatprep.subr.mxu0 0.0
  %464 = vmatpush1.msra.mxu0 0.0
  %465 = vmatprep.subr.mxu0 0.0
  %466 = vmatpush1.msra.mxu0 0.0
  %467 = vmatprep.subr.mxu0 0.0
  %468 = vmatpush1.msra.mxu0 0.0
  %469 = vmatprep.subr.mxu0 0.0
  %470 = vmatpush1.msra.mxu0 0.0
  %471 = vmatprep.subr.mxu0 0.0
  %472 = vmatpush1.msra.mxu0 0.0
  %473 = vmatprep.subr.mxu0 0.0
  %474 = vmatpush1.msra.mxu0 0.0
  %475 = vmatprep.subr.mxu0 0.0
  %476 = vmatpush1.msra.mxu0 0.0
  %477 = vmatprep.subr.mxu0 0.0
  %478 = vmatpush1.msra.mxu0 0.0
  %479 = vmatprep.subr.mxu0 0.0
  %480 = vmatpush1.msra.mxu0 0.0
  %481 = vmatprep.subr.mxu0 0.0
  %482 = vmatpush1.msra.mxu0 0.0
  %483 = vmatprep.subr.mxu0 0.0
  %484 = vmatpush1.msra.mxu0 0.0
  %485 = vmatprep.mubr.f32.mxu0 0.0
  %486 = vmatmul.mubr.f32.gmra.mrb[0].mxu0 %v27
  %v487 = vpop.f32.mrb[0].mxu0
  %v488 = vadd.f32 0.0, %v487
  %v489 = vpop.f32.mrb[0].mxu0
  %490 = vmatprep.mubr.f32.mxu0 0.0
  %491 = vmatmul.mubr.f32.gmra.mrb[0].mxu0 %v30
  %v492 = vpop.f32.mrb[0].mxu0
  %v493 = vadd.f32 0.0, %v492
  %v494 = vpop.f32.mrb[0].mxu0
  %495 = vmatprep.mubr.f32.mxu0 0.0
  %496 = vmatmul.mubr.f32.gmra.mrb[0].mxu0 %v33
  %v497 = vpop.f32.mrb[0].mxu0
  %v498 = vadd.f32 0.0, %v497
  %v499 = vpop.f32.mrb[0].mxu0
  %500 = vmatprep.mubr.f32.mxu0 0.0
  %501 = vmatmul.mubr.f32.gmra.mrb[0].mxu0 %v36
  %v502 = vpop.f32.mrb[0].mxu0
  %v503 = vadd.f32 0.0, %v502
  %v504 = vpop.f32.mrb[0].mxu0
  %505 = vmatprep.mubr.f32.mxu0 0.0
  %506 = vmatmul.mubr.f32.gmra.mrb[0].mxu0 %v39
  %v507 = vpop.f32.mrb[0].mxu0
  %v508 = vadd.f32 0.0, %v507
  %v509 = vpop.f32.mrb[0].mxu0
  %510 = vdwg.mxu0
  %511 = vst [vmem:[%s2] sm:$0xff] %v108
  %512 = vst [vmem:[%s2 + $0x8] sm:$0xff] %v110
  %513 = vst [vmem:[%s2 + $0x10] sm:$0xff] %v203
  %514 = vst [vmem:[%s2 + $0x18] sm:$0xff] %v205
  %515 = vst [vmem:[%s2 + $0x20] sm:$0xff] %v298
  %516 = vst [vmem:[%s2 + $0x28] sm:$0xff] %v300
  %517 = vst [vmem:[%s2 + $0x30] sm:$0xff] %v393
  %518 = vst [vmem:[%s2 + $0x38] sm:$0xff] %v395
  %vm519 = vcmask 261120
  %520 = vst.msk [vmem:[%s2 + $0x40] sm:$0xff] %vm519, %v488
  %521 = vst [vmem:[%s2 + $0x48] sm:$0xff] %v114
  %522 = vst [vmem:[%s2 + $0x50] sm:$0xff] %v116
  %523 = vst [vmem:[%s2 + $0x58] sm:$0xff] %v209
  %524 = vst [vmem:[%s2 + $0x60] sm:$0xff] %v211
  %525 = vst [vmem:[%s2 + $0x68] sm:$0xff] %v304
  %526 = vst [vmem:[%s2 + $0x70] sm:$0xff] %v306
  %527 = vst [vmem:[%s2 + $0x78] sm:$0xff] %v399
  %528 = vst [vmem:[%s2 + $0x80] sm:$0xff] %v401
  %529 = vst.msk [vmem:[%s2 + $0x88] sm:$0xff] %vm519, %v493
  %530 = vst [vmem:[%s2 + $0x90] sm:$0xff] %v120
  %531 = vst [vmem:[%s2 + $0x98] sm:$0xff] %v122
  %532 = vst [vmem:[%s2 + $0xa0] sm:$0xff] %v215
  %533 = vst [vmem:[%s2 + $0xa8] sm:$0xff] %v217
  %534 = vst [vmem:[%s2 + $0xb0] sm:$0xff] %v310
  %535 = vst [vmem:[%s2 + $0xb8] sm:$0xff] %v312
  %536 = vst [vmem:[%s2 + $0xc0] sm:$0xff] %v405
  %537 = vst [vmem:[%s2 + $0xc8] sm:$0xff] %v407
  %538 = vst.msk [vmem:[%s2 + $0xd0] sm:$0xff] %vm519, %v498
  %539 = vst [vmem:[%s2 + $0xd8] sm:$0xff] %v126
  %540 = vst [vmem:[%s2 + $0xe0] sm:$0xff] %v128
  %541 = vst [vmem:[%s2 + $0xe8] sm:$0xff] %v221
  %542 = vst [vmem:[%s2 + $0xf0] sm:$0xff] %v223
  %543 = vst [vmem:[%s2 + $0xf8] sm:$0xff] %v316
  %544 = vst [vmem:[%s2 + $0x100] sm:$0xff] %v318
  %545 = vst [vmem:[%s2 + $0x108] sm:$0xff] %v411
  %546 = vst [vmem:[%s2 + $0x110] sm:$0xff] %v413
  %547 = vst.msk [vmem:[%s2 + $0x118] sm:$0xff] %vm519, %v503
  %548 = vst [vmem:[%s2 + $0x120] sm:$0xf] %v132
  %549 = vst [vmem:[%s2 + $0x128] sm:$0xf] %v134
  %550 = vst [vmem:[%s2 + $0x130] sm:$0xf] %v227
  %551 = vst [vmem:[%s2 + $0x138] sm:$0xf] %v229
  %552 = vst [vmem:[%s2 + $0x140] sm:$0xf] %v322
  %553 = vst [vmem:[%s2 + $0x148] sm:$0xf] %v324
  %554 = vst [vmem:[%s2 + $0x150] sm:$0xf] %v417
  %555 = vst [vmem:[%s2 + $0x158] sm:$0xf] %v419
  %vm556 = vcmask 257024
  %557 = vst.msk [vmem:[%s2 + $0x160] sm:$0xf] %vm556, %v508
  // Predicated region
  $region10: #{_lambda_.12} parent=0 // pred_check
    _
  $region11: #{_lambda_.12} parent=0 // pred_check_branch
    %559 = sbr.rel (0) target = $region13
  $region12: #{_lambda_.12} parent=0 // pred_region
    _
  $region13: #{_lambda_.12} parent=0 // pred_fallthru
    _
  // Predicated region
  $region14: #{_lambda_.12} parent=0 // pred_check
    _
  $region15: #{_lambda_.12} parent=0 // pred_check_branch
    %561 = sbr.rel (0) target = $region17
  $region16: #{_lambda_.12} parent=0 // pred_region
    _
  $region17: #{_lambda_.12} parent=0 // pred_fallthru
    _

// kernel: _lambda_.13
$region0: #{_lambda_.13}
  #allocation0 [shape = 'u32[]', space=smem, size = 0x4, offset = 0x4, fixed_abs, tag = 'smem constant byte address 0x4 - core index']
  #allocation1 [shape = 'u32[144,128]{1,0:T(1,128)}', space=vmem, size = 0x12000, scoped, tag = 'internal scratch']
  %s0 = inlined_call_operand.vmem [shape: f32[25,4], index: 0, kind: input, shape index: {}]
  %s1 = inlined_call_operand.vmem [shape: f32[4,4032], index: 1, kind: input, shape index: {}]
  %s2 = inlined_call_operand.vmem [shape: f32[25,4032], index: 2, kind: output, shape index: {}]
  %s3 = sld [smem:[#allocation0]]
  $region18: #{_lambda_.13} parent=0
    _
  %s5 = ssub.s32 1, %s3
  %s6 = scalar_select 0, %s5, %s3
  // Predicated region
  $region2: #{_lambda_.13} parent=0 // pred_check
    _
  $region3: #{_lambda_.13} parent=0 // pred_check_branch
    %8 = sbr.rel (0) target = $region5
  $region4: #{_lambda_.13} parent=0 // pred_region
    _
  $region5: #{_lambda_.13} parent=0 // pred_fallthru
    _
  // Predicated region
  $region6: #{_lambda_.13} parent=0 // pred_check
    _
  $region7: #{_lambda_.13} parent=0 // pred_check_branch
    %10 = sbr.rel (0) target = $region9
  $region8: #{_lambda_.13} parent=0 // pred_region
    _
  $region9: #{_lambda_.13} parent=0 // pred_fallthru
    _
  %v11 = vld [vmem:[%s0] sm:$0xff]
  %v12 = vld [vmem:[%s0 + $0x8] sm:$0xff]
  %v13 = vld [vmem:[%s0 + $0x10] sm:$0xff]
  %v14 = vld [vmem:[%s0 + $0x18] sm:$0x1]
  %v15 = vld [vmem:[%s1] sm:$0xff]
  %v16 = vld [vmem:[%s1 + $0x8] sm:$0xff]
  %v17 = vld [vmem:[%s1 + $0x10] sm:$0xff]
  %v18 = vld [vmem:[%s1 + $0x18] sm:$0xff]
  %v19 = vld [vmem:[%s1 + $0x20] sm:$0xff]
  %v20 = vld [vmem:[%s1 + $0x28] sm:$0xff]
  %v21 = vld [vmem:[%s1 + $0x30] sm:$0xff]
  %v22 = vld [vmem:[%s1 + $0x38] sm:$0xff]
  %v23 = vld [vmem:[%s1 + $0x40] sm:$0xff]
  %v24 = vld [vmem:[%s1 + $0x48] sm:$0xff]
  %v25 = vld [vmem:[%s1 + $0x50] sm:$0xff]
  %v26 = vld [vmem:[%s1 + $0x58] sm:$0xff]
  %v27 = vld [vmem:[%s1 + $0x60] sm:$0xff]
  %v28 = vld [vmem:[%s1 + $0x68] sm:$0xff]
  %v29 = vld [vmem:[%s1 + $0x70] sm:$0xff]
  %v30 = vld [vmem:[%s1 + $0x78] sm:$0xff]
  %v47 = vcombine.high %v15, %v15
  %v48 = vcombine.high %v16, %v16
  %v49 = vcombine.high %v17, %v17
  %v50 = vcombine.high %v18, %v18
  %v51 = vcombine.high %v19, %v19
  %v52 = vcombine.high %v20, %v20
  %v53 = vcombine.high %v21, %v21
  %v54 = vcombine.high %v22, %v22
  %v55 = vcombine.high %v23, %v23
  %v56 = vcombine.high %v24, %v24
  %v57 = vcombine.high %v25, %v25
  %v58 = vcombine.high %v26, %v26
  %v59 = vcombine.high %v27, %v27
  %v60 = vcombine.high %v28, %v28
  %v61 = vcombine.high %v29, %v29
  %v62 = vcombine.high %v30, %v30
  %vm63 = vcmask 31744
  %v65 = vsel %vm63, %v11, 0
  %v68 = vsel %vm63, %v12, 0
  %v71 = vsel %vm63, %v13, 0
  %v74 = vsel %vm63, %v14, 0
  %vm76 = vcmask 1043456
  %v77 = vsel %vm76, %v15, 0
  %v79 = vsel %vm76, %v47, 0
  %v81 = vsel %vm76, %v16, 0
  %v83 = vsel %vm76, %v48, 0
  %v85 = vsel %vm76, %v17, 0
  %v87 = vsel %vm76, %v49, 0
  %v89 = vsel %vm76, %v18, 0
  %v91 = vsel %vm76, %v50, 0
  %v93 = vsel %vm76, %v19, 0
  %v95 = vsel %vm76, %v51, 0
  %v97 = vsel %vm76, %v20, 0
  %v99 = vsel %vm76, %v52, 0
  %v101 = vsel %vm76, %v21, 0
  %v103 = vsel %vm76, %v53, 0
  %v105 = vsel %vm76, %v22, 0
  %v107 = vsel %vm76, %v54, 0
  %v109 = vsel %vm76, %v23, 0
  %v111 = vsel %vm76, %v55, 0
  %v113 = vsel %vm76, %v24, 0
  %v115 = vsel %vm76, %v56, 0
  %v117 = vsel %vm76, %v25, 0
  %v119 = vsel %vm76, %v57, 0
  %v121 = vsel %vm76, %v26, 0
  %v123 = vsel %vm76, %v58, 0
  %v125 = vsel %vm76, %v27, 0
  %v127 = vsel %vm76, %v59, 0
  %v129 = vsel %vm76, %v28, 0
  %v131 = vsel %vm76, %v60, 0
  %v133 = vsel %vm76, %v29, 0
  %v135 = vsel %vm76, %v61, 0
  %v137 = vsel %vm76, %v30, 0
  %v139 = vsel %vm76, %v62, 0
  %141 = vmatprep.subr.mxu0 %v79
  %142 = vmatpush1.msra.mxu0 %v77
  %143 = vmatprep.subr.mxu0 0.0
  %144 = vmatpush1.msra.mxu0 0.0
  %145 = vmatprep.subr.mxu0 0.0
  %146 = vmatpush1.msra.mxu0 0.0
  %147 = vmatprep.subr.mxu0 0.0
  %148 = vmatpush1.msra.mxu0 0.0
  %149 = vmatprep.subr.mxu0 0.0
  %150 = vmatpush1.msra.mxu0 0.0
  %151 = vmatprep.subr.mxu0 0.0
  %152 = vmatpush1.msra.mxu0 0.0
  %153 = vmatprep.subr.mxu0 0.0
  %154 = vmatpush1.msra.mxu0 0.0
  %155 = vmatprep.subr.mxu0 0.0
  %156 = vmatpush1.msra.mxu0 0.0
  %157 = vmatprep.subr.mxu0 0.0
  %158 = vmatpush1.msra.mxu0 0.0
  %159 = vmatprep.subr.mxu0 0.0
  %160 = vmatpush1.msra.mxu0 0.0
  %161 = vmatprep.subr.mxu0 0.0
  %162 = vmatpush1.msra.mxu0 0.0
  %163 = vmatprep.subr.mxu0 0.0
  %164 = vmatpush1.msra.mxu0 0.0
  %165 = vmatprep.subr.mxu0 0.0
  %166 = vmatpush1.msra.mxu0 0.0
  %167 = vmatprep.subr.mxu0 0.0
  %168 = vmatpush1.msra.mxu0 0.0
  %169 = vmatprep.subr.mxu0 0.0
  %170 = vmatpush1.msra.mxu0 0.0
  %171 = vmatprep.subr.mxu0 0.0
  %172 = vmatpush1.msra.mxu0 0.0
  %173 = vmatprep.subr.mxu0 0.0
  %174 = vmatpush1.msra.mxu0 0.0
  %175 = vmatprep.subr.mxu0 0.0
  %176 = vmatpush1.msra.mxu0 0.0
  %177 = vmatprep.subr.mxu0 0.0
  %178 = vmatpush1.msra.mxu0 0.0
  %179 = vmatprep.subr.mxu0 0.0
  %180 = vmatpush1.msra.mxu0 0.0
  %181 = vmatprep.subr.mxu0 0.0
  %182 = vmatpush1.msra.mxu0 0.0
  %183 = vmatprep.subr.mxu0 0.0
  %184 = vmatpush1.msra.mxu0 0.0
  %185 = vmatprep.subr.mxu0 0.0
  %186 = vmatpush1.msra.mxu0 0.0
  %187 = vmatprep.subr.mxu0 0.0
  %188 = vmatpush1.msra.mxu0 0.0
  %189 = vmatprep.subr.mxu0 0.0
  %190 = vmatpush1.msra.mxu0 0.0
  %191 = vmatprep.subr.mxu0 0.0
  %192 = vmatpush1.msra.mxu0 0.0
  %193 = vmatprep.subr.mxu0 0.0
  %194 = vmatpush1.msra.mxu0 0.0
  %195 = vmatprep.subr.mxu0 0.0
  %196 = vmatpush1.msra.mxu0 0.0
  %197 = vmatprep.subr.mxu0 0.0
  %198 = vmatpush1.msra.mxu0 0.0
  %199 = vmatprep.subr.mxu0 0.0
  %200 = vmatpush1.msra.mxu0 0.0
  %201 = vmatprep.subr.mxu0 0.0
  %202 = vmatpush1.msra.mxu0 0.0
  %203 = vmatprep.subr.mxu0 0.0
  %204 = vmatpush1.msra.mxu0 0.0
  %205 = vmatprep.mubr.f32.mxu0 0.0
  %206 = vmatmul.mubr.f32.gmra.mrb[0].mxu0 %v65
  %v207 = vpop.f32.mrb[0].mxu0
  %v208 = vadd.f32 0.0, %v207
  %v209 = vpop.f32.mrb[0].mxu0
  %v210 = vadd.f32 0.0, %v209
  %211 = vmatprep.mubr.f32.mxu0 0.0
  %212 = vmatmul.mubr.f32.gmra.mrb[0].mxu0 %v68
  %v213 = vpop.f32.mrb[0].mxu0
  %v214 = vadd.f32 0.0, %v213
  %v215 = vpop.f32.mrb[0].mxu0
  %v216 = vadd.f32 0.0, %v215
  %217 = vmatprep.mubr.f32.mxu0 0.0
  %218 = vmatmul.mubr.f32.gmra.mrb[0].mxu0 %v71
  %v219 = vpop.f32.mrb[0].mxu0
  %v220 = vadd.f32 0.0, %v219
  %v221 = vpop.f32.mrb[0].mxu0
  %v222 = vadd.f32 0.0, %v221
  %223 = vmatprep.mubr.f32.mxu0 0.0
  %224 = vmatmul.mubr.f32.gmra.mrb[0].mxu0 %v74
  %v225 = vpop.f32.mrb[0].mxu0
  %v226 = vadd.f32 0.0, %v225
  %v227 = vpop.f32.mrb[0].mxu0
  %v228 = vadd.f32 0.0, %v227
  %229 = vdwg.mxu0
  %230 = vmatprep.subr.mxu0 %v83
  %231 = vmatpush1.msra.mxu0 %v81
  %232 = vmatprep.subr.mxu0 0.0
  %233 = vmatpush1.msra.mxu0 0.0
  %234 = vmatprep.subr.mxu0 0.0
  %235 = vmatpush1.msra.mxu0 0.0
  %236 = vmatprep.subr.mxu0 0.0
  %237 = vmatpush1.msra.mxu0 0.0
  %238 = vmatprep.subr.mxu0 0.0
  %239 = vmatpush1.msra.mxu0 0.0
  %240 = vmatprep.subr.mxu0 0.0
  %241 = vmatpush1.msra.mxu0 0.0
  %242 = vmatprep.subr.mxu0 0.0
  %243 = vmatpush1.msra.mxu0 0.0
  %244 = vmatprep.subr.mxu0 0.0
  %245 = vmatpush1.msra.mxu0 0.0
  %246 = vmatprep.subr.mxu0 0.0
  %247 = vmatpush1.msra.mxu0 0.0
  %248 = vmatprep.subr.mxu0 0.0
  %249 = vmatpush1.msra.mxu0 0.0
  %250 = vmatprep.subr.mxu0 0.0
  %251 = vmatpush1.msra.mxu0 0.0
  %252 = vmatprep.subr.mxu0 0.0
  %253 = vmatpush1.msra.mxu0 0.0
  %254 = vmatprep.subr.mxu0 0.0
  %255 = vmatpush1.msra.mxu0 0.0
  %256 = vmatprep.subr.mxu0 0.0
  %257 = vmatpush1.msra.mxu0 0.0
  %258 = vmatprep.subr.mxu0 0.0
  %259 = vmatpush1.msra.mxu0 0.0
  %260 = vmatprep.subr.mxu0 0.0
  %261 = vmatpush1.msra.mxu0 0.0
  %262 = vmatprep.subr.mxu0 0.0
  %263 = vmatpush1.msra.mxu0 0.0
  %264 = vmatprep.subr.mxu0 0.0
  %265 = vmatpush1.msra.mxu0 0.0
  %266 = vmatprep.subr.mxu0 0.0
  %267 = vmatpush1.msra.mxu0 0.0
  %268 = vmatprep.subr.mxu0 0.0
  %269 = vmatpush1.msra.mxu0 0.0
  %270 = vmatprep.subr.mxu0 0.0
  %271 = vmatpush1.msra.mxu0 0.0
  %272 = vmatprep.subr.mxu0 0.0
  %273 = vmatpush1.msra.mxu0 0.0
  %274 = vmatprep.subr.mxu0 0.0
  %275 = vmatpush1.msra.mxu0 0.0
  %276 = vmatprep.subr.mxu0 0.0
  %277 = vmatpush1.msra.mxu0 0.0
  %278 = vmatprep.subr.mxu0 0.0
  %279 = vmatpush1.msra.mxu0 0.0
  %280 = vmatprep.subr.mxu0 0.0
  %281 = vmatpush1.msra.mxu0 0.0
  %282 = vmatprep.subr.mxu0 0.0
  %283 = vmatpush1.msra.mxu0 0.0
  %284 = vmatprep.subr.mxu0 0.0
  %285 = vmatpush1.msra.mxu0 0.0
  %286 = vmatprep.subr.mxu0 0.0
  %287 = vmatpush1.msra.mxu0 0.0
  %288 = vmatprep.subr.mxu0 0.0
  %289 = vmatpush1.msra.mxu0 0.0
  %290 = vmatprep.subr.mxu0 0.0
  %291 = vmatpush1.msra.mxu0 0.0
  %292 = vmatprep.subr.mxu0 0.0
  %293 = vmatpush1.msra.mxu0 0.0
  %294 = vmatprep.mubr.f32.mxu0 0.0
  %295 = vmatmul.mubr.f32.gmra.mrb[0].mxu0 %v65
  %v296 = vpop.f32.mrb[0].mxu0
  %v297 = vadd.f32 0.0, %v296
  %v298 = vpop.f32.mrb[0].mxu0
  %v299 = vadd.f32 0.0, %v298
  %300 = vmatprep.mubr.f32.mxu0 0.0
  %301 = vmatmul.mubr.f32.gmra.mrb[0].mxu0 %v68
  %v302 = vpop.f32.mrb[0].mxu0
  %v303 = vadd.f32 0.0, %v302
  %v304 = vpop.f32.mrb[0].mxu0
  %v305 = vadd.f32 0.0, %v304
  %306 = vmatprep.mubr.f32.mxu0 0.0
  %307 = vmatmul.mubr.f32.gmra.mrb[0].mxu0 %v71
  %v308 = vpop.f32.mrb[0].mxu0
  %v309 = vadd.f32 0.0, %v308
  %v310 = vpop.f32.mrb[0].mxu0
  %v311 = vadd.f32 0.0, %v310
  %312 = vmatprep.mubr.f32.mxu0 0.0
  %313 = vmatmul.mubr.f32.gmra.mrb[0].mxu0 %v74
  %v314 = vpop.f32.mrb[0].mxu0
  %v315 = vadd.f32 0.0, %v314
  %v316 = vpop.f32.mrb[0].mxu0
  %v317 = vadd.f32 0.0, %v316
  %318 = vdwg.mxu0
  %319 = vmatprep.subr.mxu0 %v87
  %320 = vmatpush1.msra.mxu0 %v85
  %321 = vmatprep.subr.mxu0 0.0
  %322 = vmatpush1.msra.mxu0 0.0
  %323 = vmatprep.subr.mxu0 0.0
  %324 = vmatpush1.msra.mxu0 0.0
  %325 = vmatprep.subr.mxu0 0.0
  %326 = vmatpush1.msra.mxu0 0.0
  %327 = vmatprep.subr.mxu0 0.0
  %328 = vmatpush1.msra.mxu0 0.0
  %329 = vmatprep.subr.mxu0 0.0
  %330 = vmatpush1.msra.mxu0 0.0
  %331 = vmatprep.subr.mxu0 0.0
  %332 = vmatpush1.msra.mxu0 0.0
  %333 = vmatprep.subr.mxu0 0.0
  %334 = vmatpush1.msra.mxu0 0.0
  %335 = vmatprep.subr.mxu0 0.0
  %336 = vmatpush1.msra.mxu0 0.0
  %337 = vmatprep.subr.mxu0 0.0
  %338 = vmatpush1.msra.mxu0 0.0
  %339 = vmatprep.subr.mxu0 0.0
  %340 = vmatpush1.msra.mxu0 0.0
  %341 = vmatprep.subr.mxu0 0.0
  %342 = vmatpush1.msra.mxu0 0.0
  %343 = vmatprep.subr.mxu0 0.0
  %344 = vmatpush1.msra.mxu0 0.0
  %345 = vmatprep.subr.mxu0 0.0
  %346 = vmatpush1.msra.mxu0 0.0
  %347 = vmatprep.subr.mxu0 0.0
  %348 = vmatpush1.msra.mxu0 0.0
  %349 = vmatprep.subr.mxu0 0.0
  %350 = vmatpush1.msra.mxu0 0.0
  %351 = vmatprep.subr.mxu0 0.0
  %352 = vmatpush1.msra.mxu0 0.0
  %353 = vmatprep.subr.mxu0 0.0
  %354 = vmatpush1.msra.mxu0 0.0
  %355 = vmatprep.subr.mxu0 0.0
  %356 = vmatpush1.msra.mxu0 0.0
  %357 = vmatprep.subr.mxu0 0.0
  %358 = vmatpush1.msra.mxu0 0.0
  %359 = vmatprep.subr.mxu0 0.0
  %360 = vmatpush1.msra.mxu0 0.0
  %361 = vmatprep.subr.mxu0 0.0
  %362 = vmatpush1.msra.mxu0 0.0
  %363 = vmatprep.subr.mxu0 0.0
  %364 = vmatpush1.msra.mxu0 0.0
  %365 = vmatprep.subr.mxu0 0.0
  %366 = vmatpush1.msra.mxu0 0.0
  %367 = vmatprep.subr.mxu0 0.0
  %368 = vmatpush1.msra.mxu0 0.0
  %369 = vmatprep.subr.mxu0 0.0
  %370 = vmatpush1.msra.mxu0 0.0
  %371 = vmatprep.subr.mxu0 0.0
  %372 = vmatpush1.msra.mxu0 0.0
  %373 = vmatprep.subr.mxu0 0.0
  %374 = vmatpush1.msra.mxu0 0.0
  %375 = vmatprep.subr.mxu0 0.0
  %376 = vmatpush1.msra.mxu0 0.0
  %377 = vmatprep.subr.mxu0 0.0
  %378 = vmatpush1.msra.mxu0 0.0
  %379 = vmatprep.subr.mxu0 0.0
  %380 = vmatpush1.msra.mxu0 0.0
  %381 = vmatprep.subr.mxu0 0.0
  %382 = vmatpush1.msra.mxu0 0.0
  %383 = vmatprep.mubr.f32.mxu0 0.0
  %384 = vmatmul.mubr.f32.gmra.mrb[0].mxu0 %v65
  %v385 = vpop.f32.mrb[0].mxu0
  %v386 = vadd.f32 0.0, %v385
  %v387 = vpop.f32.mrb[0].mxu0
  %v388 = vadd.f32 0.0, %v387
  %389 = vmatprep.mubr.f32.mxu0 0.0
  %390 = vmatmul.mubr.f32.gmra.mrb[0].mxu0 %v68
  %v391 = vpop.f32.mrb[0].mxu0
  %v392 = vadd.f32 0.0, %v391
  %v393 = vpop.f32.mrb[0].mxu0
  %v394 = vadd.f32 0.0, %v393
  %395 = vmatprep.mubr.f32.mxu0 0.0
  %396 = vmatmul.mubr.f32.gmra.mrb[0].mxu0 %v71
  %v397 = vpop.f32.mrb[0].mxu0
  %v398 = vadd.f32 0.0, %v397
  %v399 = vpop.f32.mrb[0].mxu0
  %v400 = vadd.f32 0.0, %v399
  %401 = vmatprep.mubr.f32.mxu0 0.0
  %402 = vmatmul.mubr.f32.gmra.mrb[0].mxu0 %v74
  %v403 = vpop.f32.mrb[0].mxu0
  %v404 = vadd.f32 0.0, %v403
  %v405 = vpop.f32.mrb[0].mxu0
  %v406 = vadd.f32 0.0, %v405
  %407 = vdwg.mxu0
  %408 = vmatprep.subr.mxu0 %v91
  %409 = vmatpush1.msra.mxu0 %v89
  %410 = vmatprep.subr.mxu0 0.0
  %411 = vmatpush1.msra.mxu0 0.0
  %412 = vmatprep.subr.mxu0 0.0
  %413 = vmatpush1.msra.mxu0 0.0
  %414 = vmatprep.subr.mxu0 0.0
  %415 = vmatpush1.msra.mxu0 0.0
  %416 = vmatprep.subr.mxu0 0.0
  %417 = vmatpush1.msra.mxu0 0.0
  %418 = vmatprep.subr.mxu0 0.0
  %419 = vmatpush1.msra.mxu0 0.0
  %420 = vmatprep.subr.mxu0 0.0
  %421 = vmatpush1.msra.mxu0 0.0
  %422 = vmatprep.subr.mxu0 0.0
  %423 = vmatpush1.msra.mxu0 0.0
  %424 = vmatprep.subr.mxu0 0.0
  %425 = vmatpush1.msra.mxu0 0.0
  %426 = vmatprep.subr.mxu0 0.0
  %427 = vmatpush1.msra.mxu0 0.0
  %428 = vmatprep.subr.mxu0 0.0
  %429 = vmatpush1.msra.mxu0 0.0
  %430 = vmatprep.subr.mxu0 0.0
  %431 = vmatpush1.msra.mxu0 0.0
  %432 = vmatprep.subr.mxu0 0.0
  %433 = vmatpush1.msra.mxu0 0.0
  %434 = vmatprep.subr.mxu0 0.0
  %435 = vmatpush1.msra.mxu0 0.0
  %436 = vmatprep.subr.mxu0 0.0
  %437 = vmatpush1.msra.mxu0 0.0
  %438 = vmatprep.subr.mxu0 0.0
  %439 = vmatpush1.msra.mxu0 0.0
  %440 = vmatprep.subr.mxu0 0.0
  %441 = vmatpush1.msra.mxu0 0.0
  %442 = vmatprep.subr.mxu0 0.0
  %443 = vmatpush1.msra.mxu0 0.0
  %444 = vmatprep.subr.mxu0 0.0
  %445 = vmatpush1.msra.mxu0 0.0
  %446 = vmatprep.subr.mxu0 0.0
  %447 = vmatpush1.msra.mxu0 0.0
  %448 = vmatprep.subr.mxu0 0.0
  %449 = vmatpush1.msra.mxu0 0.0
  %450 = vmatprep.subr.mxu0 0.0
  %451 = vmatpush1.msra.mxu0 0.0
  %452 = vmatprep.subr.mxu0 0.0
  %453 = vmatpush1.msra.mxu0 0.0
  %454 = vmatprep.subr.mxu0 0.0
  %455 = vmatpush1.msra.mxu0 0.0
  %456 = vmatprep.subr.mxu0 0.0
  %457 = vmatpush1.msra.mxu0 0.0
  %458 = vmatprep.subr.mxu0 0.0
  %459 = vmatpush1.msra.mxu0 0.0
  %460 = vmatprep.subr.mxu0 0.0
  %461 = vmatpush1.msra.mxu0 0.0
  %462 = vmatprep.subr.mxu0 0.0
  %463 = vmatpush1.msra.mxu0 0.0
  %464 = vmatprep.subr.mxu0 0.0
  %465 = vmatpush1.msra.mxu0 0.0
  %466 = vmatprep.subr.mxu0 0.0
  %467 = vmatpush1.msra.mxu0 0.0
  %468 = vmatprep.subr.mxu0 0.0
  %469 = vmatpush1.msra.mxu0 0.0
  %470 = vmatprep.subr.mxu0 0.0
  %471 = vmatpush1.msra.mxu0 0.0
  %472 = vmatprep.mubr.f32.mxu0 0.0
  %473 = vmatmul.mubr.f32.gmra.mrb[0].mxu0 %v65
  %v474 = vpop.f32.mrb[0].mxu0
  %v475 = vadd.f32 0.0, %v474
  %v476 = vpop.f32.mrb[0].mxu0
  %v477 = vadd.f32 0.0, %v476
  %478 = vmatprep.mubr.f32.mxu0 0.0
  %479 = vmatmul.mubr.f32.gmra.mrb[0].mxu0 %v68
  %v480 = vpop.f32.mrb[0].mxu0
  %v481 = vadd.f32 0.0, %v480
  %v482 = vpop.f32.mrb[0].mxu0
  %v483 = vadd.f32 0.0, %v482
  %484 = vmatprep.mubr.f32.mxu0 0.0
  %485 = vmatmul.mubr.f32.gmra.mrb[0].mxu0 %v71
  %v486 = vpop.f32.mrb[0].mxu0
  %v487 = vadd.f32 0.0, %v486
  %v488 = vpop.f32.mrb[0].mxu0
  %v489 = vadd.f32 0.0, %v488
  %490 = vmatprep.mubr.f32.mxu0 0.0
  %491 = vmatmul.mubr.f32.gmra.mrb[0].mxu0 %v74
  %v492 = vpop.f32.mrb[0].mxu0
  %v493 = vadd.f32 0.0, %v492
  %v494 = vpop.f32.mrb[0].mxu0
  %v495 = vadd.f32 0.0, %v494
  %496 = vdwg.mxu0
  %497 = vmatprep.subr.mxu0 %v95
  %498 = vmatpush1.msra.mxu0 %v93
  %499 = vmatprep.subr.mxu0 0.0
  %500 = vmatpush1.msra.mxu0 0.0
  %501 = vmatprep.subr.mxu0 0.0
  %502 = vmatpush1.msra.mxu0 0.0
  %503 = vmatprep.subr.mxu0 0.0
  %504 = vmatpush1.msra.mxu0 0.0
  %505 = vmatprep.subr.mxu0 0.0
  %506 = vmatpush1.msra.mxu0 0.0
  %507 = vmatprep.subr.mxu0 0.0
  %508 = vmatpush1.msra.mxu0 0.0
  %509 = vmatprep.subr.mxu0 0.0
  %510 = vmatpush1.msra.mxu0 0.0
  %511 = vmatprep.subr.mxu0 0.0
  %512 = vmatpush1.msra.mxu0 0.0
  %513 = vmatprep.subr.mxu0 0.0
  %514 = vmatpush1.msra.mxu0 0.0
  %515 = vmatprep.subr.mxu0 0.0
  %516 = vmatpush1.msra.mxu0 0.0
  %517 = vmatprep.subr.mxu0 0.0
  %518 = vmatpush1.msra.mxu0 0.0
  %519 = vmatprep.subr.mxu0 0.0
  %520 = vmatpush1.msra.mxu0 0.0
  %521 = vmatprep.subr.mxu0 0.0
  %522 = vmatpush1.msra.mxu0 0.0
  %523 = vmatprep.subr.mxu0 0.0
  %524 = vmatpush1.msra.mxu0 0.0
  %525 = vmatprep.subr.mxu0 0.0
  %526 = vmatpush1.msra.mxu0 0.0
  %527 = vmatprep.subr.mxu0 0.0
  %528 = vmatpush1.msra.mxu0 0.0
  %529 = vmatprep.subr.mxu0 0.0
  %530 = vmatpush1.msra.mxu0 0.0
  %531 = vmatprep.subr.mxu0 0.0
  %532 = vmatpush1.msra.mxu0 0.0
  %533 = vmatprep.subr.mxu0 0.0
  %534 = vmatpush1.msra.mxu0 0.0
  %535 = vmatprep.subr.mxu0 0.0
  %536 = vmatpush1.msra.mxu0 0.0
  %537 = vmatprep.subr.mxu0 0.0
  %538 = vmatpush1.msra.mxu0 0.0
  %539 = vmatprep.subr.mxu0 0.0
  %540 = vmatpush1.msra.mxu0 0.0
  %541 = vmatprep.subr.mxu0 0.0
  %542 = vmatpush1.msra.mxu0 0.0
  %543 = vmatprep.subr.mxu0 0.0
  %544 = vmatpush1.msra.mxu0 0.0
  %545 = vmatprep.subr.mxu0 0.0
  %546 = vmatpush1.msra.mxu0 0.0
  %547 = vmatprep.subr.mxu0 0.0
  %548 = vmatpush1.msra.mxu0 0.0
  %549 = vmatprep.subr.mxu0 0.0
  %550 = vmatpush1.msra.mxu0 0.0
  %551 = vmatprep.subr.mxu0 0.0
  %552 = vmatpush1.msra.mxu0 0.0
  %553 = vmatprep.subr.mxu0 0.0
  %554 = vmatpush1.msra.mxu0 0.0
  %555 = vmatprep.subr.mxu0 0.0
  %556 = vmatpush1.msra.mxu0 0.0
  %557 = vmatprep.subr.mxu0 0.0
  %558 = vmatpush1.msra.mxu0 0.0
  %559 = vmatprep.subr.mxu0 0.0
  %560 = vmatpush1.msra.mxu0 0.0
  %561 = vmatprep.mubr.f32.mxu0 0.0
  %562 = vmatmul.mubr.f32.gmra.mrb[0].mxu0 %v65
  %v563 = vpop.f32.mrb[0].mxu0
  %v564 = vadd.f32 0.0, %v563
  %v565 = vpop.f32.mrb[0].mxu0
  %v566 = vadd.f32 0.0, %v565
  %567 = vmatprep.mubr.f32.mxu0 0.0
  %568 = vmatmul.mubr.f32.gmra.mrb[0].mxu0 %v68
  %v569 = vpop.f32.mrb[0].mxu0
  %v570 = vadd.f32 0.0, %v569
  %v571 = vpop.f32.mrb[0].mxu0
  %v572 = vadd.f32 0.0, %v571
  %573 = vmatprep.mubr.f32.mxu0 0.0
  %574 = vmatmul.mubr.f32.gmra.mrb[0].mxu0 %v71
  %v575 = vpop.f32.mrb[0].mxu0
  %v576 = vadd.f32 0.0, %v575
  %v577 = vpop.f32.mrb[0].mxu0
  %v578 = vadd.f32 0.0, %v577
  %579 = vmatprep.mubr.f32.mxu0 0.0
  %580 = vmatmul.mubr.f32.gmra.mrb[0].mxu0 %v74
  %v581 = vpop.f32.mrb[0].mxu0
  %v582 = vadd.f32 0.0, %v581
  %v583 = vpop.f32.mrb[0].mxu0
  %v584 = vadd.f32 0.0, %v583
  %585 = vdwg.mxu0
  %586 = vmatprep.subr.mxu0 %v99
  %587 = vmatpush1.msra.mxu0 %v97
  %588 = vmatprep.subr.mxu0 0.0
  %589 = vmatpush1.msra.mxu0 0.0
  %590 = vmatprep.subr.mxu0 0.0
  %591 = vmatpush1.msra.mxu0 0.0
  %592 = vmatprep.subr.mxu0 0.0
  %593 = vmatpush1.msra.mxu0 0.0
  %594 = vmatprep.subr.mxu0 0.0
  %595 = vmatpush1.msra.mxu0 0.0
  %596 = vmatprep.subr.mxu0 0.0
  %597 = vmatpush1.msra.mxu0 0.0
  %598 = vmatprep.subr.mxu0 0.0
  %599 = vmatpush1.msra.mxu0 0.0
  %600 = vmatprep.subr.mxu0 0.0
  %601 = vmatpush1.msra.mxu0 0.0
  %602 = vmatprep.subr.mxu0 0.0
  %603 = vmatpush1.msra.mxu0 0.0
  %604 = vmatprep.subr.mxu0 0.0
  %605 = vmatpush1.msra.mxu0 0.0
  %606 = vmatprep.subr.mxu0 0.0
  %607 = vmatpush1.msra.mxu0 0.0
  %608 = vmatprep.subr.mxu0 0.0
  %609 = vmatpush1.msra.mxu0 0.0
  %610 = vmatprep.subr.mxu0 0.0
  %611 = vmatpush1.msra.mxu0 0.0
  %612 = vmatprep.subr.mxu0 0.0
  %613 = vmatpush1.msra.mxu0 0.0
  %614 = vmatprep.subr.mxu0 0.0
  %615 = vmatpush1.msra.mxu0 0.0
  %616 = vmatprep.subr.mxu0 0.0
  %617 = vmatpush1.msra.mxu0 0.0
  %618 = vmatprep.subr.mxu0 0.0
  %619 = vmatpush1.msra.mxu0 0.0
  %620 = vmatprep.subr.mxu0 0.0
  %621 = vmatpush1.msra.mxu0 0.0
  %622 = vmatprep.subr.mxu0 0.0
  %623 = vmatpush1.msra.mxu0 0.0
  %624 = vmatprep.subr.mxu0 0.0
  %625 = vmatpush1.msra.mxu0 0.0
  %626 = vmatprep.subr.mxu0 0.0
  %627 = vmatpush1.msra.mxu0 0.0
  %628 = vmatprep.subr.mxu0 0.0
  %629 = vmatpush1.msra.mxu0 0.0
  %630 = vmatprep.subr.mxu0 0.0
  %631 = vmatpush1.msra.mxu0 0.0
  %632 = vmatprep.subr.mxu0 0.0
  %633 = vmatpush1.msra.mxu0 0.0
  %634 = vmatprep.subr.mxu0 0.0
  %635 = vmatpush1.msra.mxu0 0.0
  %636 = vmatprep.subr.mxu0 0.0
  %637 = vmatpush1.msra.mxu0 0.0
  %638 = vmatprep.subr.mxu0 0.0
  %639 = vmatpush1.msra.mxu0 0.0
  %640 = vmatprep.subr.mxu0 0.0
  %641 = vmatpush1.msra.mxu0 0.0
  %642 = vmatprep.subr.mxu0 0.0
  %643 = vmatpush1.msra.mxu0 0.0
  %644 = vmatprep.subr.mxu0 0.0
  %645 = vmatpush1.msra.mxu0 0.0
  %646 = vmatprep.subr.mxu0 0.0
  %647 = vmatpush1.msra.mxu0 0.0
  %648 = vmatprep.subr.mxu0 0.0
  %649 = vmatpush1.msra.mxu0 0.0
  %650 = vmatprep.mubr.f32.mxu0 0.0
  %651 = vmatmul.mubr.f32.gmra.mrb[0].mxu0 %v65
  %v652 = vpop.f32.mrb[0].mxu0
  %v653 = vadd.f32 0.0, %v652
  %v654 = vpop.f32.mrb[0].mxu0
  %v655 = vadd.f32 0.0, %v654
  %656 = vmatprep.mubr.f32.mxu0 0.0
  %657 = vmatmul.mubr.f32.gmra.mrb[0].mxu0 %v68
  %v658 = vpop.f32.mrb[0].mxu0
  %v659 = vadd.f32 0.0, %v658
  %v660 = vpop.f32.mrb[0].mxu0
  %v661 = vadd.f32 0.0, %v660
  %662 = vmatprep.mubr.f32.mxu0 0.0
  %663 = vmatmul.mubr.f32.gmra.mrb[0].mxu0 %v71
  %v664 = vpop.f32.mrb[0].mxu0
  %v665 = vadd.f32 0.0, %v664
  %v666 = vpop.f32.mrb[0].mxu0
  %v667 = vadd.f32 0.0, %v666
  %668 = vmatprep.mubr.f32.mxu0 0.0
  %669 = vmatmul.mubr.f32.gmra.mrb[0].mxu0 %v74
  %v670 = vpop.f32.mrb[0].mxu0
  %v671 = vadd.f32 0.0, %v670
  %v672 = vpop.f32.mrb[0].mxu0
  %v673 = vadd.f32 0.0, %v672
  %674 = vdwg.mxu0
  %675 = vmatprep.subr.mxu0 %v103
  %676 = vmatpush1.msra.mxu0 %v101
  %677 = vmatprep.subr.mxu0 0.0
  %678 = vmatpush1.msra.mxu0 0.0
  %679 = vmatprep.subr.mxu0 0.0
  %680 = vmatpush1.msra.mxu0 0.0
  %681 = vmatprep.subr.mxu0 0.0
  %682 = vmatpush1.msra.mxu0 0.0
  %683 = vmatprep.subr.mxu0 0.0
  %684 = vmatpush1.msra.mxu0 0.0
  %685 = vmatprep.subr.mxu0 0.0
  %686 = vmatpush1.msra.mxu0 0.0
  %687 = vmatprep.subr.mxu0 0.0
  %688 = vmatpush1.msra.mxu0 0.0
  %689 = vmatprep.subr.mxu0 0.0
  %690 = vmatpush1.msra.mxu0 0.0
  %691 = vmatprep.subr.mxu0 0.0
  %692 = vmatpush1.msra.mxu0 0.0
  %693 = vmatprep.subr.mxu0 0.0
  %694 = vmatpush1.msra.mxu0 0.0
  %695 = vmatprep.subr.mxu0 0.0
  %696 = vmatpush1.msra.mxu0 0.0
  %697 = vmatprep.subr.mxu0 0.0
  %698 = vmatpush1.msra.mxu0 0.0
  %699 = vmatprep.subr.mxu0 0.0
  %700 = vmatpush1.msra.mxu0 0.0
  %701 = vmatprep.subr.mxu0 0.0
  %702 = vmatpush1.msra.mxu0 0.0
  %703 = vmatprep.subr.mxu0 0.0
  %704 = vmatpush1.msra.mxu0 0.0
  %705 = vmatprep.subr.mxu0 0.0
  %706 = vmatpush1.msra.mxu0 0.0
  %707 = vmatprep.subr.mxu0 0.0
  %708 = vmatpush1.msra.mxu0 0.0
  %709 = vmatprep.subr.mxu0 0.0
  %710 = vmatpush1.msra.mxu0 0.0
  %711 = vmatprep.subr.mxu0 0.0
  %712 = vmatpush1.msra.mxu0 0.0
  %713 = vmatprep.subr.mxu0 0.0
  %714 = vmatpush1.msra.mxu0 0.0
  %715 = vmatprep.subr.mxu0 0.0
  %716 = vmatpush1.msra.mxu0 0.0
  %717 = vmatprep.subr.mxu0 0.0
  %718 = vmatpush1.msra.mxu0 0.0
  %719 = vmatprep.subr.mxu0 0.0
  %720 = vmatpush1.msra.mxu0 0.0
  %721 = vmatprep.subr.mxu0 0.0
  %722 = vmatpush1.msra.mxu0 0.0
  %723 = vmatprep.subr.mxu0 0.0
  %724 = vmatpush1.msra.mxu0 0.0
  %725 = vmatprep.subr.mxu0 0.0
  %726 = vmatpush1.msra.mxu0 0.0
  %727 = vmatprep.subr.mxu0 0.0
  %728 = vmatpush1.msra.mxu0 0.0
  %729 = vmatprep.subr.mxu0 0.0
  %730 = vmatpush1.msra.mxu0 0.0
  %731 = vmatprep.subr.mxu0 0.0
  %732 = vmatpush1.msra.mxu0 0.0
  %733 = vmatprep.subr.mxu0 0.0
  %734 = vmatpush1.msra.mxu0 0.0
  %735 = vmatprep.subr.mxu0 0.0
  %736 = vmatpush1.msra.mxu0 0.0
  %737 = vmatprep.subr.mxu0 0.0
  %738 = vmatpush1.msra.mxu0 0.0
  %739 = vmatprep.mubr.f32.mxu0 0.0
  %740 = vmatmul.mubr.f32.gmra.mrb[0].mxu0 %v65
  %v741 = vpop.f32.mrb[0].mxu0
  %v742 = vadd.f32 0.0, %v741
  %v743 = vpop.f32.mrb[0].mxu0
  %v744 = vadd.f32 0.0, %v743
  %745 = vmatprep.mubr.f32.mxu0 0.0
  %746 = vmatmul.mubr.f32.gmra.mrb[0].mxu0 %v68
  %v747 = vpop.f32.mrb[0].mxu0
  %v748 = vadd.f32 0.0, %v747
  %v749 = vpop.f32.mrb[0].mxu0
  %v750 = vadd.f32 0.0, %v749
  %751 = vmatprep.mubr.f32.mxu0 0.0
  %752 = vmatmul.mubr.f32.gmra.mrb[0].mxu0 %v71
  %v753 = vpop.f32.mrb[0].mxu0
  %v754 = vadd.f32 0.0, %v753
  %v755 = vpop.f32.mrb[0].mxu0
  %v756 = vadd.f32 0.0, %v755
  %757 = vmatprep.mubr.f32.mxu0 0.0
  %758 = vmatmul.mubr.f32.gmra.mrb[0].mxu0 %v74
  %v759 = vpop.f32.mrb[0].mxu0
  %v760 = vadd.f32 0.0, %v759
  %v761 = vpop.f32.mrb[0].mxu0
  %v762 = vadd.f32 0.0, %v761
  %763 = vdwg.mxu0
  %764 = vmatprep.subr.mxu0 %v107
  %765 = vmatpush1.msra.mxu0 %v105
  %766 = vmatprep.subr.mxu0 0.0
  %767 = vmatpush1.msra.mxu0 0.0
  %768 = vmatprep.subr.mxu0 0.0
  %769 = vmatpush1.msra.mxu0 0.0
  %770 = vmatprep.subr.mxu0 0.0
  %771 = vmatpush1.msra.mxu0 0.0
  %772 = vmatprep.subr.mxu0 0.0
  %773 = vmatpush1.msra.mxu0 0.0
  %774 = vmatprep.subr.mxu0 0.0
  %775 = vmatpush1.msra.mxu0 0.0
  %776 = vmatprep.subr.mxu0 0.0
  %777 = vmatpush1.msra.mxu0 0.0
  %778 = vmatprep.subr.mxu0 0.0
  %779 = vmatpush1.msra.mxu0 0.0
  %780 = vmatprep.subr.mxu0 0.0
  %781 = vmatpush1.msra.mxu0 0.0
  %782 = vmatprep.subr.mxu0 0.0
  %783 = vmatpush1.msra.mxu0 0.0
  %784 = vmatprep.subr.mxu0 0.0
  %785 = vmatpush1.msra.mxu0 0.0
  %786 = vmatprep.subr.mxu0 0.0
  %787 = vmatpush1.msra.mxu0 0.0
  %788 = vmatprep.subr.mxu0 0.0
  %789 = vmatpush1.msra.mxu0 0.0
  %790 = vmatprep.subr.mxu0 0.0
  %791 = vmatpush1.msra.mxu0 0.0
  %792 = vmatprep.subr.mxu0 0.0
  %793 = vmatpush1.msra.mxu0 0.0
  %794 = vmatprep.subr.mxu0 0.0
  %795 = vmatpush1.msra.mxu0 0.0
  %796 = vmatprep.subr.mxu0 0.0
  %797 = vmatpush1.msra.mxu0 0.0
  %798 = vmatprep.subr.mxu0 0.0
  %799 = vmatpush1.msra.mxu0 0.0
  %800 = vmatprep.subr.mxu0 0.0
  %801 = vmatpush1.msra.mxu0 0.0
  %802 = vmatprep.subr.mxu0 0.0
  %803 = vmatpush1.msra.mxu0 0.0
  %804 = vmatprep.subr.mxu0 0.0
  %805 = vmatpush1.msra.mxu0 0.0
  %806 = vmatprep.subr.mxu0 0.0
  %807 = vmatpush1.msra.mxu0 0.0
  %808 = vmatprep.subr.mxu0 0.0
  %809 = vmatpush1.msra.mxu0 0.0
  %810 = vmatprep.subr.mxu0 0.0
  %811 = vmatpush1.msra.mxu0 0.0
  %812 = vmatprep.subr.mxu0 0.0
  %813 = vmatpush1.msra.mxu0 0.0
  %814 = vmatprep.subr.mxu0 0.0
  %815 = vmatpush1.msra.mxu0 0.0
  %816 = vmatprep.subr.mxu0 0.0
  %817 = vmatpush1.msra.mxu0 0.0
  %818 = vmatprep.subr.mxu0 0.0
  %819 = vmatpush1.msra.mxu0 0.0
  %820 = vmatprep.subr.mxu0 0.0
  %821 = vmatpush1.msra.mxu0 0.0
  %822 = vmatprep.subr.mxu0 0.0
  %823 = vmatpush1.msra.mxu0 0.0
  %824 = vmatprep.subr.mxu0 0.0
  %825 = vmatpush1.msra.mxu0 0.0
  %826 = vmatprep.subr.mxu0 0.0
  %827 = vmatpush1.msra.mxu0 0.0
  %828 = vmatprep.mubr.f32.mxu0 0.0
  %829 = vmatmul.mubr.f32.gmra.mrb[0].mxu0 %v65
  %v830 = vpop.f32.mrb[0].mxu0
  %v831 = vadd.f32 0.0, %v830
  %v832 = vpop.f32.mrb[0].mxu0
  %v833 = vadd.f32 0.0, %v832
  %834 = vmatprep.mubr.f32.mxu0 0.0
  %835 = vmatmul.mubr.f32.gmra.mrb[0].mxu0 %v68
  %v836 = vpop.f32.mrb[0].mxu0
  %v837 = vadd.f32 0.0, %v836
  %v838 = vpop.f32.mrb[0].mxu0
  %v839 = vadd.f32 0.0, %v838
  %840 = vmatprep.mubr.f32.mxu0 0.0
  %841 = vmatmul.mubr.f32.gmra.mrb[0].mxu0 %v71
  %v842 = vpop.f32.mrb[0].mxu0
  %v843 = vadd.f32 0.0, %v842
  %v844 = vpop.f32.mrb[0].mxu0
  %v845 = vadd.f32 0.0, %v844
  %846 = vmatprep.mubr.f32.mxu0 0.0
  %847 = vmatmul.mubr.f32.gmra.mrb[0].mxu0 %v74
  %v848 = vpop.f32.mrb[0].mxu0
  %v849 = vadd.f32 0.0, %v848
  %v850 = vpop.f32.mrb[0].mxu0
  %v851 = vadd.f32 0.0, %v850
  %852 = vdwg.mxu0
  %853 = vmatprep.subr.mxu0 %v111
  %854 = vmatpush1.msra.mxu0 %v109
  %855 = vmatprep.subr.mxu0 0.0
  %856 = vmatpush1.msra.mxu0 0.0
  %857 = vmatprep.subr.mxu0 0.0
  %858 = vmatpush1.msra.mxu0 0.0
  %859 = vmatprep.subr.mxu0 0.0
  %860 = vmatpush1.msra.mxu0 0.0
  %861 = vmatprep.subr.mxu0 0.0
  %862 = vmatpush1.msra.mxu0 0.0
  %863 = vmatprep.subr.mxu0 0.0
  %864 = vmatpush1.msra.mxu0 0.0
  %865 = vmatprep.subr.mxu0 0.0
  %866 = vmatpush1.msra.mxu0 0.0
  %867 = vmatprep.subr.mxu0 0.0
  %868 = vmatpush1.msra.mxu0 0.0
  %869 = vmatprep.subr.mxu0 0.0
  %870 = vmatpush1.msra.mxu0 0.0
  %871 = vmatprep.subr.mxu0 0.0
  %872 = vmatpush1.msra.mxu0 0.0
  %873 = vmatprep.subr.mxu0 0.0
  %874 = vmatpush1.msra.mxu0 0.0
  %875 = vmatprep.subr.mxu0 0.0
  %876 = vmatpush1.msra.mxu0 0.0
  %877 = vmatprep.subr.mxu0 0.0
  %878 = vmatpush1.msra.mxu0 0.0
  %879 = vmatprep.subr.mxu0 0.0
  %880 = vmatpush1.msra.mxu0 0.0
  %881 = vmatprep.subr.mxu0 0.0
  %882 = vmatpush1.msra.mxu0 0.0
  %883 = vmatprep.subr.mxu0 0.0
  %884 = vmatpush1.msra.mxu0 0.0
  %885 = vmatprep.subr.mxu0 0.0
  %886 = vmatpush1.msra.mxu0 0.0
  %887 = vmatprep.subr.mxu0 0.0
  %888 = vmatpush1.msra.mxu0 0.0
  %889 = vmatprep.subr.mxu0 0.0
  %890 = vmatpush1.msra.mxu0 0.0
  %891 = vmatprep.subr.mxu0 0.0
  %892 = vmatpush1.msra.mxu0 0.0
  %893 = vmatprep.subr.mxu0 0.0
  %894 = vmatpush1.msra.mxu0 0.0
  %895 = vmatprep.subr.mxu0 0.0
  %896 = vmatpush1.msra.mxu0 0.0
  %897 = vmatprep.subr.mxu0 0.0
  %898 = vmatpush1.msra.mxu0 0.0
  %899 = vmatprep.subr.mxu0 0.0
  %900 = vmatpush1.msra.mxu0 0.0
  %901 = vmatprep.subr.mxu0 0.0
  %902 = vmatpush1.msra.mxu0 0.0
  %903 = vmatprep.subr.mxu0 0.0
  %904 = vmatpush1.msra.mxu0 0.0
  %905 = vmatprep.subr.mxu0 0.0
  %906 = vmatpush1.msra.mxu0 0.0
  %907 = vmatprep.subr.mxu0 0.0
  %908 = vmatpush1.msra.mxu0 0.0
  %909 = vmatprep.subr.mxu0 0.0
  %910 = vmatpush1.msra.mxu0 0.0
  %911 = vmatprep.subr.mxu0 0.0
  %912 = vmatpush1.msra.mxu0 0.0
  %913 = vmatprep.subr.mxu0 0.0
  %914 = vmatpush1.msra.mxu0 0.0
  %915 = vmatprep.subr.mxu0 0.0
  %916 = vmatpush1.msra.mxu0 0.0
  %917 = vmatprep.mubr.f32.mxu0 0.0
  %918 = vmatmul.mubr.f32.gmra.mrb[0].mxu0 %v65
  %v919 = vpop.f32.mrb[0].mxu0
  %v920 = vadd.f32 0.0, %v919
  %v921 = vpop.f32.mrb[0].mxu0
  %v922 = vadd.f32 0.0, %v921
  %923 = vmatprep.mubr.f32.mxu0 0.0
  %924 = vmatmul.mubr.f32.gmra.mrb[0].mxu0 %v68
  %v925 = vpop.f32.mrb[0].mxu0
  %v926 = vadd.f32 0.0, %v925
  %v927 = vpop.f32.mrb[0].mxu0
  %v928 = vadd.f32 0.0, %v927
  %929 = vmatprep.mubr.f32.mxu0 0.0
  %930 = vmatmul.mubr.f32.gmra.mrb[0].mxu0 %v71
  %v931 = vpop.f32.mrb[0].mxu0
  %v932 = vadd.f32 0.0, %v931
  %v933 = vpop.f32.mrb[0].mxu0
  %v934 = vadd.f32 0.0, %v933
  %935 = vmatprep.mubr.f32.mxu0 0.0
  %936 = vmatmul.mubr.f32.gmra.mrb[0].mxu0 %v74
  %v937 = vpop.f32.mrb[0].mxu0
  %v938 = vadd.f32 0.0, %v937
  %v939 = vpop.f32.mrb[0].mxu0
  %v940 = vadd.f32 0.0, %v939
  %941 = vdwg.mxu0
  %942 = vmatprep.subr.mxu0 %v115
  %943 = vmatpush1.msra.mxu0 %v113
  %944 = vmatprep.subr.mxu0 0.0
  %945 = vmatpush1.msra.mxu0 0.0
  %946 = vmatprep.subr.mxu0 0.0
  %947 = vmatpush1.msra.mxu0 0.0
  %948 = vmatprep.subr.mxu0 0.0
  %949 = vmatpush1.msra.mxu0 0.0
  %950 = vmatprep.subr.mxu0 0.0
  %951 = vmatpush1.msra.mxu0 0.0
  %952 = vmatprep.subr.mxu0 0.0
  %953 = vmatpush1.msra.mxu0 0.0
  %954 = vmatprep.subr.mxu0 0.0
  %955 = vmatpush1.msra.mxu0 0.0
  %956 = vmatprep.subr.mxu0 0.0
  %957 = vmatpush1.msra.mxu0 0.0
  %958 = vmatprep.subr.mxu0 0.0
  %959 = vmatpush1.msra.mxu0 0.0
  %960 = vmatprep.subr.mxu0 0.0
  %961 = vmatpush1.msra.mxu0 0.0
  %962 = vmatprep.subr.mxu0 0.0
  %963 = vmatpush1.msra.mxu0 0.0
  %964 = vmatprep.subr.mxu0 0.0
  %965 = vmatpush1.msra.mxu0 0.0
  %966 = vmatprep.subr.mxu0 0.0
  %967 = vmatpush1.msra.mxu0 0.0
  %968 = vmatprep.subr.mxu0 0.0
  %969 = vmatpush1.msra.mxu0 0.0
  %970 = vmatprep.subr.mxu0 0.0
  %971 = vmatpush1.msra.mxu0 0.0
  %972 = vmatprep.subr.mxu0 0.0
  %973 = vmatpush1.msra.mxu0 0.0
  %974 = vmatprep.subr.mxu0 0.0
  %975 = vmatpush1.msra.mxu0 0.0
  %976 = vmatprep.subr.mxu0 0.0
  %977 = vmatpush1.msra.mxu0 0.0
  %978 = vmatprep.subr.mxu0 0.0
  %979 = vmatpush1.msra.mxu0 0.0
  %980 = vmatprep.subr.mxu0 0.0
  %981 = vmatpush1.msra.mxu0 0.0
  %982 = vmatprep.subr.mxu0 0.0
  %983 = vmatpush1.msra.mxu0 0.0
  %984 = vmatprep.subr.mxu0 0.0
  %985 = vmatpush1.msra.mxu0 0.0
  %986 = vmatprep.subr.mxu0 0.0
  %987 = vmatpush1.msra.mxu0 0.0
  %988 = vmatprep.subr.mxu0 0.0
  %989 = vmatpush1.msra.mxu0 0.0
  %990 = vmatprep.subr.mxu0 0.0
  %991 = vmatpush1.msra.mxu0 0.0
  %992 = vmatprep.subr.mxu0 0.0
  %993 = vmatpush1.msra.mxu0 0.0
  %994 = vmatprep.subr.mxu0 0.0
  %995 = vmatpush1.msra.mxu0 0.0
  %996 = vmatprep.subr.mxu0 0.0
  %997 = vmatpush1.msra.mxu0 0.0
  %998 = vmatprep.subr.mxu0 0.0
  %999 = vmatpush1.msra.mxu0 0.0
  %1000 = vmatprep.subr.mxu0 0.0
  %1001 = vmatpush1.msra.mxu0 0.0
  %1002 = vmatprep.subr.mxu0 0.0
  %1003 = vmatpush1.msra.mxu0 0.0
  %1004 = vmatprep.subr.mxu0 0.0
  %1005 = vmatpush1.msra.mxu0 0.0
  %1006 = vmatprep.mubr.f32.mxu0 0.0
  %1007 = vmatmul.mubr.f32.gmra.mrb[0].mxu0 %v65
  %v1008 = vpop.f32.mrb[0].mxu0
  %v1009 = vadd.f32 0.0, %v1008
  %v1010 = vpop.f32.mrb[0].mxu0
  %v1011 = vadd.f32 0.0, %v1010
  %1012 = vmatprep.mubr.f32.mxu0 0.0
  %1013 = vmatmul.mubr.f32.gmra.mrb[0].mxu0 %v68
  %v1014 = vpop.f32.mrb[0].mxu0
  %v1015 = vadd.f32 0.0, %v1014
  %v1016 = vpop.f32.mrb[0].mxu0
  %v1017 = vadd.f32 0.0, %v1016
  %1018 = vmatprep.mubr.f32.mxu0 0.0
  %1019 = vmatmul.mubr.f32.gmra.mrb[0].mxu0 %v71
  %v1020 = vpop.f32.mrb[0].mxu0
  %v1021 = vadd.f32 0.0, %v1020
  %v1022 = vpop.f32.mrb[0].mxu0
  %v1023 = vadd.f32 0.0, %v1022
  %1024 = vmatprep.mubr.f32.mxu0 0.0
  %1025 = vmatmul.mubr.f32.gmra.mrb[0].mxu0 %v74
  %v1026 = vpop.f32.mrb[0].mxu0
  %v1027 = vadd.f32 0.0, %v1026
  %v1028 = vpop.f32.mrb[0].mxu0
  %v1029 = vadd.f32 0.0, %v1028
  %1030 = vdwg.mxu0
  %1031 = vmatprep.subr.mxu0 %v119
  %1032 = vmatpush1.msra.mxu0 %v117
  %1033 = vmatprep.subr.mxu0 0.0
  %1034 = vmatpush1.msra.mxu0 0.0
  %1035 = vmatprep.subr.mxu0 0.0
  %1036 = vmatpush1.msra.mxu0 0.0
  %1037 = vmatprep.subr.mxu0 0.0
  %1038 = vmatpush1.msra.mxu0 0.0
  %1039 = vmatprep.subr.mxu0 0.0
  %1040 = vmatpush1.msra.mxu0 0.0
  %1041 = vmatprep.subr.mxu0 0.0
  %1042 = vmatpush1.msra.mxu0 0.0
  %1043 = vmatprep.subr.mxu0 0.0
  %1044 = vmatpush1.msra.mxu0 0.0
  %1045 = vmatprep.subr.mxu0 0.0
  %1046 = vmatpush1.msra.mxu0 0.0
  %1047 = vmatprep.subr.mxu0 0.0
  %1048 = vmatpush1.msra.mxu0 0.0
  %1049 = vmatprep.subr.mxu0 0.0
  %1050 = vmatpush1.msra.mxu0 0.0
  %1051 = vmatprep.subr.mxu0 0.0
  %1052 = vmatpush1.msra.mxu0 0.0
  %1053 = vmatprep.subr.mxu0 0.0
  %1054 = vmatpush1.msra.mxu0 0.0
  %1055 = vmatprep.subr.mxu0 0.0
  %1056 = vmatpush1.msra.mxu0 0.0
  %1057 = vmatprep.subr.mxu0 0.0
  %1058 = vmatpush1.msra.mxu0 0.0
  %1059 = vmatprep.subr.mxu0 0.0
  %1060 = vmatpush1.msra.mxu0 0.0
  %1061 = vmatprep.subr.mxu0 0.0
  %1062 = vmatpush1.msra.mxu0 0.0
  %1063 = vmatprep.subr.mxu0 0.0
  %1064 = vmatpush1.msra.mxu0 0.0
  %1065 = vmatprep.subr.mxu0 0.0
  %1066 = vmatpush1.msra.mxu0 0.0
  %1067 = vmatprep.subr.mxu0 0.0
  %1068 = vmatpush1.msra.mxu0 0.0
  %1069 = vmatprep.subr.mxu0 0.0
  %1070 = vmatpush1.msra.mxu0 0.0
  %1071 = vmatprep.subr.mxu0 0.0
  %1072 = vmatpush1.msra.mxu0 0.0
  %1073 = vmatprep.subr.mxu0 0.0
  %1074 = vmatpush1.msra.mxu0 0.0
  %1075 = vmatprep.subr.mxu0 0.0
  %1076 = vmatpush1.msra.mxu0 0.0
  %1077 = vmatprep.subr.mxu0 0.0
  %1078 = vmatpush1.msra.mxu0 0.0
  %1079 = vmatprep.subr.mxu0 0.0
  %1080 = vmatpush1.msra.mxu0 0.0
  %1081 = vmatprep.subr.mxu0 0.0
  %1082 = vmatpush1.msra.mxu0 0.0
  %1083 = vmatprep.subr.mxu0 0.0
  %1084 = vmatpush1.msra.mxu0 0.0
  %1085 = vmatprep.subr.mxu0 0.0
  %1086 = vmatpush1.msra.mxu0 0.0
  %1087 = vmatprep.subr.mxu0 0.0
  %1088 = vmatpush1.msra.mxu0 0.0
  %1089 = vmatprep.subr.mxu0 0.0
  %1090 = vmatpush1.msra.mxu0 0.0
  %1091 = vmatprep.subr.mxu0 0.0
  %1092 = vmatpush1.msra.mxu0 0.0
  %1093 = vmatprep.subr.mxu0 0.0
  %1094 = vmatpush1.msra.mxu0 0.0
  %1095 = vmatprep.mubr.f32.mxu0 0.0
  %1096 = vmatmul.mubr.f32.gmra.mrb[0].mxu0 %v65
  %v1097 = vpop.f32.mrb[0].mxu0
  %v1098 = vadd.f32 0.0, %v1097
  %v1099 = vpop.f32.mrb[0].mxu0
  %v1100 = vadd.f32 0.0, %v1099
  %1101 = vmatprep.mubr.f32.mxu0 0.0
  %1102 = vmatmul.mubr.f32.gmra.mrb[0].mxu0 %v68
  %v1103 = vpop.f32.mrb[0].mxu0
  %v1104 = vadd.f32 0.0, %v1103
  %v1105 = vpop.f32.mrb[0].mxu0
  %v1106 = vadd.f32 0.0, %v1105
  %1107 = vmatprep.mubr.f32.mxu0 0.0
  %1108 = vmatmul.mubr.f32.gmra.mrb[0].mxu0 %v71
  %v1109 = vpop.f32.mrb[0].mxu0
  %v1110 = vadd.f32 0.0, %v1109
  %v1111 = vpop.f32.mrb[0].mxu0
  %v1112 = vadd.f32 0.0, %v1111
  %1113 = vmatprep.mubr.f32.mxu0 0.0
  %1114 = vmatmul.mubr.f32.gmra.mrb[0].mxu0 %v74
  %v1115 = vpop.f32.mrb[0].mxu0
  %v1116 = vadd.f32 0.0, %v1115
  %v1117 = vpop.f32.mrb[0].mxu0
  %v1118 = vadd.f32 0.0, %v1117
  %1119 = vdwg.mxu0
  %1120 = vmatprep.subr.mxu0 %v123
  %1121 = vmatpush1.msra.mxu0 %v121
  %1122 = vmatprep.subr.mxu0 0.0
  %1123 = vmatpush1.msra.mxu0 0.0
  %1124 = vmatprep.subr.mxu0 0.0
  %1125 = vmatpush1.msra.mxu0 0.0
  %1126 = vmatprep.subr.mxu0 0.0
  %1127 = vmatpush1.msra.mxu0 0.0
  %1128 = vmatprep.subr.mxu0 0.0
  %1129 = vmatpush1.msra.mxu0 0.0
  %1130 = vmatprep.subr.mxu0 0.0
  %1131 = vmatpush1.msra.mxu0 0.0
  %1132 = vmatprep.subr.mxu0 0.0
  %1133 = vmatpush1.msra.mxu0 0.0
  %1134 = vmatprep.subr.mxu0 0.0
  %1135 = vmatpush1.msra.mxu0 0.0
  %1136 = vmatprep.subr.mxu0 0.0
  %1137 = vmatpush1.msra.mxu0 0.0
  %1138 = vmatprep.subr.mxu0 0.0
  %1139 = vmatpush1.msra.mxu0 0.0
  %1140 = vmatprep.subr.mxu0 0.0
  %1141 = vmatpush1.msra.mxu0 0.0
  %1142 = vmatprep.subr.mxu0 0.0
  %1143 = vmatpush1.msra.mxu0 0.0
  %1144 = vmatprep.subr.mxu0 0.0
  %1145 = vmatpush1.msra.mxu0 0.0
  %1146 = vmatprep.subr.mxu0 0.0
  %1147 = vmatpush1.msra.mxu0 0.0
  %1148 = vmatprep.subr.mxu0 0.0
  %1149 = vmatpush1.msra.mxu0 0.0
  %1150 = vmatprep.subr.mxu0 0.0
  %1151 = vmatpush1.msra.mxu0 0.0
  %1152 = vmatprep.subr.mxu0 0.0
  %1153 = vmatpush1.msra.mxu0 0.0
  %1154 = vmatprep.subr.mxu0 0.0
  %1155 = vmatpush1.msra.mxu0 0.0
  %1156 = vmatprep.subr.mxu0 0.0
  %1157 = vmatpush1.msra.mxu0 0.0
  %1158 = vmatprep.subr.mxu0 0.0
  %1159 = vmatpush1.msra.mxu0 0.0
  %1160 = vmatprep.subr.mxu0 0.0
  %1161 = vmatpush1.msra.mxu0 0.0
  %1162 = vmatprep.subr.mxu0 0.0
  %1163 = vmatpush1.msra.mxu0 0.0
  %1164 = vmatprep.subr.mxu0 0.0
  %1165 = vmatpush1.msra.mxu0 0.0
  %1166 = vmatprep.subr.mxu0 0.0
  %1167 = vmatpush1.msra.mxu0 0.0
  %1168 = vmatprep.subr.mxu0 0.0
  %1169 = vmatpush1.msra.mxu0 0.0
  %1170 = vmatprep.subr.mxu0 0.0
  %1171 = vmatpush1.msra.mxu0 0.0
  %1172 = vmatprep.subr.mxu0 0.0
  %1173 = vmatpush1.msra.mxu0 0.0
  %1174 = vmatprep.subr.mxu0 0.0
  %1175 = vmatpush1.msra.mxu0 0.0
  %1176 = vmatprep.subr.mxu0 0.0
  %1177 = vmatpush1.msra.mxu0 0.0
  %1178 = vmatprep.subr.mxu0 0.0
  %1179 = vmatpush1.msra.mxu0 0.0
  %1180 = vmatprep.subr.mxu0 0.0
  %1181 = vmatpush1.msra.mxu0 0.0
  %1182 = vmatprep.subr.mxu0 0.0
  %1183 = vmatpush1.msra.mxu0 0.0
  %1184 = vmatprep.mubr.f32.mxu0 0.0
  %1185 = vmatmul.mubr.f32.gmra.mrb[0].mxu0 %v65
  %v1186 = vpop.f32.mrb[0].mxu0
  %v1187 = vadd.f32 0.0, %v1186
  %v1188 = vpop.f32.mrb[0].mxu0
  %v1189 = vadd.f32 0.0, %v1188
  %1190 = vmatprep.mubr.f32.mxu0 0.0
  %1191 = vmatmul.mubr.f32.gmra.mrb[0].mxu0 %v68
  %v1192 = vpop.f32.mrb[0].mxu0
  %v1193 = vadd.f32 0.0, %v1192
  %v1194 = vpop.f32.mrb[0].mxu0
  %v1195 = vadd.f32 0.0, %v1194
  %1196 = vmatprep.mubr.f32.mxu0 0.0
  %1197 = vmatmul.mubr.f32.gmra.mrb[0].mxu0 %v71
  %v1198 = vpop.f32.mrb[0].mxu0
  %v1199 = vadd.f32 0.0, %v1198
  %v1200 = vpop.f32.mrb[0].mxu0
  %v1201 = vadd.f32 0.0, %v1200
  %1202 = vmatprep.mubr.f32.mxu0 0.0
  %1203 = vmatmul.mubr.f32.gmra.mrb[0].mxu0 %v74
  %v1204 = vpop.f32.mrb[0].mxu0
  %v1205 = vadd.f32 0.0, %v1204
  %v1206 = vpop.f32.mrb[0].mxu0
  %v1207 = vadd.f32 0.0, %v1206
  %1208 = vdwg.mxu0
  %1209 = vmatprep.subr.mxu0 %v127
  %1210 = vmatpush1.msra.mxu0 %v125
  %1211 = vmatprep.subr.mxu0 0.0
  %1212 = vmatpush1.msra.mxu0 0.0
  %1213 = vmatprep.subr.mxu0 0.0
  %1214 = vmatpush1.msra.mxu0 0.0
  %1215 = vmatprep.subr.mxu0 0.0
  %1216 = vmatpush1.msra.mxu0 0.0
  %1217 = vmatprep.subr.mxu0 0.0
  %1218 = vmatpush1.msra.mxu0 0.0
  %1219 = vmatprep.subr.mxu0 0.0
  %1220 = vmatpush1.msra.mxu0 0.0
  %1221 = vmatprep.subr.mxu0 0.0
  %1222 = vmatpush1.msra.mxu0 0.0
  %1223 = vmatprep.subr.mxu0 0.0
  %1224 = vmatpush1.msra.mxu0 0.0
  %1225 = vmatprep.subr.mxu0 0.0
  %1226 = vmatpush1.msra.mxu0 0.0
  %1227 = vmatprep.subr.mxu0 0.0
  %1228 = vmatpush1.msra.mxu0 0.0
  %1229 = vmatprep.subr.mxu0 0.0
  %1230 = vmatpush1.msra.mxu0 0.0
  %1231 = vmatprep.subr.mxu0 0.0
  %1232 = vmatpush1.msra.mxu0 0.0
  %1233 = vmatprep.subr.mxu0 0.0
  %1234 = vmatpush1.msra.mxu0 0.0
  %1235 = vmatprep.subr.mxu0 0.0
  %1236 = vmatpush1.msra.mxu0 0.0
  %1237 = vmatprep.subr.mxu0 0.0
  %1238 = vmatpush1.msra.mxu0 0.0
  %1239 = vmatprep.subr.mxu0 0.0
  %1240 = vmatpush1.msra.mxu0 0.0
  %1241 = vmatprep.subr.mxu0 0.0
  %1242 = vmatpush1.msra.mxu0 0.0
  %1243 = vmatprep.subr.mxu0 0.0
  %1244 = vmatpush1.msra.mxu0 0.0
  %1245 = vmatprep.subr.mxu0 0.0
  %1246 = vmatpush1.msra.mxu0 0.0
  %1247 = vmatprep.subr.mxu0 0.0
  %1248 = vmatpush1.msra.mxu0 0.0
  %1249 = vmatprep.subr.mxu0 0.0
  %1250 = vmatpush1.msra.mxu0 0.0
  %1251 = vmatprep.subr.mxu0 0.0
  %1252 = vmatpush1.msra.mxu0 0.0
  %1253 = vmatprep.subr.mxu0 0.0
  %1254 = vmatpush1.msra.mxu0 0.0
  %1255 = vmatprep.subr.mxu0 0.0
  %1256 = vmatpush1.msra.mxu0 0.0
  %1257 = vmatprep.subr.mxu0 0.0
  %1258 = vmatpush1.msra.mxu0 0.0
  %1259 = vmatprep.subr.mxu0 0.0
  %1260 = vmatpush1.msra.mxu0 0.0
  %1261 = vmatprep.subr.mxu0 0.0
  %1262 = vmatpush1.msra.mxu0 0.0
  %1263 = vmatprep.subr.mxu0 0.0
  %1264 = vmatpush1.msra.mxu0 0.0
  %1265 = vmatprep.subr.mxu0 0.0
  %1266 = vmatpush1.msra.mxu0 0.0
  %1267 = vmatprep.subr.mxu0 0.0
  %1268 = vmatpush1.msra.mxu0 0.0
  %1269 = vmatprep.subr.mxu0 0.0
  %1270 = vmatpush1.msra.mxu0 0.0
  %1271 = vmatprep.subr.mxu0 0.0
  %1272 = vmatpush1.msra.mxu0 0.0
  %1273 = vmatprep.mubr.f32.mxu0 0.0
  %1274 = vmatmul.mubr.f32.gmra.mrb[0].mxu0 %v65
  %v1275 = vpop.f32.mrb[0].mxu0
  %v1276 = vadd.f32 0.0, %v1275
  %v1277 = vpop.f32.mrb[0].mxu0
  %v1278 = vadd.f32 0.0, %v1277
  %1279 = vmatprep.mubr.f32.mxu0 0.0
  %1280 = vmatmul.mubr.f32.gmra.mrb[0].mxu0 %v68
  %v1281 = vpop.f32.mrb[0].mxu0
  %v1282 = vadd.f32 0.0, %v1281
  %v1283 = vpop.f32.mrb[0].mxu0
  %v1284 = vadd.f32 0.0, %v1283
  %1285 = vmatprep.mubr.f32.mxu0 0.0
  %1286 = vmatmul.mubr.f32.gmra.mrb[0].mxu0 %v71
  %v1287 = vpop.f32.mrb[0].mxu0
  %v1288 = vadd.f32 0.0, %v1287
  %v1289 = vpop.f32.mrb[0].mxu0
  %v1290 = vadd.f32 0.0, %v1289
  %1291 = vmatprep.mubr.f32.mxu0 0.0
  %1292 = vmatmul.mubr.f32.gmra.mrb[0].mxu0 %v74
  %v1293 = vpop.f32.mrb[0].mxu0
  %v1294 = vadd.f32 0.0, %v1293
  %v1295 = vpop.f32.mrb[0].mxu0
  %v1296 = vadd.f32 0.0, %v1295
  %1297 = vdwg.mxu0
  %1298 = vmatprep.subr.mxu0 %v131
  %1299 = vmatpush1.msra.mxu0 %v129
  %1300 = vmatprep.subr.mxu0 0.0
  %1301 = vmatpush1.msra.mxu0 0.0
  %1302 = vmatprep.subr.mxu0 0.0
  %1303 = vmatpush1.msra.mxu0 0.0
  %1304 = vmatprep.subr.mxu0 0.0
  %1305 = vmatpush1.msra.mxu0 0.0
  %1306 = vmatprep.subr.mxu0 0.0
  %1307 = vmatpush1.msra.mxu0 0.0
  %1308 = vmatprep.subr.mxu0 0.0
  %1309 = vmatpush1.msra.mxu0 0.0
  %1310 = vmatprep.subr.mxu0 0.0
  %1311 = vmatpush1.msra.mxu0 0.0
  %1312 = vmatprep.subr.mxu0 0.0
  %1313 = vmatpush1.msra.mxu0 0.0
  %1314 = vmatprep.subr.mxu0 0.0
  %1315 = vmatpush1.msra.mxu0 0.0
  %1316 = vmatprep.subr.mxu0 0.0
  %1317 = vmatpush1.msra.mxu0 0.0
  %1318 = vmatprep.subr.mxu0 0.0
  %1319 = vmatpush1.msra.mxu0 0.0
  %1320 = vmatprep.subr.mxu0 0.0
  %1321 = vmatpush1.msra.mxu0 0.0
  %1322 = vmatprep.subr.mxu0 0.0
  %1323 = vmatpush1.msra.mxu0 0.0
  %1324 = vmatprep.subr.mxu0 0.0
  %1325 = vmatpush1.msra.mxu0 0.0
  %1326 = vmatprep.subr.mxu0 0.0
  %1327 = vmatpush1.msra.mxu0 0.0
  %1328 = vmatprep.subr.mxu0 0.0
  %1329 = vmatpush1.msra.mxu0 0.0
  %1330 = vmatprep.subr.mxu0 0.0
  %1331 = vmatpush1.msra.mxu0 0.0
  %1332 = vmatprep.subr.mxu0 0.0
  %1333 = vmatpush1.msra.mxu0 0.0
  %1334 = vmatprep.subr.mxu0 0.0
  %1335 = vmatpush1.msra.mxu0 0.0
  %1336 = vmatprep.subr.mxu0 0.0
  %1337 = vmatpush1.msra.mxu0 0.0
  %1338 = vmatprep.subr.mxu0 0.0
  %1339 = vmatpush1.msra.mxu0 0.0
  %1340 = vmatprep.subr.mxu0 0.0
  %1341 = vmatpush1.msra.mxu0 0.0
  %1342 = vmatprep.subr.mxu0 0.0
  %1343 = vmatpush1.msra.mxu0 0.0
  %1344 = vmatprep.subr.mxu0 0.0
  %1345 = vmatpush1.msra.mxu0 0.0
  %1346 = vmatprep.subr.mxu0 0.0
  %1347 = vmatpush1.msra.mxu0 0.0
  %1348 = vmatprep.subr.mxu0 0.0
  %1349 = vmatpush1.msra.mxu0 0.0
  %1350 = vmatprep.subr.mxu0 0.0
  %1351 = vmatpush1.msra.mxu0 0.0
  %1352 = vmatprep.subr.mxu0 0.0
  %1353 = vmatpush1.msra.mxu0 0.0
  %1354 = vmatprep.subr.mxu0 0.0
  %1355 = vmatpush1.msra.mxu0 0.0
  %1356 = vmatprep.subr.mxu0 0.0
  %1357 = vmatpush1.msra.mxu0 0.0
  %1358 = vmatprep.subr.mxu0 0.0
  %1359 = vmatpush1.msra.mxu0 0.0
  %1360 = vmatprep.subr.mxu0 0.0
  %1361 = vmatpush1.msra.mxu0 0.0
  %1362 = vmatprep.mubr.f32.mxu0 0.0
  %1363 = vmatmul.mubr.f32.gmra.mrb[0].mxu0 %v65
  %v1364 = vpop.f32.mrb[0].mxu0
  %v1365 = vadd.f32 0.0, %v1364
  %v1366 = vpop.f32.mrb[0].mxu0
  %v1367 = vadd.f32 0.0, %v1366
  %1368 = vmatprep.mubr.f32.mxu0 0.0
  %1369 = vmatmul.mubr.f32.gmra.mrb[0].mxu0 %v68
  %v1370 = vpop.f32.mrb[0].mxu0
  %v1371 = vadd.f32 0.0, %v1370
  %v1372 = vpop.f32.mrb[0].mxu0
  %v1373 = vadd.f32 0.0, %v1372
  %1374 = vmatprep.mubr.f32.mxu0 0.0
  %1375 = vmatmul.mubr.f32.gmra.mrb[0].mxu0 %v71
  %v1376 = vpop.f32.mrb[0].mxu0
  %v1377 = vadd.f32 0.0, %v1376
  %v1378 = vpop.f32.mrb[0].mxu0
  %v1379 = vadd.f32 0.0, %v1378
  %1380 = vmatprep.mubr.f32.mxu0 0.0
  %1381 = vmatmul.mubr.f32.gmra.mrb[0].mxu0 %v74
  %v1382 = vpop.f32.mrb[0].mxu0
  %v1383 = vadd.f32 0.0, %v1382
  %v1384 = vpop.f32.mrb[0].mxu0
  %v1385 = vadd.f32 0.0, %v1384
  %1386 = vdwg.mxu0
  %1387 = vmatprep.subr.mxu0 %v135
  %1388 = vmatpush1.msra.mxu0 %v133
  %1389 = vmatprep.subr.mxu0 0.0
  %1390 = vmatpush1.msra.mxu0 0.0
  %1391 = vmatprep.subr.mxu0 0.0
  %1392 = vmatpush1.msra.mxu0 0.0
  %1393 = vmatprep.subr.mxu0 0.0
  %1394 = vmatpush1.msra.mxu0 0.0
  %1395 = vmatprep.subr.mxu0 0.0
  %1396 = vmatpush1.msra.mxu0 0.0
  %1397 = vmatprep.subr.mxu0 0.0
  %1398 = vmatpush1.msra.mxu0 0.0
  %1399 = vmatprep.subr.mxu0 0.0
  %1400 = vmatpush1.msra.mxu0 0.0
  %1401 = vmatprep.subr.mxu0 0.0
  %1402 = vmatpush1.msra.mxu0 0.0
  %1403 = vmatprep.subr.mxu0 0.0
  %1404 = vmatpush1.msra.mxu0 0.0
  %1405 = vmatprep.subr.mxu0 0.0
  %1406 = vmatpush1.msra.mxu0 0.0
  %1407 = vmatprep.subr.mxu0 0.0
  %1408 = vmatpush1.msra.mxu0 0.0
  %1409 = vmatprep.subr.mxu0 0.0
  %1410 = vmatpush1.msra.mxu0 0.0
  %1411 = vmatprep.subr.mxu0 0.0
  %1412 = vmatpush1.msra.mxu0 0.0
  %1413 = vmatprep.subr.mxu0 0.0
  %1414 = vmatpush1.msra.mxu0 0.0
  %1415 = vmatprep.subr.mxu0 0.0
  %1416 = vmatpush1.msra.mxu0 0.0
  %1417 = vmatprep.subr.mxu0 0.0
  %1418 = vmatpush1.msra.mxu0 0.0
  %1419 = vmatprep.subr.mxu0 0.0
  %1420 = vmatpush1.msra.mxu0 0.0
  %1421 = vmatprep.subr.mxu0 0.0
  %1422 = vmatpush1.msra.mxu0 0.0
  %1423 = vmatprep.subr.mxu0 0.0
  %1424 = vmatpush1.msra.mxu0 0.0
  %1425 = vmatprep.subr.mxu0 0.0
  %1426 = vmatpush1.msra.mxu0 0.0
  %1427 = vmatprep.subr.mxu0 0.0
  %1428 = vmatpush1.msra.mxu0 0.0
  %1429 = vmatprep.subr.mxu0 0.0
  %1430 = vmatpush1.msra.mxu0 0.0
  %1431 = vmatprep.subr.mxu0 0.0
  %1432 = vmatpush1.msra.mxu0 0.0
  %1433 = vmatprep.subr.mxu0 0.0
  %1434 = vmatpush1.msra.mxu0 0.0
  %1435 = vmatprep.subr.mxu0 0.0
  %1436 = vmatpush1.msra.mxu0 0.0
  %1437 = vmatprep.subr.mxu0 0.0
  %1438 = vmatpush1.msra.mxu0 0.0
  %1439 = vmatprep.subr.mxu0 0.0
  %1440 = vmatpush1.msra.mxu0 0.0
  %1441 = vmatprep.subr.mxu0 0.0
  %1442 = vmatpush1.msra.mxu0 0.0
  %1443 = vmatprep.subr.mxu0 0.0
  %1444 = vmatpush1.msra.mxu0 0.0
  %1445 = vmatprep.subr.mxu0 0.0
  %1446 = vmatpush1.msra.mxu0 0.0
  %1447 = vmatprep.subr.mxu0 0.0
  %1448 = vmatpush1.msra.mxu0 0.0
  %1449 = vmatprep.subr.mxu0 0.0
  %1450 = vmatpush1.msra.mxu0 0.0
  %1451 = vmatprep.mubr.f32.mxu0 0.0
  %1452 = vmatmul.mubr.f32.gmra.mrb[0].mxu0 %v65
  %v1453 = vpop.f32.mrb[0].mxu0
  %v1454 = vadd.f32 0.0, %v1453
  %v1455 = vpop.f32.mrb[0].mxu0
  %v1456 = vadd.f32 0.0, %v1455
  %1457 = vmatprep.mubr.f32.mxu0 0.0
  %1458 = vmatmul.mubr.f32.gmra.mrb[0].mxu0 %v68
  %v1459 = vpop.f32.mrb[0].mxu0
  %v1460 = vadd.f32 0.0, %v1459
  %v1461 = vpop.f32.mrb[0].mxu0
  %v1462 = vadd.f32 0.0, %v1461
  %1463 = vmatprep.mubr.f32.mxu0 0.0
  %1464 = vmatmul.mubr.f32.gmra.mrb[0].mxu0 %v71
  %v1465 = vpop.f32.mrb[0].mxu0
  %v1466 = vadd.f32 0.0, %v1465
  %v1467 = vpop.f32.mrb[0].mxu0
  %v1468 = vadd.f32 0.0, %v1467
  %1469 = vmatprep.mubr.f32.mxu0 0.0
  %1470 = vmatmul.mubr.f32.gmra.mrb[0].mxu0 %v74
  %v1471 = vpop.f32.mrb[0].mxu0
  %v1472 = vadd.f32 0.0, %v1471
  %v1473 = vpop.f32.mrb[0].mxu0
  %v1474 = vadd.f32 0.0, %v1473
  %1475 = vdwg.mxu0
  %1476 = vmatprep.subr.mxu0 %v139
  %1477 = vmatpush1.msra.mxu0 %v137
  %1478 = vmatprep.subr.mxu0 0.0
  %1479 = vmatpush1.msra.mxu0 0.0
  %1480 = vmatprep.subr.mxu0 0.0
  %1481 = vmatpush1.msra.mxu0 0.0
  %1482 = vmatprep.subr.mxu0 0.0
  %1483 = vmatpush1.msra.mxu0 0.0
  %1484 = vmatprep.subr.mxu0 0.0
  %1485 = vmatpush1.msra.mxu0 0.0
  %1486 = vmatprep.subr.mxu0 0.0
  %1487 = vmatpush1.msra.mxu0 0.0
  %1488 = vmatprep.subr.mxu0 0.0
  %1489 = vmatpush1.msra.mxu0 0.0
  %1490 = vmatprep.subr.mxu0 0.0
  %1491 = vmatpush1.msra.mxu0 0.0
  %1492 = vmatprep.subr.mxu0 0.0
  %1493 = vmatpush1.msra.mxu0 0.0
  %1494 = vmatprep.subr.mxu0 0.0
  %1495 = vmatpush1.msra.mxu0 0.0
  %1496 = vmatprep.subr.mxu0 0.0
  %1497 = vmatpush1.msra.mxu0 0.0
  %1498 = vmatprep.subr.mxu0 0.0
  %1499 = vmatpush1.msra.mxu0 0.0
  %1500 = vmatprep.subr.mxu0 0.0
  %1501 = vmatpush1.msra.mxu0 0.0
  %1502 = vmatprep.subr.mxu0 0.0
  %1503 = vmatpush1.msra.mxu0 0.0
  %1504 = vmatprep.subr.mxu0 0.0
  %1505 = vmatpush1.msra.mxu0 0.0
  %1506 = vmatprep.subr.mxu0 0.0
  %1507 = vmatpush1.msra.mxu0 0.0
  %1508 = vmatprep.subr.mxu0 0.0
  %1509 = vmatpush1.msra.mxu0 0.0
  %1510 = vmatprep.subr.mxu0 0.0
  %1511 = vmatpush1.msra.mxu0 0.0
  %1512 = vmatprep.subr.mxu0 0.0
  %1513 = vmatpush1.msra.mxu0 0.0
  %1514 = vmatprep.subr.mxu0 0.0
  %1515 = vmatpush1.msra.mxu0 0.0
  %1516 = vmatprep.subr.mxu0 0.0
  %1517 = vmatpush1.msra.mxu0 0.0
  %1518 = vmatprep.subr.mxu0 0.0
  %1519 = vmatpush1.msra.mxu0 0.0
  %1520 = vmatprep.subr.mxu0 0.0
  %1521 = vmatpush1.msra.mxu0 0.0
  %1522 = vmatprep.subr.mxu0 0.0
  %1523 = vmatpush1.msra.mxu0 0.0
  %1524 = vmatprep.subr.mxu0 0.0
  %1525 = vmatpush1.msra.mxu0 0.0
  %1526 = vmatprep.subr.mxu0 0.0
  %1527 = vmatpush1.msra.mxu0 0.0
  %1528 = vmatprep.subr.mxu0 0.0
  %1529 = vmatpush1.msra.mxu0 0.0
  %1530 = vmatprep.subr.mxu0 0.0
  %1531 = vmatpush1.msra.mxu0 0.0
  %1532 = vmatprep.subr.mxu0 0.0
  %1533 = vmatpush1.msra.mxu0 0.0
  %1534 = vmatprep.subr.mxu0 0.0
  %1535 = vmatpush1.msra.mxu0 0.0
  %1536 = vmatprep.subr.mxu0 0.0
  %1537 = vmatpush1.msra.mxu0 0.0
  %1538 = vmatprep.subr.mxu0 0.0
  %1539 = vmatpush1.msra.mxu0 0.0
  %1540 = vmatprep.mubr.f32.mxu0 0.0
  %1541 = vmatmul.mubr.f32.gmra.mrb[0].mxu0 %v65
  %v1542 = vpop.f32.mrb[0].mxu0
  %v1543 = vadd.f32 0.0, %v1542
  %v1544 = vpop.f32.mrb[0].mxu0
  %v1545 = vadd.f32 0.0, %v1544
  %1546 = vmatprep.mubr.f32.mxu0 0.0
  %1547 = vmatmul.mubr.f32.gmra.mrb[0].mxu0 %v68
  %v1548 = vpop.f32.mrb[0].mxu0
  %v1549 = vadd.f32 0.0, %v1548
  %v1550 = vpop.f32.mrb[0].mxu0
  %v1551 = vadd.f32 0.0, %v1550
  %1552 = vmatprep.mubr.f32.mxu0 0.0
  %1553 = vmatmul.mubr.f32.gmra.mrb[0].mxu0 %v71
  %v1554 = vpop.f32.mrb[0].mxu0
  %v1555 = vadd.f32 0.0, %v1554
  %v1556 = vpop.f32.mrb[0].mxu0
  %v1557 = vadd.f32 0.0, %v1556
  %1558 = vmatprep.mubr.f32.mxu0 0.0
  %1559 = vmatmul.mubr.f32.gmra.mrb[0].mxu0 %v74
  %v1560 = vpop.f32.mrb[0].mxu0
  %v1561 = vadd.f32 0.0, %v1560
  %v1562 = vpop.f32.mrb[0].mxu0
  %v1563 = vadd.f32 0.0, %v1562
  %1564 = vdwg.mxu0
  %1565 = vst [vmem:[%s2] sm:$0xff] %v208
  %1566 = vst [vmem:[%s2 + $0x8] sm:$0xff] %v210
  %1567 = vst [vmem:[%s2 + $0x10] sm:$0xff] %v297
  %1568 = vst [vmem:[%s2 + $0x18] sm:$0xff] %v299
  %1569 = vst [vmem:[%s2 + $0x20] sm:$0xff] %v386
  %1570 = vst [vmem:[%s2 + $0x28] sm:$0xff] %v388
  %1571 = vst [vmem:[%s2 + $0x30] sm:$0xff] %v475
  %1572 = vst [vmem:[%s2 + $0x38] sm:$0xff] %v477
  %1573 = vst [vmem:[%s2 + $0x40] sm:$0xff] %v564
  %1574 = vst [vmem:[%s2 + $0x48] sm:$0xff] %v566
  %1575 = vst [vmem:[%s2 + $0x50] sm:$0xff] %v653
  %1576 = vst [vmem:[%s2 + $0x58] sm:$0xff] %v655
  %1577 = vst [vmem:[%s2 + $0x60] sm:$0xff] %v742
  %1578 = vst [vmem:[%s2 + $0x68] sm:$0xff] %v744
  %1579 = vst [vmem:[%s2 + $0x70] sm:$0xff] %v831
  %1580 = vst [vmem:[%s2 + $0x78] sm:$0xff] %v833
  %1581 = vst [vmem:[%s2 + $0x80] sm:$0xff] %v920
  %1582 = vst [vmem:[%s2 + $0x88] sm:$0xff] %v922
  %1583 = vst [vmem:[%s2 + $0x90] sm:$0xff] %v1009
  %1584 = vst [vmem:[%s2 + $0x98] sm:$0xff] %v1011
  %1585 = vst [vmem:[%s2 + $0xa0] sm:$0xff] %v1098
  %1586 = vst [vmem:[%s2 + $0xa8] sm:$0xff] %v1100
  %1587 = vst [vmem:[%s2 + $0xb0] sm:$0xff] %v1187
  %1588 = vst [vmem:[%s2 + $0xb8] sm:$0xff] %v1189
  %1589 = vst [vmem:[%s2 + $0xc0] sm:$0xff] %v1276
  %1590 = vst [vmem:[%s2 + $0xc8] sm:$0xff] %v1278
  %1591 = vst [vmem:[%s2 + $0xd0] sm:$0xff] %v1365
  %1592 = vst [vmem:[%s2 + $0xd8] sm:$0xff] %v1367
  %1593 = vst [vmem:[%s2 + $0xe0] sm:$0xff] %v1454
  %1594 = vst [vmem:[%s2 + $0xe8] sm:$0xff] %v1456
  %1595 = vst [vmem:[%s2 + $0xf0] sm:$0xff] %v1543
  %vm1596 = vcmask 523264
  %1597 = vst.msk [vmem:[%s2 + $0xf8] sm:$0xff] %vm1596, %v1545
  %1598 = vst [vmem:[%s2 + $0x100] sm:$0xff] %v214
  %1599 = vst [vmem:[%s2 + $0x108] sm:$0xff] %v216
  %1600 = vst [vmem:[%s2 + $0x110] sm:$0xff] %v303
  %1601 = vst [vmem:[%s2 + $0x118] sm:$0xff] %v305
  %1602 = vst [vmem:[%s2 + $0x120] sm:$0xff] %v392
  %1603 = vst [vmem:[%s2 + $0x128] sm:$0xff] %v394
  %1604 = vst [vmem:[%s2 + $0x130] sm:$0xff] %v481
  %1605 = vst [vmem:[%s2 + $0x138] sm:$0xff] %v483
  %1606 = vst [vmem:[%s2 + $0x140] sm:$0xff] %v570
  %1607 = vst [vmem:[%s2 + $0x148] sm:$0xff] %v572
  %1608 = vst [vmem:[%s2 + $0x150] sm:$0xff] %v659
  %1609 = vst [vmem:[%s2 + $0x158] sm:$0xff] %v661
  %1610 = vst [vmem:[%s2 + $0x160] sm:$0xff] %v748
  %1611 = vst [vmem:[%s2 + $0x168] sm:$0xff] %v750
  %1612 = vst [vmem:[%s2 + $0x170] sm:$0xff] %v837
  %1613 = vst [vmem:[%s2 + $0x178] sm:$0xff] %v839
  %1614 = vst [vmem:[%s2 + $0x180] sm:$0xff] %v926
  %1615 = vst [vmem:[%s2 + $0x188] sm:$0xff] %v928
  %1616 = vst [vmem:[%s2 + $0x190] sm:$0xff] %v1015
  %1617 = vst [vmem:[%s2 + $0x198] sm:$0xff] %v1017
  %1618 = vst [vmem:[%s2 + $0x1a0] sm:$0xff] %v1104
  %1619 = vst [vmem:[%s2 + $0x1a8] sm:$0xff] %v1106
  %1620 = vst [vmem:[%s2 + $0x1b0] sm:$0xff] %v1193
  %1621 = vst [vmem:[%s2 + $0x1b8] sm:$0xff] %v1195
  %1622 = vst [vmem:[%s2 + $0x1c0] sm:$0xff] %v1282
  %1623 = vst [vmem:[%s2 + $0x1c8] sm:$0xff] %v1284
  %1624 = vst [vmem:[%s2 + $0x1d0] sm:$0xff] %v1371
  %1625 = vst [vmem:[%s2 + $0x1d8] sm:$0xff] %v1373
  %1626 = vst [vmem:[%s2 + $0x1e0] sm:$0xff] %v1460
  %1627 = vst [vmem:[%s2 + $0x1e8] sm:$0xff] %v1462
  %1628 = vst [vmem:[%s2 + $0x1f0] sm:$0xff] %v1549
  %1629 = vst.msk [vmem:[%s2 + $0x1f8] sm:$0xff] %vm1596, %v1551
  %1630 = vst [vmem:[%s2 + $0x200] sm:$0xff] %v220
  %1631 = vst [vmem:[%s2 + $0x208] sm:$0xff] %v222
  %1632 = vst [vmem:[%s2 + $0x210] sm:$0xff] %v309
  %1633 = vst [vmem:[%s2 + $0x218] sm:$0xff] %v311
  %1634 = vst [vmem:[%s2 + $0x220] sm:$0xff] %v398
  %1635 = vst [vmem:[%s2 + $0x228] sm:$0xff] %v400
  %1636 = vst [vmem:[%s2 + $0x230] sm:$0xff] %v487
  %1637 = vst [vmem:[%s2 + $0x238] sm:$0xff] %v489
  %1638 = vst [vmem:[%s2 + $0x240] sm:$0xff] %v576
  %1639 = vst [vmem:[%s2 + $0x248] sm:$0xff] %v578
  %1640 = vst [vmem:[%s2 + $0x250] sm:$0xff] %v665
  %1641 = vst [vmem:[%s2 + $0x258] sm:$0xff] %v667
  %1642 = vst [vmem:[%s2 + $0x260] sm:$0xff] %v754
  %1643 = vst [vmem:[%s2 + $0x268] sm:$0xff] %v756
  %1644 = vst [vmem:[%s2 + $0x270] sm:$0xff] %v843
  %1645 = vst [vmem:[%s2 + $0x278] sm:$0xff] %v845
  %1646 = vst [vmem:[%s2 + $0x280] sm:$0xff] %v932
  %1647 = vst [vmem:[%s2 + $0x288] sm:$0xff] %v934
  %1648 = vst [vmem:[%s2 + $0x290] sm:$0xff] %v1021
  %1649 = vst [vmem:[%s2 + $0x298] sm:$0xff] %v1023
  %1650 = vst [vmem:[%s2 + $0x2a0] sm:$0xff] %v1110
  %1651 = vst [vmem:[%s2 + $0x2a8] sm:$0xff] %v1112
  %1652 = vst [vmem:[%s2 + $0x2b0] sm:$0xff] %v1199
  %1653 = vst [vmem:[%s2 + $0x2b8] sm:$0xff] %v1201
  %1654 = vst [vmem:[%s2 + $0x2c0] sm:$0xff] %v1288
  %1655 = vst [vmem:[%s2 + $0x2c8] sm:$0xff] %v1290
  %1656 = vst [vmem:[%s2 + $0x2d0] sm:$0xff] %v1377
  %1657 = vst [vmem:[%s2 + $0x2d8] sm:$0xff] %v1379
  %1658 = vst [vmem:[%s2 + $0x2e0] sm:$0xff] %v1466
  %1659 = vst [vmem:[%s2 + $0x2e8] sm:$0xff] %v1468
  %1660 = vst [vmem:[%s2 + $0x2f0] sm:$0xff] %v1555
  %1661 = vst.msk [vmem:[%s2 + $0x2f8] sm:$0xff] %vm1596, %v1557
  %1662 = vst [vmem:[%s2 + $0x300] sm:$0x1] %v226
  %1663 = vst [vmem:[%s2 + $0x308] sm:$0x1] %v228
  %1664 = vst [vmem:[%s2 + $0x310] sm:$0x1] %v315
  %1665 = vst [vmem:[%s2 + $0x318] sm:$0x1] %v317
  %1666 = vst [vmem:[%s2 + $0x320] sm:$0x1] %v404
  %1667 = vst [vmem:[%s2 + $0x328] sm:$0x1] %v406
  %1668 = vst [vmem:[%s2 + $0x330] sm:$0x1] %v493
  %1669 = vst [vmem:[%s2 + $0x338] sm:$0x1] %v495
  %1670 = vst [vmem:[%s2 + $0x340] sm:$0x1] %v582
  %1671 = vst [vmem:[%s2 + $0x348] sm:$0x1] %v584
  %1672 = vst [vmem:[%s2 + $0x350] sm:$0x1] %v671
  %1673 = vst [vmem:[%s2 + $0x358] sm:$0x1] %v673
  %1674 = vst [vmem:[%s2 + $0x360] sm:$0x1] %v760
  %1675 = vst [vmem:[%s2 + $0x368] sm:$0x1] %v762
  %1676 = vst [vmem:[%s2 + $0x370] sm:$0x1] %v849
  %1677 = vst [vmem:[%s2 + $0x378] sm:$0x1] %v851
  %1678 = vst [vmem:[%s2 + $0x380] sm:$0x1] %v938
  %1679 = vst [vmem:[%s2 + $0x388] sm:$0x1] %v940
  %1680 = vst [vmem:[%s2 + $0x390] sm:$0x1] %v1027
  %1681 = vst [vmem:[%s2 + $0x398] sm:$0x1] %v1029
  %1682 = vst [vmem:[%s2 + $0x3a0] sm:$0x1] %v1116
  %1683 = vst [vmem:[%s2 + $0x3a8] sm:$0x1] %v1118
  %1684 = vst [vmem:[%s2 + $0x3b0] sm:$0x1] %v1205
  %1685 = vst [vmem:[%s2 + $0x3b8] sm:$0x1] %v1207
  %1686 = vst [vmem:[%s2 + $0x3c0] sm:$0x1] %v1294
  %1687 = vst [vmem:[%s2 + $0x3c8] sm:$0x1] %v1296
  %1688 = vst [vmem:[%s2 + $0x3d0] sm:$0x1] %v1383
  %1689 = vst [vmem:[%s2 + $0x3d8] sm:$0x1] %v1385
  %1690 = vst [vmem:[%s2 + $0x3e0] sm:$0x1] %v1472
  %1691 = vst [vmem:[%s2 + $0x3e8] sm:$0x1] %v1474
  %1692 = vst [vmem:[%s2 + $0x3f0] sm:$0x1] %v1561
  %vm1693 = vcmask 516096
  %1694 = vst.msk [vmem:[%s2 + $0x3f8] sm:$0x1] %vm1693, %v1563
  // Predicated region
  $region10: #{_lambda_.13} parent=0 // pred_check
    _
  $region11: #{_lambda_.13} parent=0 // pred_check_branch
    %1696 = sbr.rel (0) target = $region13
  $region12: #{_lambda_.13} parent=0 // pred_region
    _
  $region13: #{_lambda_.13} parent=0 // pred_fallthru
    _
  // Predicated region
  $region14: #{_lambda_.13} parent=0 // pred_check
    _
  $region15: #{_lambda_.13} parent=0 // pred_check_branch
    %1698 = sbr.rel (0) target = $region17
  $region16: #{_lambda_.13} parent=0 // pred_region
    _
  $region17: #{_lambda_.13} parent=0 // pred_fallthru
    _

</llo_original>
